<compile_context>
chip_gen: v7x
topology: tpu7x:2x2x1
jax: 0.10.0
libtpu: 0.0.40
codegen_flags: <defaults>
</compile_context>

<pallas_src>
import functools

import jax
import jax.numpy as jnp
import numpy as np
from jax.experimental import pallas as pl
from jax.experimental.pallas import tpu as pltpu


def _round_up(x, m):
    return (x + m - 1) // m * m


def _cdiv(a, b):
    return (a + b - 1) // b


def _downsample_kernel(x_ref, w_ref, b_ref, o_ref, *, stride, thp, wpp, cin):
    """Fused 3x3 conv (9 shifted matmuls) + folded BN + LeakyReLU(0.01) + 2x2 maxpool.

    x_ref: (1, thp+1, P, Wq, P*cin) bf16  phase-decomposed padded input (+1 halo row-group)
    w_ref: (9, cin, Cp)             bf16  conv taps with BN scale folded in
    b_ref: (1, Cp)                  f32   folded BN bias
    o_ref: (1, thp*wpp, Cp)               pooled output tile
    """
    P = 2 * stride
    pooled_max = None
    for dh in (0, 1):                 # pool-window row position
        for dw in (0, 1):             # pool-window col position
            acc = None                # one live f32 accumulator per pool position
            for kh in range(3):
                for kw in range(3):
                    ro = dh * stride + kh          # padded-input row offset of this tap
                    co = dw * stride + kw          # padded-input col offset of this tap
                    a = x_ref[0,
                              pl.ds(ro // P, thp),          # pooled-row groups (+halo)
                              ro % P,                       # row phase
                              pl.ds(co // P, wpp),          # pooled-col groups (+halo)
                              pl.ds((co % P) * cin, cin)]   # col phase -> channel slice
                    a = a.reshape(thp * wpp, cin)           # free: wpp % 16 == 0 (bf16)
                    d = jnp.dot(a, w_ref[kh * 3 + kw],
                                preferred_element_type=jnp.float32)
                    acc = d if acc is None else acc + d
            pooled_max = acc if pooled_max is None else jnp.maximum(pooled_max, acc)
    # bias + LeakyReLU AFTER the 2x2 max (both monotone, per-channel constant -> exact)
    y = pooled_max + b_ref[...]
    y = jnp.where(y >= 0, y, 0.01 * y)
    o_ref[0] = y.astype(o_ref.dtype)


def downsampling_forward(x_nchw, conv_w, gamma, beta, run_mean, run_var, *, stride, eps=1e-5):
    # TODO(synk): BatchNorm2d is implemented in inference mode (running statistics folded
    #             into the conv weights); training-mode batch statistics are not computed.
    N, Cin, H, W = x_nchw.shape
    Cout = conv_w.shape[0]
    s = int(stride)
    P = 2 * s                              # combined stride of one pooled step in the padded input
    Ho = (H - 1) // s + 1
    Wo = (W - 1) // s + 1
    Hp, Wp = Ho // 2, Wo // 2              # MaxPool2d(2,2) floor mode
    assert Hp >= 1 and Wp >= 1, "output of conv+pool would be empty"
    out_dtype = x_nchw.dtype

    Wpp = _round_up(Wp, 16)                # padded pooled cols: layout-preserving bf16 reshape
    Cp = _round_up(Cout, 128)              # lane-dense weight columns / unmasked output stores

    # --- row-tile size: ~512 matmul rows per grid step, input block bounded to ~4 MiB ---
    THp = max(1, min(Hp, max(1, 512 // Wpp)))
    while THp > 1 and (THp + 1) * P * (Wpp + 1) * P * Cin * 2 > 4 * 2**20:
        THp = (THp + 1) // 2
    n_tiles = _cdiv(Hp, THp)
    THp = _cdiv(Hp, n_tiles)               # balance tiles
    n_tiles = _cdiv(Hp, THp)
    M = THp * Wpp
    G = N * n_tiles                        # fold batch into the (parallel) grid axis

    Rq = n_tiles * THp + 1                 # pooled-row groups incl. 1 halo group
    Wq = Wpp + 1                           # pooled-col groups incl. 1 halo group
    Htot, Wtot = P * Rq, P * Wq
    PC = P * Cin

    # ---- glue: one cheap pass over the RAW input (no 9x im2col in HBM) ----
    x = jnp.transpose(x_nchw, (0, 2, 3, 1)).astype(jnp.bfloat16)           # NHWC bf16
    xp = jnp.pad(x, ((0, 0), (1, Htot - H - 1), (1, Wtot - W - 1), (0, 0)))
    xr = xp.reshape(N, Rq, P, Wq, PC)      # free reshapes: phase-decompose rows & cols by P
    # replicate the single halo row-group so every grid step gets a disjoint block
    xt = jnp.concatenate(
        [xr[:, None, t * THp:t * THp + THp + 1] for t in range(n_tiles)], axis=1)
    xt = xt.reshape(G, THp + 1, P, Wq, PC)

    # PyTorch conv weight (Cout, Cin, 3, 3) -> (9, Cin, Cout); fold BN (eval) scale; pad -> Cp
    inv_std = gamma / jnp.sqrt(run_var + eps)
    w9 = jnp.transpose(conv_w, (2, 3, 1, 0)).reshape(9, Cin, Cout) * inv_std[None, None, :]
    w9 = jnp.pad(w9.astype(jnp.bfloat16), ((0, 0), (0, 0), (0, Cp - Cout)))
    bias = (beta - run_mean * inv_std).astype(jnp.float32)
    bias = jnp.pad(bias, (0, Cp - Cout)).reshape(1, Cp)

    # explicit VMEM budget (double-buffered in/out blocks + resident weights + live f32)
    in_blk = (THp + 1) * P * Wq * PC * 2
    out_blk = M * Cp * jnp.dtype(out_dtype).itemsize
    vmem_need = 2 * in_blk + 2 * out_blk + w9.size * 2 + bias.size * 4 + 4 * M * Cp * 4
    vmem_limit = int(min(64 * 2**20, max(32 * 2**20, 2 * vmem_need)))

    cost = pl.CostEstimate(
        flops=2 * G * 36 * M * Cin * Cp,
        transcendentals=0,
        bytes_accessed=int(xt.size * 2 + w9.size * 2 + bias.size * 4
                           + G * M * Cp * jnp.dtype(out_dtype).itemsize),
    )

    kernel = functools.partial(_downsample_kernel, stride=s, thp=THp, wpp=Wpp, cin=Cin)

    out_flat = pl.pallas_call(
        kernel,
        out_shape=jax.ShapeDtypeStruct((G, M, Cp), out_dtype),
        grid=(G,),
        in_specs=[
            pl.BlockSpec((1, THp + 1, P, Wq, PC), lambda g: (g, 0, 0, 0, 0)),
            pl.BlockSpec((9, Cin, Cp), lambda g: (0, 0, 0)),
            pl.BlockSpec((1, Cp), lambda g: (0, 0)),
        ],
        out_specs=pl.BlockSpec((1, M, Cp), lambda g: (g, 0, 0)),
        compiler_params=pltpu.CompilerParams(
            dimension_semantics=("parallel",),
            vmem_limit_bytes=vmem_limit),
        cost_estimate=cost,
    )(xt, w9, bias)

    out = out_flat.reshape(N, n_tiles * THp, Wpp, Cp)[:, :Hp, :Wp, :Cout]
    return jnp.transpose(out, (0, 3, 1, 2)).astype(out_dtype)               # back to NCHW


def _reference_bf16(x, conv_w, gamma, beta, rm, rv, stride, eps=1e-5):
    """Module semantics (conv -> BN affine -> LeakyReLU -> floor-mode maxpool) with the same
    bf16 input/weight rounding the kernel uses, so only f32 accumulation order differs."""
    inv_std = gamma / jnp.sqrt(rv + eps)
    w_eff = (conv_w * inv_std[:, None, None, None]).astype(jnp.bfloat16).astype(jnp.float32)
    x_q = x.astype(jnp.bfloat16).astype(jnp.float32)
    conv = jax.lax.conv_general_dilated(
        x_q, w_eff, window_strides=(stride, stride), padding=((1, 1), (1, 1)),
        dimension_numbers=("NCHW", "OIHW", "NCHW"),
        precision=jax.lax.Precision.HIGHEST)
    y = conv + (beta - rm * inv_std).reshape(1, -1, 1, 1)
    y = jnp.where(y >= 0, y, 0.01 * y)
    return jax.lax.reduce_window(y, -jnp.inf, jax.lax.max,
                                 (1, 1, 2, 2), (1, 1, 2, 2), "VALID")


if __name__ == "__main__":
    N, Cin, Cout, H, W, stride = 2, 4, 8, 16, 16, 2

    key = jax.random.PRNGKey(0)
    k1, k2, k3, k4, k5, k6 = jax.random.split(key, 6)
    x = jax.random.normal(k1, (N, Cin, H, W), jnp.float32)
    conv_w = jax.random.normal(k2, (Cout, Cin, 3, 3), jnp.float32) * 0.1
    gamma = jax.random.uniform(k3, (Cout,), jnp.float32, minval=0.5, maxval=1.5)
    beta = jax.random.normal(k4, (Cout,), jnp.float32) * 0.1
    run_mean = jax.random.normal(k5, (Cout,), jnp.float32) * 0.1
    run_var = jax.random.uniform(k6, (Cout,), jnp.float32, minval=0.5, maxval=1.5)

    out = downsampling_forward(x, conv_w, gamma, beta, run_mean, run_var, stride=stride)
    out = jax.block_until_ready(out)

    ref = _reference_bf16(x, conv_w, gamma, beta, run_mean, run_var, stride)
    assert out.shape == ref.shape == (N, Cout, H // stride // 2, W // stride // 2)
    np.testing.assert_allclose(np.asarray(out), np.asarray(ref), rtol=1e-2, atol=1e-2)

    print("KERNEL_OK")
</pallas_src>

<mosaic_0001>
module attributes {stable_mosaic.version = 11 : i64} {
  func.func @_downsample_kernel(%arg0: i32, %arg1: memref<1x5x4x17x16xbf16, #tpu.memory_space<vmem>>, %arg2: memref<9x4x128xbf16, #tpu.memory_space<vmem>>, %arg3: memref<1x128xf32, #tpu.memory_space<vmem>>, %arg4: memref<1x64x128xf32, #tpu.memory_space<vmem>>) attributes {dimension_semantics = [#tpu.dimension_semantics<parallel>], iteration_bounds = array<i64: 2>, scalar_prefetch = 0 : i64, scratch_operands = 0 : i64, tpu.core_type = #tpu.core_type<tc>, window_params = [{transform_indices = @transform_0, window_bounds = array<i64: 1, 5, 4, 17, 16>}, {pipeline_mode = #tpu.pipeline_mode<synchronous>, transform_indices = @transform_1, window_bounds = array<i64: 9, 4, 128>}, {pipeline_mode = #tpu.pipeline_mode<synchronous>, transform_indices = @transform_2, window_bounds = array<i64: 1, 128>}, {transform_indices = @transform_3, window_bounds = array<i64: 1, 64, 128>}]} {
    %c0 = arith.constant 0 : index
    %c0_0 = arith.constant 0 : index
    %c0_1 = arith.constant 0 : index
    %c0_2 = arith.constant 0 : index
    %c0_3 = arith.constant 0 : index
    %0 = vector.load %arg1[%c0, %c0_0, %c0_1, %c0_2, %c0_3] : memref<1x5x4x17x16xbf16, #tpu.memory_space<vmem>>, vector<1x4x1x16x4xbf16>
    %1 = vector.shape_cast %0 : vector<1x4x1x16x4xbf16> to vector<4x16x4xbf16>
    %2 = vector.shape_cast %1 : vector<4x16x4xbf16> to vector<64x4xbf16>
    %c0_4 = arith.constant 0 : index
    %c0_5 = arith.constant 0 : index
    %c0_6 = arith.constant 0 : index
    %3 = vector.load %arg2[%c0_4, %c0_5, %c0_6] : memref<9x4x128xbf16, #tpu.memory_space<vmem>>, vector<1x4x128xbf16>
    %4 = vector.shape_cast %3 : vector<1x4x128xbf16> to vector<4x128xbf16>
    %cst = arith.constant dense<0.000000e+00> : vector<64x128xf32>
    %5 = tpu.matmul %2, %4, %cst {dimension_numbers = #tpu.dot_dimension_numbers<[1], [0], [0], [1], [0, 0, 1, 1], [], []>} : vector<64x4xbf16>, vector<4x128xbf16>, vector<64x128xf32> -> vector<64x128xf32>
    %c0_7 = arith.constant 0 : index
    %c0_8 = arith.constant 0 : index
    %c0_9 = arith.constant 0 : index
    %c0_10 = arith.constant 0 : index
    %c4 = arith.constant 4 : index
    %6 = vector.load %arg1[%c0_7, %c0_8, %c0_9, %c0_10, %c4] : memref<1x5x4x17x16xbf16, #tpu.memory_space<vmem>>, vector<1x4x1x16x4xbf16>
    %7 = vector.shape_cast %6 : vector<1x4x1x16x4xbf16> to vector<4x16x4xbf16>
    %8 = vector.shape_cast %7 : vector<4x16x4xbf16> to vector<64x4xbf16>
    %c1 = arith.constant 1 : index
    %c0_11 = arith.constant 0 : index
    %c0_12 = arith.constant 0 : index
    %9 = vector.load %arg2[%c1, %c0_11, %c0_12] : memref<9x4x128xbf16, #tpu.memory_space<vmem>>, vector<1x4x128xbf16>
    %10 = vector.shape_cast %9 : vector<1x4x128xbf16> to vector<4x128xbf16>
    %cst_13 = arith.constant dense<0.000000e+00> : vector<64x128xf32>
    %11 = tpu.matmul %8, %10, %cst_13 {dimension_numbers = #tpu.dot_dimension_numbers<[1], [0], [0], [1], [0, 0, 1, 1], [], []>} : vector<64x4xbf16>, vector<4x128xbf16>, vector<64x128xf32> -> vector<64x128xf32>
    %12 = arith.addf %5, %11 : vector<64x128xf32>
    %c0_14 = arith.constant 0 : index
    %c0_15 = arith.constant 0 : index
    %c0_16 = arith.constant 0 : index
    %c0_17 = arith.constant 0 : index
    %c8 = arith.constant 8 : index
    %13 = vector.load %arg1[%c0_14, %c0_15, %c0_16, %c0_17, %c8] : memref<1x5x4x17x16xbf16, #tpu.memory_space<vmem>>, vector<1x4x1x16x4xbf16>
    %14 = vector.shape_cast %13 : vector<1x4x1x16x4xbf16> to vector<4x16x4xbf16>
    %15 = vector.shape_cast %14 : vector<4x16x4xbf16> to vector<64x4xbf16>
    %c2 = arith.constant 2 : index
    %c0_18 = arith.constant 0 : index
    %c0_19 = arith.constant 0 : index
    %16 = vector.load %arg2[%c2, %c0_18, %c0_19] : memref<9x4x128xbf16, #tpu.memory_space<vmem>>, vector<1x4x128xbf16>
    %17 = vector.shape_cast %16 : vector<1x4x128xbf16> to vector<4x128xbf16>
    %cst_20 = arith.constant dense<0.000000e+00> : vector<64x128xf32>
    %18 = tpu.matmul %15, %17, %cst_20 {dimension_numbers = #tpu.dot_dimension_numbers<[1], [0], [0], [1], [0, 0, 1, 1], [], []>} : vector<64x4xbf16>, vector<4x128xbf16>, vector<64x128xf32> -> vector<64x128xf32>
    %19 = arith.addf %12, %18 : vector<64x128xf32>
    %c0_21 = arith.constant 0 : index
    %c0_22 = arith.constant 0 : index
    %c1_23 = arith.constant 1 : index
    %c0_24 = arith.constant 0 : index
    %c0_25 = arith.constant 0 : index
    %20 = vector.load %arg1[%c0_21, %c0_22, %c1_23, %c0_24, %c0_25] : memref<1x5x4x17x16xbf16, #tpu.memory_space<vmem>>, vector<1x4x1x16x4xbf16>
    %21 = vector.shape_cast %20 : vector<1x4x1x16x4xbf16> to vector<4x16x4xbf16>
    %22 = vector.shape_cast %21 : vector<4x16x4xbf16> to vector<64x4xbf16>
    %c3 = arith.constant 3 : index
    %c0_26 = arith.constant 0 : index
    %c0_27 = arith.constant 0 : index
    %23 = vector.load %arg2[%c3, %c0_26, %c0_27] : memref<9x4x128xbf16, #tpu.memory_space<vmem>>, vector<1x4x128xbf16>
    %24 = vector.shape_cast %23 : vector<1x4x128xbf16> to vector<4x128xbf16>
    %cst_28 = arith.constant dense<0.000000e+00> : vector<64x128xf32>
    %25 = tpu.matmul %22, %24, %cst_28 {dimension_numbers = #tpu.dot_dimension_numbers<[1], [0], [0], [1], [0, 0, 1, 1], [], []>} : vector<64x4xbf16>, vector<4x128xbf16>, vector<64x128xf32> -> vector<64x128xf32>
    %26 = arith.addf %19, %25 : vector<64x128xf32>
    %c0_29 = arith.constant 0 : index
    %c0_30 = arith.constant 0 : index
    %c1_31 = arith.constant 1 : index
    %c0_32 = arith.constant 0 : index
    %c4_33 = arith.constant 4 : index
    %27 = vector.load %arg1[%c0_29, %c0_30, %c1_31, %c0_32, %c4_33] : memref<1x5x4x17x16xbf16, #tpu.memory_space<vmem>>, vector<1x4x1x16x4xbf16>
    %28 = vector.shape_cast %27 : vector<1x4x1x16x4xbf16> to vector<4x16x4xbf16>
    %29 = vector.shape_cast %28 : vector<4x16x4xbf16> to vector<64x4xbf16>
    %c4_34 = arith.constant 4 : index
    %c0_35 = arith.constant 0 : index
    %c0_36 = arith.constant 0 : index
    %30 = vector.load %arg2[%c4_34, %c0_35, %c0_36] : memref<9x4x128xbf16, #tpu.memory_space<vmem>>, vector<1x4x128xbf16>
    %31 = vector.shape_cast %30 : vector<1x4x128xbf16> to vector<4x128xbf16>
    %cst_37 = arith.constant dense<0.000000e+00> : vector<64x128xf32>
    %32 = tpu.matmul %29, %31, %cst_37 {dimension_numbers = #tpu.dot_dimension_numbers<[1], [0], [0], [1], [0, 0, 1, 1], [], []>} : vector<64x4xbf16>, vector<4x128xbf16>, vector<64x128xf32> -> vector<64x128xf32>
    %33 = arith.addf %26, %32 : vector<64x128xf32>
    %c0_38 = arith.constant 0 : index
    %c0_39 = arith.constant 0 : index
    %c1_40 = arith.constant 1 : index
    %c0_41 = arith.constant 0 : index
    %c8_42 = arith.constant 8 : index
    %34 = vector.load %arg1[%c0_38, %c0_39, %c1_40, %c0_41, %c8_42] : memref<1x5x4x17x16xbf16, #tpu.memory_space<vmem>>, vector<1x4x1x16x4xbf16>
    %35 = vector.shape_cast %34 : vector<1x4x1x16x4xbf16> to vector<4x16x4xbf16>
    %36 = vector.shape_cast %35 : vector<4x16x4xbf16> to vector<64x4xbf16>
    %c5 = arith.constant 5 : index
    %c0_43 = arith.constant 0 : index
    %c0_44 = arith.constant 0 : index
    %37 = vector.load %arg2[%c5, %c0_43, %c0_44] : memref<9x4x128xbf16, #tpu.memory_space<vmem>>, vector<1x4x128xbf16>
    %38 = vector.shape_cast %37 : vector<1x4x128xbf16> to vector<4x128xbf16>
    %cst_45 = arith.constant dense<0.000000e+00> : vector<64x128xf32>
    %39 = tpu.matmul %36, %38, %cst_45 {dimension_numbers = #tpu.dot_dimension_numbers<[1], [0], [0], [1], [0, 0, 1, 1], [], []>} : vector<64x4xbf16>, vector<4x128xbf16>, vector<64x128xf32> -> vector<64x128xf32>
    %40 = arith.addf %33, %39 : vector<64x128xf32>
    %c0_46 = arith.constant 0 : index
    %c0_47 = arith.constant 0 : index
    %c2_48 = arith.constant 2 : index
    %c0_49 = arith.constant 0 : index
    %c0_50 = arith.constant 0 : index
    %41 = vector.load %arg1[%c0_46, %c0_47, %c2_48, %c0_49, %c0_50] : memref<1x5x4x17x16xbf16, #tpu.memory_space<vmem>>, vector<1x4x1x16x4xbf16>
    %42 = vector.shape_cast %41 : vector<1x4x1x16x4xbf16> to vector<4x16x4xbf16>
    %43 = vector.shape_cast %42 : vector<4x16x4xbf16> to vector<64x4xbf16>
    %c6 = arith.constant 6 : index
    %c0_51 = arith.constant 0 : index
    %c0_52 = arith.constant 0 : index
    %44 = vector.load %arg2[%c6, %c0_51, %c0_52] : memref<9x4x128xbf16, #tpu.memory_space<vmem>>, vector<1x4x128xbf16>
    %45 = vector.shape_cast %44 : vector<1x4x128xbf16> to vector<4x128xbf16>
    %cst_53 = arith.constant dense<0.000000e+00> : vector<64x128xf32>
    %46 = tpu.matmul %43, %45, %cst_53 {dimension_numbers = #tpu.dot_dimension_numbers<[1], [0], [0], [1], [0, 0, 1, 1], [], []>} : vector<64x4xbf16>, vector<4x128xbf16>, vector<64x128xf32> -> vector<64x128xf32>
    %47 = arith.addf %40, %46 : vector<64x128xf32>
    %c0_54 = arith.constant 0 : index
    %c0_55 = arith.constant 0 : index
    %c2_56 = arith.constant 2 : index
    %c0_57 = arith.constant 0 : index
    %c4_58 = arith.constant 4 : index
    %48 = vector.load %arg1[%c0_54, %c0_55, %c2_56, %c0_57, %c4_58] : memref<1x5x4x17x16xbf16, #tpu.memory_space<vmem>>, vector<1x4x1x16x4xbf16>
    %49 = vector.shape_cast %48 : vector<1x4x1x16x4xbf16> to vector<4x16x4xbf16>
    %50 = vector.shape_cast %49 : vector<4x16x4xbf16> to vector<64x4xbf16>
    %c7 = arith.constant 7 : index
    %c0_59 = arith.constant 0 : index
    %c0_60 = arith.constant 0 : index
    %51 = vector.load %arg2[%c7, %c0_59, %c0_60] : memref<9x4x128xbf16, #tpu.memory_space<vmem>>, vector<1x4x128xbf16>
    %52 = vector.shape_cast %51 : vector<1x4x128xbf16> to vector<4x128xbf16>
    %cst_61 = arith.constant dense<0.000000e+00> : vector<64x128xf32>
    %53 = tpu.matmul %50, %52, %cst_61 {dimension_numbers = #tpu.dot_dimension_numbers<[1], [0], [0], [1], [0, 0, 1, 1], [], []>} : vector<64x4xbf16>, vector<4x128xbf16>, vector<64x128xf32> -> vector<64x128xf32>
    %54 = arith.addf %47, %53 : vector<64x128xf32>
    %c0_62 = arith.constant 0 : index
    %c0_63 = arith.constant 0 : index
    %c2_64 = arith.constant 2 : index
    %c0_65 = arith.constant 0 : index
    %c8_66 = arith.constant 8 : index
    %55 = vector.load %arg1[%c0_62, %c0_63, %c2_64, %c0_65, %c8_66] : memref<1x5x4x17x16xbf16, #tpu.memory_space<vmem>>, vector<1x4x1x16x4xbf16>
    %56 = vector.shape_cast %55 : vector<1x4x1x16x4xbf16> to vector<4x16x4xbf16>
    %57 = vector.shape_cast %56 : vector<4x16x4xbf16> to vector<64x4xbf16>
    %c8_67 = arith.constant 8 : index
    %c0_68 = arith.constant 0 : index
    %c0_69 = arith.constant 0 : index
    %58 = vector.load %arg2[%c8_67, %c0_68, %c0_69] : memref<9x4x128xbf16, #tpu.memory_space<vmem>>, vector<1x4x128xbf16>
    %59 = vector.shape_cast %58 : vector<1x4x128xbf16> to vector<4x128xbf16>
    %cst_70 = arith.constant dense<0.000000e+00> : vector<64x128xf32>
    %60 = tpu.matmul %57, %59, %cst_70 {dimension_numbers = #tpu.dot_dimension_numbers<[1], [0], [0], [1], [0, 0, 1, 1], [], []>} : vector<64x4xbf16>, vector<4x128xbf16>, vector<64x128xf32> -> vector<64x128xf32>
    %61 = arith.addf %54, %60 : vector<64x128xf32>
    %c0_71 = arith.constant 0 : index
    %c0_72 = arith.constant 0 : index
    %c0_73 = arith.constant 0 : index
    %c0_74 = arith.constant 0 : index
    %c8_75 = arith.constant 8 : index
    %62 = vector.load %arg1[%c0_71, %c0_72, %c0_73, %c0_74, %c8_75] : memref<1x5x4x17x16xbf16, #tpu.memory_space<vmem>>, vector<1x4x1x16x4xbf16>
    %63 = vector.shape_cast %62 : vector<1x4x1x16x4xbf16> to vector<4x16x4xbf16>
    %64 = vector.shape_cast %63 : vector<4x16x4xbf16> to vector<64x4xbf16>
    %c0_76 = arith.constant 0 : index
    %c0_77 = arith.constant 0 : index
    %c0_78 = arith.constant 0 : index
    %65 = vector.load %arg2[%c0_76, %c0_77, %c0_78] : memref<9x4x128xbf16, #tpu.memory_space<vmem>>, vector<1x4x128xbf16>
    %66 = vector.shape_cast %65 : vector<1x4x128xbf16> to vector<4x128xbf16>
    %cst_79 = arith.constant dense<0.000000e+00> : vector<64x128xf32>
    %67 = tpu.matmul %64, %66, %cst_79 {dimension_numbers = #tpu.dot_dimension_numbers<[1], [0], [0], [1], [0, 0, 1, 1], [], []>} : vector<64x4xbf16>, vector<4x128xbf16>, vector<64x128xf32> -> vector<64x128xf32>
    %c0_80 = arith.constant 0 : index
    %c0_81 = arith.constant 0 : index
    %c0_82 = arith.constant 0 : index
    %c0_83 = arith.constant 0 : index
    %c12 = arith.constant 12 : index
    %68 = vector.load %arg1[%c0_80, %c0_81, %c0_82, %c0_83, %c12] : memref<1x5x4x17x16xbf16, #tpu.memory_space<vmem>>, vector<1x4x1x16x4xbf16>
    %69 = vector.shape_cast %68 : vector<1x4x1x16x4xbf16> to vector<4x16x4xbf16>
    %70 = vector.shape_cast %69 : vector<4x16x4xbf16> to vector<64x4xbf16>
    %c1_84 = arith.constant 1 : index
    %c0_85 = arith.constant 0 : index
    %c0_86 = arith.constant 0 : index
    %71 = vector.load %arg2[%c1_84, %c0_85, %c0_86] : memref<9x4x128xbf16, #tpu.memory_space<vmem>>, vector<1x4x128xbf16>
    %72 = vector.shape_cast %71 : vector<1x4x128xbf16> to vector<4x128xbf16>
    %cst_87 = arith.constant dense<0.000000e+00> : vector<64x128xf32>
    %73 = tpu.matmul %70, %72, %cst_87 {dimension_numbers = #tpu.dot_dimension_numbers<[1], [0], [0], [1], [0, 0, 1, 1], [], []>} : vector<64x4xbf16>, vector<4x128xbf16>, vector<64x128xf32> -> vector<64x128xf32>
    %74 = arith.addf %67, %73 : vector<64x128xf32>
    %c0_88 = arith.constant 0 : index
    %c0_89 = arith.constant 0 : index
    %c0_90 = arith.constant 0 : index
    %c1_91 = arith.constant 1 : index
    %c0_92 = arith.constant 0 : index
    %75 = vector.load %arg1[%c0_88, %c0_89, %c0_90, %c1_91, %c0_92] : memref<1x5x4x17x16xbf16, #tpu.memory_space<vmem>>, vector<1x4x1x16x4xbf16>
    %76 = vector.shape_cast %75 : vector<1x4x1x16x4xbf16> to vector<4x16x4xbf16>
    %77 = vector.shape_cast %76 : vector<4x16x4xbf16> to vector<64x4xbf16>
    %c2_93 = arith.constant 2 : index
    %c0_94 = arith.constant 0 : index
    %c0_95 = arith.constant 0 : index
    %78 = vector.load %arg2[%c2_93, %c0_94, %c0_95] : memref<9x4x128xbf16, #tpu.memory_space<vmem>>, vector<1x4x128xbf16>
    %79 = vector.shape_cast %78 : vector<1x4x128xbf16> to vector<4x128xbf16>
    %cst_96 = arith.constant dense<0.000000e+00> : vector<64x128xf32>
    %80 = tpu.matmul %77, %79, %cst_96 {dimension_numbers = #tpu.dot_dimension_numbers<[1], [0], [0], [1], [0, 0, 1, 1], [], []>} : vector<64x4xbf16>, vector<4x128xbf16>, vector<64x128xf32> -> vector<64x128xf32>
    %81 = arith.addf %74, %80 : vector<64x128xf32>
    %c0_97 = arith.constant 0 : index
    %c0_98 = arith.constant 0 : index
    %c1_99 = arith.constant 1 : index
    %c0_100 = arith.constant 0 : index
    %c8_101 = arith.constant 8 : index
    %82 = vector.load %arg1[%c0_97, %c0_98, %c1_99, %c0_100, %c8_101] : memref<1x5x4x17x16xbf16, #tpu.memory_space<vmem>>, vector<1x4x1x16x4xbf16>
    %83 = vector.shape_cast %82 : vector<1x4x1x16x4xbf16> to vector<4x16x4xbf16>
    %84 = vector.shape_cast %83 : vector<4x16x4xbf16> to vector<64x4xbf16>
    %c3_102 = arith.constant 3 : index
    %c0_103 = arith.constant 0 : index
    %c0_104 = arith.constant 0 : index
    %85 = vector.load %arg2[%c3_102, %c0_103, %c0_104] : memref<9x4x128xbf16, #tpu.memory_space<vmem>>, vector<1x4x128xbf16>
    %86 = vector.shape_cast %85 : vector<1x4x128xbf16> to vector<4x128xbf16>
    %cst_105 = arith.constant dense<0.000000e+00> : vector<64x128xf32>
    %87 = tpu.matmul %84, %86, %cst_105 {dimension_numbers = #tpu.dot_dimension_numbers<[1], [0], [0], [1], [0, 0, 1, 1], [], []>} : vector<64x4xbf16>, vector<4x128xbf16>, vector<64x128xf32> -> vector<64x128xf32>
    %88 = arith.addf %81, %87 : vector<64x128xf32>
    %c0_106 = arith.constant 0 : index
    %c0_107 = arith.constant 0 : index
    %c1_108 = arith.constant 1 : index
    %c0_109 = arith.constant 0 : index
    %c12_110 = arith.constant 12 : index
    %89 = vector.load %arg1[%c0_106, %c0_107, %c1_108, %c0_109, %c12_110] : memref<1x5x4x17x16xbf16, #tpu.memory_space<vmem>>, vector<1x4x1x16x4xbf16>
    %90 = vector.shape_cast %89 : vector<1x4x1x16x4xbf16> to vector<4x16x4xbf16>
    %91 = vector.shape_cast %90 : vector<4x16x4xbf16> to vector<64x4xbf16>
    %c4_111 = arith.constant 4 : index
    %c0_112 = arith.constant 0 : index
    %c0_113 = arith.constant 0 : index
    %92 = vector.load %arg2[%c4_111, %c0_112, %c0_113] : memref<9x4x128xbf16, #tpu.memory_space<vmem>>, vector<1x4x128xbf16>
    %93 = vector.shape_cast %92 : vector<1x4x128xbf16> to vector<4x128xbf16>
    %cst_114 = arith.constant dense<0.000000e+00> : vector<64x128xf32>
    %94 = tpu.matmul %91, %93, %cst_114 {dimension_numbers = #tpu.dot_dimension_numbers<[1], [0], [0], [1], [0, 0, 1, 1], [], []>} : vector<64x4xbf16>, vector<4x128xbf16>, vector<64x128xf32> -> vector<64x128xf32>
    %95 = arith.addf %88, %94 : vector<64x128xf32>
    %c0_115 = arith.constant 0 : index
    %c0_116 = arith.constant 0 : index
    %c1_117 = arith.constant 1 : index
    %c1_118 = arith.constant 1 : index
    %c0_119 = arith.constant 0 : index
    %96 = vector.load %arg1[%c0_115, %c0_116, %c1_117, %c1_118, %c0_119] : memref<1x5x4x17x16xbf16, #tpu.memory_space<vmem>>, vector<1x4x1x16x4xbf16>
    %97 = vector.shape_cast %96 : vector<1x4x1x16x4xbf16> to vector<4x16x4xbf16>
    %98 = vector.shape_cast %97 : vector<4x16x4xbf16> to vector<64x4xbf16>
    %c5_120 = arith.constant 5 : index
    %c0_121 = arith.constant 0 : index
    %c0_122 = arith.constant 0 : index
    %99 = vector.load %arg2[%c5_120, %c0_121, %c0_122] : memref<9x4x128xbf16, #tpu.memory_space<vmem>>, vector<1x4x128xbf16>
    %100 = vector.shape_cast %99 : vector<1x4x128xbf16> to vector<4x128xbf16>
    %cst_123 = arith.constant dense<0.000000e+00> : vector<64x128xf32>
    %101 = tpu.matmul %98, %100, %cst_123 {dimension_numbers = #tpu.dot_dimension_numbers<[1], [0], [0], [1], [0, 0, 1, 1], [], []>} : vector<64x4xbf16>, vector<4x128xbf16>, vector<64x128xf32> -> vector<64x128xf32>
    %102 = arith.addf %95, %101 : vector<64x128xf32>
    %c0_124 = arith.constant 0 : index
    %c0_125 = arith.constant 0 : index
    %c2_126 = arith.constant 2 : index
    %c0_127 = arith.constant 0 : index
    %c8_128 = arith.constant 8 : index
    %103 = vector.load %arg1[%c0_124, %c0_125, %c2_126, %c0_127, %c8_128] : memref<1x5x4x17x16xbf16, #tpu.memory_space<vmem>>, vector<1x4x1x16x4xbf16>
    %104 = vector.shape_cast %103 : vector<1x4x1x16x4xbf16> to vector<4x16x4xbf16>
    %105 = vector.shape_cast %104 : vector<4x16x4xbf16> to vector<64x4xbf16>
    %c6_129 = arith.constant 6 : index
    %c0_130 = arith.constant 0 : index
    %c0_131 = arith.constant 0 : index
    %106 = vector.load %arg2[%c6_129, %c0_130, %c0_131] : memref<9x4x128xbf16, #tpu.memory_space<vmem>>, vector<1x4x128xbf16>
    %107 = vector.shape_cast %106 : vector<1x4x128xbf16> to vector<4x128xbf16>
    %cst_132 = arith.constant dense<0.000000e+00> : vector<64x128xf32>
    %108 = tpu.matmul %105, %107, %cst_132 {dimension_numbers = #tpu.dot_dimension_numbers<[1], [0], [0], [1], [0, 0, 1, 1], [], []>} : vector<64x4xbf16>, vector<4x128xbf16>, vector<64x128xf32> -> vector<64x128xf32>
    %109 = arith.addf %102, %108 : vector<64x128xf32>
    %c0_133 = arith.constant 0 : index
    %c0_134 = arith.constant 0 : index
    %c2_135 = arith.constant 2 : index
    %c0_136 = arith.constant 0 : index
    %c12_137 = arith.constant 12 : index
    %110 = vector.load %arg1[%c0_133, %c0_134, %c2_135, %c0_136, %c12_137] : memref<1x5x4x17x16xbf16, #tpu.memory_space<vmem>>, vector<1x4x1x16x4xbf16>
    %111 = vector.shape_cast %110 : vector<1x4x1x16x4xbf16> to vector<4x16x4xbf16>
    %112 = vector.shape_cast %111 : vector<4x16x4xbf16> to vector<64x4xbf16>
    %c7_138 = arith.constant 7 : index
    %c0_139 = arith.constant 0 : index
    %c0_140 = arith.constant 0 : index
    %113 = vector.load %arg2[%c7_138, %c0_139, %c0_140] : memref<9x4x128xbf16, #tpu.memory_space<vmem>>, vector<1x4x128xbf16>
    %114 = vector.shape_cast %113 : vector<1x4x128xbf16> to vector<4x128xbf16>
    %cst_141 = arith.constant dense<0.000000e+00> : vector<64x128xf32>
    %115 = tpu.matmul %112, %114, %cst_141 {dimension_numbers = #tpu.dot_dimension_numbers<[1], [0], [0], [1], [0, 0, 1, 1], [], []>} : vector<64x4xbf16>, vector<4x128xbf16>, vector<64x128xf32> -> vector<64x128xf32>
    %116 = arith.addf %109, %115 : vector<64x128xf32>
    %c0_142 = arith.constant 0 : index
    %c0_143 = arith.constant 0 : index
    %c2_144 = arith.constant 2 : index
    %c1_145 = arith.constant 1 : index
    %c0_146 = arith.constant 0 : index
    %117 = vector.load %arg1[%c0_142, %c0_143, %c2_144, %c1_145, %c0_146] : memref<1x5x4x17x16xbf16, #tpu.memory_space<vmem>>, vector<1x4x1x16x4xbf16>
    %118 = vector.shape_cast %117 : vector<1x4x1x16x4xbf16> to vector<4x16x4xbf16>
    %119 = vector.shape_cast %118 : vector<4x16x4xbf16> to vector<64x4xbf16>
    %c8_147 = arith.constant 8 : index
    %c0_148 = arith.constant 0 : index
    %c0_149 = arith.constant 0 : index
    %120 = vector.load %arg2[%c8_147, %c0_148, %c0_149] : memref<9x4x128xbf16, #tpu.memory_space<vmem>>, vector<1x4x128xbf16>
    %121 = vector.shape_cast %120 : vector<1x4x128xbf16> to vector<4x128xbf16>
    %cst_150 = arith.constant dense<0.000000e+00> : vector<64x128xf32>
    %122 = tpu.matmul %119, %121, %cst_150 {dimension_numbers = #tpu.dot_dimension_numbers<[1], [0], [0], [1], [0, 0, 1, 1], [], []>} : vector<64x4xbf16>, vector<4x128xbf16>, vector<64x128xf32> -> vector<64x128xf32>
    %123 = arith.addf %116, %122 : vector<64x128xf32>
    %124 = arith.maximumf %61, %123 : vector<64x128xf32>
    %c0_151 = arith.constant 0 : index
    %c0_152 = arith.constant 0 : index
    %c2_153 = arith.constant 2 : index
    %c0_154 = arith.constant 0 : index
    %c0_155 = arith.constant 0 : index
    %125 = vector.load %arg1[%c0_151, %c0_152, %c2_153, %c0_154, %c0_155] : memref<1x5x4x17x16xbf16, #tpu.memory_space<vmem>>, vector<1x4x1x16x4xbf16>
    %126 = vector.shape_cast %125 : vector<1x4x1x16x4xbf16> to vector<4x16x4xbf16>
    %127 = vector.shape_cast %126 : vector<4x16x4xbf16> to vector<64x4xbf16>
    %c0_156 = arith.constant 0 : index
    %c0_157 = arith.constant 0 : index
    %c0_158 = arith.constant 0 : index
    %128 = vector.load %arg2[%c0_156, %c0_157, %c0_158] : memref<9x4x128xbf16, #tpu.memory_space<vmem>>, vector<1x4x128xbf16>
    %129 = vector.shape_cast %128 : vector<1x4x128xbf16> to vector<4x128xbf16>
    %cst_159 = arith.constant dense<0.000000e+00> : vector<64x128xf32>
    %130 = tpu.matmul %127, %129, %cst_159 {dimension_numbers = #tpu.dot_dimension_numbers<[1], [0], [0], [1], [0, 0, 1, 1], [], []>} : vector<64x4xbf16>, vector<4x128xbf16>, vector<64x128xf32> -> vector<64x128xf32>
    %c0_160 = arith.constant 0 : index
    %c0_161 = arith.constant 0 : index
    %c2_162 = arith.constant 2 : index
    %c0_163 = arith.constant 0 : index
    %c4_164 = arith.constant 4 : index
    %131 = vector.load %arg1[%c0_160, %c0_161, %c2_162, %c0_163, %c4_164] : memref<1x5x4x17x16xbf16, #tpu.memory_space<vmem>>, vector<1x4x1x16x4xbf16>
    %132 = vector.shape_cast %131 : vector<1x4x1x16x4xbf16> to vector<4x16x4xbf16>
    %133 = vector.shape_cast %132 : vector<4x16x4xbf16> to vector<64x4xbf16>
    %c1_165 = arith.constant 1 : index
    %c0_166 = arith.constant 0 : index
    %c0_167 = arith.constant 0 : index
    %134 = vector.load %arg2[%c1_165, %c0_166, %c0_167] : memref<9x4x128xbf16, #tpu.memory_space<vmem>>, vector<1x4x128xbf16>
    %135 = vector.shape_cast %134 : vector<1x4x128xbf16> to vector<4x128xbf16>
    %cst_168 = arith.constant dense<0.000000e+00> : vector<64x128xf32>
    %136 = tpu.matmul %133, %135, %cst_168 {dimension_numbers = #tpu.dot_dimension_numbers<[1], [0], [0], [1], [0, 0, 1, 1], [], []>} : vector<64x4xbf16>, vector<4x128xbf16>, vector<64x128xf32> -> vector<64x128xf32>
    %137 = arith.addf %130, %136 : vector<64x128xf32>
    %c0_169 = arith.constant 0 : index
    %c0_170 = arith.constant 0 : index
    %c2_171 = arith.constant 2 : index
    %c0_172 = arith.constant 0 : index
    %c8_173 = arith.constant 8 : index
    %138 = vector.load %arg1[%c0_169, %c0_170, %c2_171, %c0_172, %c8_173] : memref<1x5x4x17x16xbf16, #tpu.memory_space<vmem>>, vector<1x4x1x16x4xbf16>
    %139 = vector.shape_cast %138 : vector<1x4x1x16x4xbf16> to vector<4x16x4xbf16>
    %140 = vector.shape_cast %139 : vector<4x16x4xbf16> to vector<64x4xbf16>
    %c2_174 = arith.constant 2 : index
    %c0_175 = arith.constant 0 : index
    %c0_176 = arith.constant 0 : index
    %141 = vector.load %arg2[%c2_174, %c0_175, %c0_176] : memref<9x4x128xbf16, #tpu.memory_space<vmem>>, vector<1x4x128xbf16>
    %142 = vector.shape_cast %141 : vector<1x4x128xbf16> to vector<4x128xbf16>
    %cst_177 = arith.constant dense<0.000000e+00> : vector<64x128xf32>
    %143 = tpu.matmul %140, %142, %cst_177 {dimension_numbers = #tpu.dot_dimension_numbers<[1], [0], [0], [1], [0, 0, 1, 1], [], []>} : vector<64x4xbf16>, vector<4x128xbf16>, vector<64x128xf32> -> vector<64x128xf32>
    %144 = arith.addf %137, %143 : vector<64x128xf32>
    %c0_178 = arith.constant 0 : index
    %c0_179 = arith.constant 0 : index
    %c3_180 = arith.constant 3 : index
    %c0_181 = arith.constant 0 : index
    %c0_182 = arith.constant 0 : index
    %145 = vector.load %arg1[%c0_178, %c0_179, %c3_180, %c0_181, %c0_182] : memref<1x5x4x17x16xbf16, #tpu.memory_space<vmem>>, vector<1x4x1x16x4xbf16>
    %146 = vector.shape_cast %145 : vector<1x4x1x16x4xbf16> to vector<4x16x4xbf16>
    %147 = vector.shape_cast %146 : vector<4x16x4xbf16> to vector<64x4xbf16>
    %c3_183 = arith.constant 3 : index
    %c0_184 = arith.constant 0 : index
    %c0_185 = arith.constant 0 : index
    %148 = vector.load %arg2[%c3_183, %c0_184, %c0_185] : memref<9x4x128xbf16, #tpu.memory_space<vmem>>, vector<1x4x128xbf16>
    %149 = vector.shape_cast %148 : vector<1x4x128xbf16> to vector<4x128xbf16>
    %cst_186 = arith.constant dense<0.000000e+00> : vector<64x128xf32>
    %150 = tpu.matmul %147, %149, %cst_186 {dimension_numbers = #tpu.dot_dimension_numbers<[1], [0], [0], [1], [0, 0, 1, 1], [], []>} : vector<64x4xbf16>, vector<4x128xbf16>, vector<64x128xf32> -> vector<64x128xf32>
    %151 = arith.addf %144, %150 : vector<64x128xf32>
    %c0_187 = arith.constant 0 : index
    %c0_188 = arith.constant 0 : index
    %c3_189 = arith.constant 3 : index
    %c0_190 = arith.constant 0 : index
    %c4_191 = arith.constant 4 : index
    %152 = vector.load %arg1[%c0_187, %c0_188, %c3_189, %c0_190, %c4_191] : memref<1x5x4x17x16xbf16, #tpu.memory_space<vmem>>, vector<1x4x1x16x4xbf16>
    %153 = vector.shape_cast %152 : vector<1x4x1x16x4xbf16> to vector<4x16x4xbf16>
    %154 = vector.shape_cast %153 : vector<4x16x4xbf16> to vector<64x4xbf16>
    %c4_192 = arith.constant 4 : index
    %c0_193 = arith.constant 0 : index
    %c0_194 = arith.constant 0 : index
    %155 = vector.load %arg2[%c4_192, %c0_193, %c0_194] : memref<9x4x128xbf16, #tpu.memory_space<vmem>>, vector<1x4x128xbf16>
    %156 = vector.shape_cast %155 : vector<1x4x128xbf16> to vector<4x128xbf16>
    %cst_195 = arith.constant dense<0.000000e+00> : vector<64x128xf32>
    %157 = tpu.matmul %154, %156, %cst_195 {dimension_numbers = #tpu.dot_dimension_numbers<[1], [0], [0], [1], [0, 0, 1, 1], [], []>} : vector<64x4xbf16>, vector<4x128xbf16>, vector<64x128xf32> -> vector<64x128xf32>
    %158 = arith.addf %151, %157 : vector<64x128xf32>
    %c0_196 = arith.constant 0 : index
    %c0_197 = arith.constant 0 : index
    %c3_198 = arith.constant 3 : index
    %c0_199 = arith.constant 0 : index
    %c8_200 = arith.constant 8 : index
    %159 = vector.load %arg1[%c0_196, %c0_197, %c3_198, %c0_199, %c8_200] : memref<1x5x4x17x16xbf16, #tpu.memory_space<vmem>>, vector<1x4x1x16x4xbf16>
    %160 = vector.shape_cast %159 : vector<1x4x1x16x4xbf16> to vector<4x16x4xbf16>
    %161 = vector.shape_cast %160 : vector<4x16x4xbf16> to vector<64x4xbf16>
    %c5_201 = arith.constant 5 : index
    %c0_202 = arith.constant 0 : index
    %c0_203 = arith.constant 0 : index
    %162 = vector.load %arg2[%c5_201, %c0_202, %c0_203] : memref<9x4x128xbf16, #tpu.memory_space<vmem>>, vector<1x4x128xbf16>
    %163 = vector.shape_cast %162 : vector<1x4x128xbf16> to vector<4x128xbf16>
    %cst_204 = arith.constant dense<0.000000e+00> : vector<64x128xf32>
    %164 = tpu.matmul %161, %163, %cst_204 {dimension_numbers = #tpu.dot_dimension_numbers<[1], [0], [0], [1], [0, 0, 1, 1], [], []>} : vector<64x4xbf16>, vector<4x128xbf16>, vector<64x128xf32> -> vector<64x128xf32>
    %165 = arith.addf %158, %164 : vector<64x128xf32>
    %c0_205 = arith.constant 0 : index
    %c1_206 = arith.constant 1 : index
    %c0_207 = arith.constant 0 : index
    %c0_208 = arith.constant 0 : index
    %c0_209 = arith.constant 0 : index
    %166 = vector.load %arg1[%c0_205, %c1_206, %c0_207, %c0_208, %c0_209] : memref<1x5x4x17x16xbf16, #tpu.memory_space<vmem>>, vector<1x4x1x16x4xbf16>
    %167 = vector.shape_cast %166 : vector<1x4x1x16x4xbf16> to vector<4x16x4xbf16>
    %168 = vector.shape_cast %167 : vector<4x16x4xbf16> to vector<64x4xbf16>
    %c6_210 = arith.constant 6 : index
    %c0_211 = arith.constant 0 : index
    %c0_212 = arith.constant 0 : index
    %169 = vector.load %arg2[%c6_210, %c0_211, %c0_212] : memref<9x4x128xbf16, #tpu.memory_space<vmem>>, vector<1x4x128xbf16>
    %170 = vector.shape_cast %169 : vector<1x4x128xbf16> to vector<4x128xbf16>
    %cst_213 = arith.constant dense<0.000000e+00> : vector<64x128xf32>
    %171 = tpu.matmul %168, %170, %cst_213 {dimension_numbers = #tpu.dot_dimension_numbers<[1], [0], [0], [1], [0, 0, 1, 1], [], []>} : vector<64x4xbf16>, vector<4x128xbf16>, vector<64x128xf32> -> vector<64x128xf32>
    %172 = arith.addf %165, %171 : vector<64x128xf32>
    %c0_214 = arith.constant 0 : index
    %c1_215 = arith.constant 1 : index
    %c0_216 = arith.constant 0 : index
    %c0_217 = arith.constant 0 : index
    %c4_218 = arith.constant 4 : index
    %173 = vector.load %arg1[%c0_214, %c1_215, %c0_216, %c0_217, %c4_218] : memref<1x5x4x17x16xbf16, #tpu.memory_space<vmem>>, vector<1x4x1x16x4xbf16>
    %174 = vector.shape_cast %173 : vector<1x4x1x16x4xbf16> to vector<4x16x4xbf16>
    %175 = vector.shape_cast %174 : vector<4x16x4xbf16> to vector<64x4xbf16>
    %c7_219 = arith.constant 7 : index
    %c0_220 = arith.constant 0 : index
    %c0_221 = arith.constant 0 : index
    %176 = vector.load %arg2[%c7_219, %c0_220, %c0_221] : memref<9x4x128xbf16, #tpu.memory_space<vmem>>, vector<1x4x128xbf16>
    %177 = vector.shape_cast %176 : vector<1x4x128xbf16> to vector<4x128xbf16>
    %cst_222 = arith.constant dense<0.000000e+00> : vector<64x128xf32>
    %178 = tpu.matmul %175, %177, %cst_222 {dimension_numbers = #tpu.dot_dimension_numbers<[1], [0], [0], [1], [0, 0, 1, 1], [], []>} : vector<64x4xbf16>, vector<4x128xbf16>, vector<64x128xf32> -> vector<64x128xf32>
    %179 = arith.addf %172, %178 : vector<64x128xf32>
    %c0_223 = arith.constant 0 : index
    %c1_224 = arith.constant 1 : index
    %c0_225 = arith.constant 0 : index
    %c0_226 = arith.constant 0 : index
    %c8_227 = arith.constant 8 : index
    %180 = vector.load %arg1[%c0_223, %c1_224, %c0_225, %c0_226, %c8_227] : memref<1x5x4x17x16xbf16, #tpu.memory_space<vmem>>, vector<1x4x1x16x4xbf16>
    %181 = vector.shape_cast %180 : vector<1x4x1x16x4xbf16> to vector<4x16x4xbf16>
    %182 = vector.shape_cast %181 : vector<4x16x4xbf16> to vector<64x4xbf16>
    %c8_228 = arith.constant 8 : index
    %c0_229 = arith.constant 0 : index
    %c0_230 = arith.constant 0 : index
    %183 = vector.load %arg2[%c8_228, %c0_229, %c0_230] : memref<9x4x128xbf16, #tpu.memory_space<vmem>>, vector<1x4x128xbf16>
    %184 = vector.shape_cast %183 : vector<1x4x128xbf16> to vector<4x128xbf16>
    %cst_231 = arith.constant dense<0.000000e+00> : vector<64x128xf32>
    %185 = tpu.matmul %182, %184, %cst_231 {dimension_numbers = #tpu.dot_dimension_numbers<[1], [0], [0], [1], [0, 0, 1, 1], [], []>} : vector<64x4xbf16>, vector<4x128xbf16>, vector<64x128xf32> -> vector<64x128xf32>
    %186 = arith.addf %179, %185 : vector<64x128xf32>
    %187 = arith.maximumf %124, %186 : vector<64x128xf32>
    %c0_232 = arith.constant 0 : index
    %c0_233 = arith.constant 0 : index
    %c2_234 = arith.constant 2 : index
    %c0_235 = arith.constant 0 : index
    %c8_236 = arith.constant 8 : index
    %188 = vector.load %arg1[%c0_232, %c0_233, %c2_234, %c0_235, %c8_236] : memref<1x5x4x17x16xbf16, #tpu.memory_space<vmem>>, vector<1x4x1x16x4xbf16>
    %189 = vector.shape_cast %188 : vector<1x4x1x16x4xbf16> to vector<4x16x4xbf16>
    %190 = vector.shape_cast %189 : vector<4x16x4xbf16> to vector<64x4xbf16>
    %c0_237 = arith.constant 0 : index
    %c0_238 = arith.constant 0 : index
    %c0_239 = arith.constant 0 : index
    %191 = vector.load %arg2[%c0_237, %c0_238, %c0_239] : memref<9x4x128xbf16, #tpu.memory_space<vmem>>, vector<1x4x128xbf16>
    %192 = vector.shape_cast %191 : vector<1x4x128xbf16> to vector<4x128xbf16>
    %cst_240 = arith.constant dense<0.000000e+00> : vector<64x128xf32>
    %193 = tpu.matmul %190, %192, %cst_240 {dimension_numbers = #tpu.dot_dimension_numbers<[1], [0], [0], [1], [0, 0, 1, 1], [], []>} : vector<64x4xbf16>, vector<4x128xbf16>, vector<64x128xf32> -> vector<64x128xf32>
    %c0_241 = arith.constant 0 : index
    %c0_242 = arith.constant 0 : index
    %c2_243 = arith.constant 2 : index
    %c0_244 = arith.constant 0 : index
    %c12_245 = arith.constant 12 : index
    %194 = vector.load %arg1[%c0_241, %c0_242, %c2_243, %c0_244, %c12_245] : memref<1x5x4x17x16xbf16, #tpu.memory_space<vmem>>, vector<1x4x1x16x4xbf16>
    %195 = vector.shape_cast %194 : vector<1x4x1x16x4xbf16> to vector<4x16x4xbf16>
    %196 = vector.shape_cast %195 : vector<4x16x4xbf16> to vector<64x4xbf16>
    %c1_246 = arith.constant 1 : index
    %c0_247 = arith.constant 0 : index
    %c0_248 = arith.constant 0 : index
    %197 = vector.load %arg2[%c1_246, %c0_247, %c0_248] : memref<9x4x128xbf16, #tpu.memory_space<vmem>>, vector<1x4x128xbf16>
    %198 = vector.shape_cast %197 : vector<1x4x128xbf16> to vector<4x128xbf16>
    %cst_249 = arith.constant dense<0.000000e+00> : vector<64x128xf32>
    %199 = tpu.matmul %196, %198, %cst_249 {dimension_numbers = #tpu.dot_dimension_numbers<[1], [0], [0], [1], [0, 0, 1, 1], [], []>} : vector<64x4xbf16>, vector<4x128xbf16>, vector<64x128xf32> -> vector<64x128xf32>
    %200 = arith.addf %193, %199 : vector<64x128xf32>
    %c0_250 = arith.constant 0 : index
    %c0_251 = arith.constant 0 : index
    %c2_252 = arith.constant 2 : index
    %c1_253 = arith.constant 1 : index
    %c0_254 = arith.constant 0 : index
    %201 = vector.load %arg1[%c0_250, %c0_251, %c2_252, %c1_253, %c0_254] : memref<1x5x4x17x16xbf16, #tpu.memory_space<vmem>>, vector<1x4x1x16x4xbf16>
    %202 = vector.shape_cast %201 : vector<1x4x1x16x4xbf16> to vector<4x16x4xbf16>
    %203 = vector.shape_cast %202 : vector<4x16x4xbf16> to vector<64x4xbf16>
    %c2_255 = arith.constant 2 : index
    %c0_256 = arith.constant 0 : index
    %c0_257 = arith.constant 0 : index
    %204 = vector.load %arg2[%c2_255, %c0_256, %c0_257] : memref<9x4x128xbf16, #tpu.memory_space<vmem>>, vector<1x4x128xbf16>
    %205 = vector.shape_cast %204 : vector<1x4x128xbf16> to vector<4x128xbf16>
    %cst_258 = arith.constant dense<0.000000e+00> : vector<64x128xf32>
    %206 = tpu.matmul %203, %205, %cst_258 {dimension_numbers = #tpu.dot_dimension_numbers<[1], [0], [0], [1], [0, 0, 1, 1], [], []>} : vector<64x4xbf16>, vector<4x128xbf16>, vector<64x128xf32> -> vector<64x128xf32>
    %207 = arith.addf %200, %206 : vector<64x128xf32>
    %c0_259 = arith.constant 0 : index
    %c0_260 = arith.constant 0 : index
    %c3_261 = arith.constant 3 : index
    %c0_262 = arith.constant 0 : index
    %c8_263 = arith.constant 8 : index
    %208 = vector.load %arg1[%c0_259, %c0_260, %c3_261, %c0_262, %c8_263] : memref<1x5x4x17x16xbf16, #tpu.memory_space<vmem>>, vector<1x4x1x16x4xbf16>
    %209 = vector.shape_cast %208 : vector<1x4x1x16x4xbf16> to vector<4x16x4xbf16>
    %210 = vector.shape_cast %209 : vector<4x16x4xbf16> to vector<64x4xbf16>
    %c3_264 = arith.constant 3 : index
    %c0_265 = arith.constant 0 : index
    %c0_266 = arith.constant 0 : index
    %211 = vector.load %arg2[%c3_264, %c0_265, %c0_266] : memref<9x4x128xbf16, #tpu.memory_space<vmem>>, vector<1x4x128xbf16>
    %212 = vector.shape_cast %211 : vector<1x4x128xbf16> to vector<4x128xbf16>
    %cst_267 = arith.constant dense<0.000000e+00> : vector<64x128xf32>
    %213 = tpu.matmul %210, %212, %cst_267 {dimension_numbers = #tpu.dot_dimension_numbers<[1], [0], [0], [1], [0, 0, 1, 1], [], []>} : vector<64x4xbf16>, vector<4x128xbf16>, vector<64x128xf32> -> vector<64x128xf32>
    %214 = arith.addf %207, %213 : vector<64x128xf32>
    %c0_268 = arith.constant 0 : index
    %c0_269 = arith.constant 0 : index
    %c3_270 = arith.constant 3 : index
    %c0_271 = arith.constant 0 : index
    %c12_272 = arith.constant 12 : index
    %215 = vector.load %arg1[%c0_268, %c0_269, %c3_270, %c0_271, %c12_272] : memref<1x5x4x17x16xbf16, #tpu.memory_space<vmem>>, vector<1x4x1x16x4xbf16>
    %216 = vector.shape_cast %215 : vector<1x4x1x16x4xbf16> to vector<4x16x4xbf16>
    %217 = vector.shape_cast %216 : vector<4x16x4xbf16> to vector<64x4xbf16>
    %c4_273 = arith.constant 4 : index
    %c0_274 = arith.constant 0 : index
    %c0_275 = arith.constant 0 : index
    %218 = vector.load %arg2[%c4_273, %c0_274, %c0_275] : memref<9x4x128xbf16, #tpu.memory_space<vmem>>, vector<1x4x128xbf16>
    %219 = vector.shape_cast %218 : vector<1x4x128xbf16> to vector<4x128xbf16>
    %cst_276 = arith.constant dense<0.000000e+00> : vector<64x128xf32>
    %220 = tpu.matmul %217, %219, %cst_276 {dimension_numbers = #tpu.dot_dimension_numbers<[1], [0], [0], [1], [0, 0, 1, 1], [], []>} : vector<64x4xbf16>, vector<4x128xbf16>, vector<64x128xf32> -> vector<64x128xf32>
    %221 = arith.addf %214, %220 : vector<64x128xf32>
    %c0_277 = arith.constant 0 : index
    %c0_278 = arith.constant 0 : index
    %c3_279 = arith.constant 3 : index
    %c1_280 = arith.constant 1 : index
    %c0_281 = arith.constant 0 : index
    %222 = vector.load %arg1[%c0_277, %c0_278, %c3_279, %c1_280, %c0_281] : memref<1x5x4x17x16xbf16, #tpu.memory_space<vmem>>, vector<1x4x1x16x4xbf16>
    %223 = vector.shape_cast %222 : vector<1x4x1x16x4xbf16> to vector<4x16x4xbf16>
    %224 = vector.shape_cast %223 : vector<4x16x4xbf16> to vector<64x4xbf16>
    %c5_282 = arith.constant 5 : index
    %c0_283 = arith.constant 0 : index
    %c0_284 = arith.constant 0 : index
    %225 = vector.load %arg2[%c5_282, %c0_283, %c0_284] : memref<9x4x128xbf16, #tpu.memory_space<vmem>>, vector<1x4x128xbf16>
    %226 = vector.shape_cast %225 : vector<1x4x128xbf16> to vector<4x128xbf16>
    %cst_285 = arith.constant dense<0.000000e+00> : vector<64x128xf32>
    %227 = tpu.matmul %224, %226, %cst_285 {dimension_numbers = #tpu.dot_dimension_numbers<[1], [0], [0], [1], [0, 0, 1, 1], [], []>} : vector<64x4xbf16>, vector<4x128xbf16>, vector<64x128xf32> -> vector<64x128xf32>
    %228 = arith.addf %221, %227 : vector<64x128xf32>
    %c0_286 = arith.constant 0 : index
    %c1_287 = arith.constant 1 : index
    %c0_288 = arith.constant 0 : index
    %c0_289 = arith.constant 0 : index
    %c8_290 = arith.constant 8 : index
    %229 = vector.load %arg1[%c0_286, %c1_287, %c0_288, %c0_289, %c8_290] : memref<1x5x4x17x16xbf16, #tpu.memory_space<vmem>>, vector<1x4x1x16x4xbf16>
    %230 = vector.shape_cast %229 : vector<1x4x1x16x4xbf16> to vector<4x16x4xbf16>
    %231 = vector.shape_cast %230 : vector<4x16x4xbf16> to vector<64x4xbf16>
    %c6_291 = arith.constant 6 : index
    %c0_292 = arith.constant 0 : index
    %c0_293 = arith.constant 0 : index
    %232 = vector.load %arg2[%c6_291, %c0_292, %c0_293] : memref<9x4x128xbf16, #tpu.memory_space<vmem>>, vector<1x4x128xbf16>
    %233 = vector.shape_cast %232 : vector<1x4x128xbf16> to vector<4x128xbf16>
    %cst_294 = arith.constant dense<0.000000e+00> : vector<64x128xf32>
    %234 = tpu.matmul %231, %233, %cst_294 {dimension_numbers = #tpu.dot_dimension_numbers<[1], [0], [0], [1], [0, 0, 1, 1], [], []>} : vector<64x4xbf16>, vector<4x128xbf16>, vector<64x128xf32> -> vector<64x128xf32>
    %235 = arith.addf %228, %234 : vector<64x128xf32>
    %c0_295 = arith.constant 0 : index
    %c1_296 = arith.constant 1 : index
    %c0_297 = arith.constant 0 : index
    %c0_298 = arith.constant 0 : index
    %c12_299 = arith.constant 12 : index
    %236 = vector.load %arg1[%c0_295, %c1_296, %c0_297, %c0_298, %c12_299] : memref<1x5x4x17x16xbf16, #tpu.memory_space<vmem>>, vector<1x4x1x16x4xbf16>
    %237 = vector.shape_cast %236 : vector<1x4x1x16x4xbf16> to vector<4x16x4xbf16>
    %238 = vector.shape_cast %237 : vector<4x16x4xbf16> to vector<64x4xbf16>
    %c7_300 = arith.constant 7 : index
    %c0_301 = arith.constant 0 : index
    %c0_302 = arith.constant 0 : index
    %239 = vector.load %arg2[%c7_300, %c0_301, %c0_302] : memref<9x4x128xbf16, #tpu.memory_space<vmem>>, vector<1x4x128xbf16>
    %240 = vector.shape_cast %239 : vector<1x4x128xbf16> to vector<4x128xbf16>
    %cst_303 = arith.constant dense<0.000000e+00> : vector<64x128xf32>
    %241 = tpu.matmul %238, %240, %cst_303 {dimension_numbers = #tpu.dot_dimension_numbers<[1], [0], [0], [1], [0, 0, 1, 1], [], []>} : vector<64x4xbf16>, vector<4x128xbf16>, vector<64x128xf32> -> vector<64x128xf32>
    %242 = arith.addf %235, %241 : vector<64x128xf32>
    %c0_304 = arith.constant 0 : index
    %c1_305 = arith.constant 1 : index
    %c0_306 = arith.constant 0 : index
    %c1_307 = arith.constant 1 : index
    %c0_308 = arith.constant 0 : index
    %243 = vector.load %arg1[%c0_304, %c1_305, %c0_306, %c1_307, %c0_308] : memref<1x5x4x17x16xbf16, #tpu.memory_space<vmem>>, vector<1x4x1x16x4xbf16>
    %244 = vector.shape_cast %243 : vector<1x4x1x16x4xbf16> to vector<4x16x4xbf16>
    %245 = vector.shape_cast %244 : vector<4x16x4xbf16> to vector<64x4xbf16>
    %c8_309 = arith.constant 8 : index
    %c0_310 = arith.constant 0 : index
    %c0_311 = arith.constant 0 : index
    %246 = vector.load %arg2[%c8_309, %c0_310, %c0_311] : memref<9x4x128xbf16, #tpu.memory_space<vmem>>, vector<1x4x128xbf16>
    %247 = vector.shape_cast %246 : vector<1x4x128xbf16> to vector<4x128xbf16>
    %cst_312 = arith.constant dense<0.000000e+00> : vector<64x128xf32>
    %248 = tpu.matmul %245, %247, %cst_312 {dimension_numbers = #tpu.dot_dimension_numbers<[1], [0], [0], [1], [0, 0, 1, 1], [], []>} : vector<64x4xbf16>, vector<4x128xbf16>, vector<64x128xf32> -> vector<64x128xf32>
    %249 = arith.addf %242, %248 : vector<64x128xf32>
    %250 = arith.maximumf %187, %249 : vector<64x128xf32>
    %c0_313 = arith.constant 0 : index
    %c0_314 = arith.constant 0 : index
    %251 = vector.load %arg3[%c0_313, %c0_314] : memref<1x128xf32, #tpu.memory_space<vmem>>, vector<1x128xf32>
    %252 = vector.broadcast %251 : vector<1x128xf32> to vector<64x128xf32>
    %253 = arith.addf %250, %252 : vector<64x128xf32>
    %cst_315 = arith.constant 0.000000e+00 : f32
    %254 = vector.broadcast %cst_315 : f32 to vector<64x128xf32>
    %255 = arith.cmpf oge, %253, %254 : vector<64x128xf32>
    %cst_316 = arith.constant 0.00999999977 : f32
    %256 = vector.broadcast %cst_316 : f32 to vector<64x128xf32>
    %257 = arith.mulf %256, %253 : vector<64x128xf32>
    %258 = arith.select %255, %253, %257 : vector<64x128xi1>, vector<64x128xf32>
    %c0_317 = arith.constant 0 : index
    %c0_318 = arith.constant 0 : index
    %c0_319 = arith.constant 0 : index
    %259 = vector.load %arg4[%c0_317, %c0_318, %c0_319] : memref<1x64x128xf32, #tpu.memory_space<vmem>>, vector<1x64x128xf32>
    %260 = vector.shape_cast %259 : vector<1x64x128xf32> to vector<64x128xf32>
    %261 = vector.shape_cast %258 : vector<64x128xf32> to vector<1x64x128xf32>
    tpu.vector_store %arg4[%c0_317, %c0_318, %c0_319], %261 {strides = array<i32>} : memref<1x64x128xf32, #tpu.memory_space<vmem>>, vector<1x64x128xf32>,
    return
  }
  func.func @transform_0(%arg0: i32) -> (i32, i32, i32, i32, i32) {
    %c0_i32 = arith.constant 0 : i32
    %c0_i32_0 = arith.constant 0 : i32
    %c0_i32_1 = arith.constant 0 : i32
    %c0_i32_2 = arith.constant 0 : i32
    %c0_i32_3 = arith.constant 0 : i32
    return %arg0, %c0_i32, %c0_i32_0, %c0_i32_1, %c0_i32_2 : i32, i32, i32, i32, i32
  }
  func.func @transform_1(%arg0: i32) -> (i32, i32, i32) {
    %c0_i32 = arith.constant 0 : i32
    %c0_i32_0 = arith.constant 0 : i32
    %c0_i32_1 = arith.constant 0 : i32
    %c0_i32_2 = arith.constant 0 : i32
    return %c0_i32, %c0_i32_0, %c0_i32_1 : i32, i32, i32
  }
  func.func @transform_2(%arg0: i32) -> (i32, i32) {
    %c0_i32 = arith.constant 0 : i32
    %c0_i32_0 = arith.constant 0 : i32
    %c0_i32_1 = arith.constant 0 : i32
    return %c0_i32, %c0_i32_0 : i32, i32
  }
  func.func @transform_3(%arg0: i32) -> (i32, i32, i32) {
    %c0_i32 = arith.constant 0 : i32
    %c0_i32_0 = arith.constant 0 : i32
    %c0_i32_1 = arith.constant 0 : i32
    return %arg0, %c0_i32, %c0_i32_0 : i32, i32, i32
  }
}

</mosaic_0001>

<llo_original>
// kernel: tpu_custom_call.1
$region0: #{tpu_custom_call.1}
  #allocation0 [shape = 'u32[]', space=smem, size = 0x4, offset = 0x4, fixed_abs, tag = 'smem constant byte address 0x4 - core index']
  #allocation1 [shape = 'u32[144,128]{1,0:T(1,128)}', space=vmem, size = 0x12000, scoped, tag = 'internal scratch']
  %s0 = inlined_call_operand.vmem [shape: bf16[2,5,4,17,16], index: 0, kind: input, shape index: {}]
  %s1 = inlined_call_operand.vmem [shape: bf16[9,4,128], index: 1, kind: input, shape index: {}]
  %s2 = inlined_call_operand.vmem [shape: f32[1,128], index: 2, kind: input, shape index: {}]
  %s3 = inlined_call_operand.hbm [shape: f32[2,64,128], index: 3, kind: output, shape index: {}]
  %s4 = sld [smem:[#allocation0]]
  $region45: #{tpu_custom_call.1} parent=0
    _
  %s6 = ssub.s32 1, %s4
  %s7 = scalar_select 0, %s6, %s4
  $region1: #{tpu_custom_call.1} parent=0
    #allocation2 [shape = 'u8[65536]{0}', space=vmem, size = 0x10000, scoped, tag = 'output window, operand 0']
    #allocation3 [shape = 's32[2]{0}', space=sflag, size = 0x8, scoped, tag = 'scoped memory for tpu_custom_call.1']
    %8 = vsyncpa [#allocation3], 0
    %s9 = scalar_lea.sflag [#allocation3], 1
    %10 = vsyncpa %s9, 0
    loop: start=0, step=1, limit=4
    $region2: #{tpu_custom_call.1} parent=1 // loop_pre_header
      _
    $region3: #{tpu_custom_call.1} parent=1 // loop_header
      %s12 = sphi 0, %s16
      %p13 = scmp.ge.s32.totalorder %s12, 4
      %s22 = sphi 0, %s24
      %s25 = sphi 0, %s22
      %s26 = sphi 0, %s25
      %s42 = sphi 0, %s26
      %s46 = sphi 0, %s46
      %s48 = sphi 0, %s46
      %s49 = sphi 0, %s48
      %s63 = sphi 0, %s49
      %s67 = sphi 0, %s67
      %s69 = sphi 0, %s67
      %s70 = sphi 0, %s69
      %s84 = sphi 0, %s70
      %s90 = sphi 0, %s92
      %s93 = sphi 0, %s90
      %s94 = sphi 0, %s93
      %s110 = sphi 0, %s94
    $region4: #{tpu_custom_call.1} parent=1 // loop_header_branch
      %15 = sbr.rel (%p13) target = $region8
    $region5: #{tpu_custom_call.1} parent=1 // loop_body
      %s17 = ssub.s32 %s12, 1
      %s18 = ssub.s32 %s12, 2
      %s19 = sadd.s32 %s12, 1
      %s20 = ssub.s32 %s12, %s19
      %p21 = scmp.eq.s32.totalorder %s20, 0
      %s23 = sadd.s32 %s22, 1
      %s24 = scalar_select %p21, %s22, %s23
      %p27 = pneg %p21
      %p28 = scmp.eq.s32.totalorder %s12, 1
      %p29 = por %p27, %p28
      %p30 = scmp.ne.s32.totalorder %s22, %s25
      %p31 = scmp.eq.s32.totalorder %s12, 0
      %p32 = por %p30, %p31
      %p33 = scmp.ne.s32.totalorder %s22, %s25
      %p34 = scmp.eq.s32.totalorder %s17, 1
      %p35 = por %p33, %p34
      %p36 = scmp.ne.s32.totalorder %s25, %s26
      %p37 = scmp.eq.s32.totalorder %s17, 0
      %p38 = por %p36, %p37
      %p39 = scmp.ne.s32.totalorder %s25, %s26
      %p40 = scmp.eq.s32.totalorder %s18, 1
      %p41 = por %p39, %p40
      %p43 = scmp.ne.s32.totalorder %s26, %s42
      %p44 = scmp.eq.s32.totalorder %s18, 0
      %p45 = por %p43, %p44
      %s47 = sadd.s32 %s46, 1
      %p50 = scmp.eq.s32.totalorder %s12, 1
      %p51 = scmp.ne.s32.totalorder %s46, %s48
      %p52 = scmp.eq.s32.totalorder %s12, 0
      %p53 = por %p51, %p52
      %p54 = scmp.ne.s32.totalorder %s46, %s48
      %p55 = scmp.eq.s32.totalorder %s17, 1
      %p56 = por %p54, %p55
      %p57 = scmp.ne.s32.totalorder %s48, %s49
      %p58 = scmp.eq.s32.totalorder %s17, 0
      %p59 = por %p57, %p58
      %p60 = scmp.ne.s32.totalorder %s48, %s49
      %p61 = scmp.eq.s32.totalorder %s18, 1
      %p62 = por %p60, %p61
      %p64 = scmp.ne.s32.totalorder %s49, %s63
      %p65 = scmp.eq.s32.totalorder %s18, 0
      %p66 = por %p64, %p65
      %s68 = sadd.s32 %s67, 1
      %p71 = scmp.eq.s32.totalorder %s12, 1
      %p72 = scmp.ne.s32.totalorder %s67, %s69
      %p73 = scmp.eq.s32.totalorder %s12, 0
      %p74 = por %p72, %p73
      %p75 = scmp.ne.s32.totalorder %s67, %s69
      %p76 = scmp.eq.s32.totalorder %s17, 1
      %p77 = por %p75, %p76
      %p78 = scmp.ne.s32.totalorder %s69, %s70
      %p79 = scmp.eq.s32.totalorder %s17, 0
      %p80 = por %p78, %p79
      %p81 = scmp.ne.s32.totalorder %s69, %s70
      %p82 = scmp.eq.s32.totalorder %s18, 1
      %p83 = por %p81, %p82
      %p85 = scmp.ne.s32.totalorder %s70, %s84
      %p86 = scmp.eq.s32.totalorder %s18, 0
      %p87 = por %p85, %p86
      %s88 = ssub.s32 %s12, %s19
      %p89 = scmp.eq.s32.totalorder %s88, 0
      %s91 = sadd.s32 %s90, 1
      %s92 = scalar_select %p89, %s90, %s91
      %p95 = pneg %p89
      %p96 = scmp.eq.s32.totalorder %s12, 1
      %p97 = por %p95, %p96
      %p98 = scmp.ne.s32.totalorder %s90, %s93
      %p99 = scmp.eq.s32.totalorder %s12, 0
      %p100 = por %p98, %p99
      %p101 = scmp.ne.s32.totalorder %s90, %s93
      %p102 = scmp.eq.s32.totalorder %s17, 1
      %p103 = por %p101, %p102
      %p104 = scmp.ne.s32.totalorder %s93, %s94
      %p105 = scmp.eq.s32.totalorder %s17, 0
      %p106 = por %p104, %p105
      %p107 = scmp.ne.s32.totalorder %s93, %s94
      %p108 = scmp.eq.s32.totalorder %s18, 1
      %p109 = por %p107, %p108
      %p111 = scmp.ne.s32.totalorder %s94, %s110
      %p112 = scmp.eq.s32.totalorder %s18, 0
      %p113 = por %p111, %p112
      %p114 = scmp.le.s32.totalorder 1, %s12
      %p115 = scmp.lt.s32.totalorder %s12, 3
      %p116 = pnand %p114, %p115
      %p117 = pneg %p116
      // Predicated region
      $region9: #{tpu_custom_call.1} parent=5 // pred_check
        _
      $region10: #{tpu_custom_call.1} parent=5 // pred_check_branch
        %119 = sbr.rel (%p116) target = $region12
      $region11: #{tpu_custom_call.1} parent=5 // pred_region
        %s120 = ssub.s32 %s12, 1
        // Predicated region
        $region13: #{tpu_custom_call.1} parent=11 // pred_check
          %p121 = pneg %p59
        $region14: #{tpu_custom_call.1} parent=11 // pred_check_branch
          %123 = sbr.rel (%p121) target = $region16
        $region15: #{tpu_custom_call.1} parent=11 // pred_region
          _
        $region16: #{tpu_custom_call.1} parent=11 // pred_fallthru
          _
        // Predicated region
        $region17: #{tpu_custom_call.1} parent=11 // pred_check
          %p124 = pneg %p80
        $region18: #{tpu_custom_call.1} parent=11 // pred_check_branch
          %126 = sbr.rel (%p124) target = $region20
        $region19: #{tpu_custom_call.1} parent=11 // pred_region
          _
        $region20: #{tpu_custom_call.1} parent=11 // pred_fallthru
          _
      $region12: #{tpu_custom_call.1} parent=5 // pred_fallthru
        _
      %p127 = scmp.lt.s32.totalorder %s12, 2
      // Predicated region
      $region21: #{tpu_custom_call.1} parent=5 // pred_check
        %p128 = pneg %p127
      $region22: #{tpu_custom_call.1} parent=5 // pred_check_branch
        %130 = sbr.rel (%p128) target = $region24
      $region23: #{tpu_custom_call.1} parent=5 // pred_region
        // Predicated region
        $region25: #{tpu_custom_call.1} parent=23 // pred_check
          %p131 = pneg %p32
        $region26: #{tpu_custom_call.1} parent=23 // pred_check_branch
          %133 = sbr.rel (%p131) target = $region28
        $region27: #{tpu_custom_call.1} parent=23 // pred_region
          %p134 = scmp.lt.s32.totalorder %s12, 1
          %s135 = scalar_select %p134, %s12, 1
          %s136 = smul.addr %s135, 60
          %s137 = smul.addr %s136, 4
          %s138 = scalar_lea.vmem %s0, %s137
        $region28: #{tpu_custom_call.1} parent=23 // pred_fallthru
          _
      $region24: #{tpu_custom_call.1} parent=5 // pred_fallthru
        _
      %p139 = scmp.le.s32.totalorder 1, %s12
      %p140 = scmp.lt.s32.totalorder %s12, 3
      %p141 = pnand %p139, %p140
      %p142 = pneg %p141
      // Predicated region
      $region29: #{tpu_custom_call.1} parent=5 // pred_check
        _
      $region30: #{tpu_custom_call.1} parent=5 // pred_check_branch
        %144 = sbr.rel (%p141) target = $region32
      $region31: #{tpu_custom_call.1} parent=5 // pred_region
        %s145 = ssub.s32 %s12, 1
        %p146 = scmp.lt.s32.totalorder %s17, 1
        %s147 = scalar_select %p146, %s17, 1
        %s148 = smul.addr %s147, 60
        %s149 = smul.addr %s148, 4
        %s150 = scalar_lea.vmem %s0, %s149
        %p151 = pneg %p38
        %p152 = pneg %p35
        %p153 = pneg %p59
        %p154 = pneg %p56
        %p155 = pneg %p80
        %p156 = pneg %p77
        %p157 = pneg %p106
        %p158 = pneg %p103
        %s159 = sand.u32 %s93, 1
        %s160 = scalar_lea.sflag [#allocation3], %s159
        %s161 = sand.u32 %s93, 1
        %s162 = smul.addr %s161, 64
        %s163 = scalar_lea.vmem [#allocation2], %s162
        %p164 = scmp.lt.s32.totalorder %s17, 1
        %s165 = scalar_select %p164, %s17, 1
        %s166 = smul.addr %s165, 60
        %s167 = smul.addr %s166, 4
        %s168 = scalar_lea.vmem %s0, %s167
        %v170 = vld [vmem:[%s168] sm:$0xf]
        %v171 = vld [vmem:[%s168 + $0x4] sm:$0xf]
        %v172 = vld [vmem:[%s168 + $0x30] sm:$0xf]
        %v173 = vld [vmem:[%s168 + $0x34] sm:$0xf]
        %v174 = vld [vmem:[%s168 + $0x60] sm:$0xf]
        %v175 = vld [vmem:[%s168 + $0x64] sm:$0xf]
        %v176 = vld [vmem:[%s168 + $0x90] sm:$0xf]
        %v177 = vld [vmem:[%s168 + $0x94] sm:$0xf]
        %v178 = vld [vmem:[%s1] sm:$0x3]
        %s179 = scalar_lea.vmem %s1, 2
        %v180 = vld [vmem:[%s179] sm:$0x3]
        %v189 = vunpack.c.l.b16 %v170
        %v190 = vunpack.c.l.b16 %v171
        %v191 = vunpack.c.l.b16 %v172
        %v192 = vunpack.c.l.b16 %v173
        %v193 = vunpack.c.l.b16 %v174
        %v194 = vunpack.c.l.b16 %v175
        %v195 = vunpack.c.l.b16 %v176
        %v196 = vunpack.c.l.b16 %v177
        %v197 = vpack.c.b16 %v190, %v189
        %v198 = vpack.c.b16 %v192, %v191
        %v199 = vpack.c.b16 %v194, %v193
        %v200 = vpack.c.b16 %v196, %v195
        %201 = vrot.lane.b32.xlu0 %v197, 124
        %v202 = vpop.permute.xlu0 %201
        %203 = vrot.lane.b32.xlu0 %v198, 124
        %v204 = vpop.permute.xlu0 %203
        %205 = vrot.lane.b32.xlu0 %v199, 124
        %v206 = vpop.permute.xlu0 %205
        %207 = vrot.lane.b32.xlu0 %v200, 124
        %v208 = vpop.permute.xlu0 %207
        %vm209 = vcmask 31744
        %v211 = vsel %vm209, %v202, 0
        %v214 = vsel %vm209, %v204, 0
        %v217 = vsel %vm209, %v206, 0
        %v220 = vsel %vm209, %v208, 0
        %vm222 = vcmask 1041408
        %v224 = vsel %vm222, %v180, 0
        %226 = vmatprep.subr.bf16.mxu0 0
        %227 = vmatpush1.bf16.msra.mxu0 %v224
        %228 = vmatprep.subr.bf16.mxu0 0
        %229 = vmatpush1.bf16.msra.mxu0 0
        %230 = vmatprep.subr.bf16.mxu0 0
        %231 = vmatpush1.bf16.msra.mxu0 0
        %232 = vmatprep.subr.bf16.mxu0 0
        %233 = vmatpush1.bf16.msra.mxu0 0
        %234 = vmatprep.subr.bf16.mxu0 0
        %235 = vmatpush1.bf16.msra.mxu0 0
        %236 = vmatprep.subr.bf16.mxu0 0
        %237 = vmatpush1.bf16.msra.mxu0 0
        %238 = vmatprep.subr.bf16.mxu0 0
        %239 = vmatpush1.bf16.msra.mxu0 0
        %240 = vmatprep.subr.bf16.mxu0 0
        %241 = vmatpush1.bf16.msra.mxu0 0
        %242 = vmatprep.subr.bf16.mxu0 0
        %243 = vmatpush1.bf16.msra.mxu0 0
        %244 = vmatprep.subr.bf16.mxu0 0
        %245 = vmatpush1.bf16.msra.mxu0 0
        %246 = vmatprep.subr.bf16.mxu0 0
        %247 = vmatpush1.bf16.msra.mxu0 0
        %248 = vmatprep.subr.bf16.mxu0 0
        %249 = vmatpush1.bf16.msra.mxu0 0
        %250 = vmatprep.subr.bf16.mxu0 0
        %251 = vmatpush1.bf16.msra.mxu0 0
        %252 = vmatprep.subr.bf16.mxu0 0
        %253 = vmatpush1.bf16.msra.mxu0 0
        %254 = vmatprep.subr.bf16.mxu0 0
        %255 = vmatpush1.bf16.msra.mxu0 0
        %256 = vmatprep.subr.bf16.mxu0 0
        %257 = vmatpush1.bf16.msra.mxu0 0
        %258 = vmatprep.mubr.bf16.mxu0 0
        %259 = vmatmul.mubr.bf16.gmra.mrb[0].mxu0 %v211
        %v260 = vpop.f32.mrb[0].mxu0
        %v261 = vadd.f32 0.0, %v260
        %v262 = vpop.f32.mrb[0].mxu0
        %v263 = vpop.f32.mrb[0].mxu0
        %v264 = vadd.f32 0.0, %v263
        %v265 = vpop.f32.mrb[0].mxu0
        %266 = vmatprep.mubr.bf16.mxu0 0
        %267 = vmatmul.mubr.bf16.gmra.mrb[0].mxu0 %v214
        %v268 = vpop.f32.mrb[0].mxu0
        %v269 = vadd.f32 0.0, %v268
        %v270 = vpop.f32.mrb[0].mxu0
        %v271 = vpop.f32.mrb[0].mxu0
        %v272 = vadd.f32 0.0, %v271
        %v273 = vpop.f32.mrb[0].mxu0
        %274 = vmatprep.mubr.bf16.mxu0 0
        %275 = vmatmul.mubr.bf16.gmra.mrb[0].mxu0 %v217
        %v276 = vpop.f32.mrb[0].mxu0
        %v277 = vadd.f32 0.0, %v276
        %v278 = vpop.f32.mrb[0].mxu0
        %v279 = vpop.f32.mrb[0].mxu0
        %v280 = vadd.f32 0.0, %v279
        %v281 = vpop.f32.mrb[0].mxu0
        %282 = vmatprep.mubr.bf16.mxu0 0
        %283 = vmatmul.mubr.bf16.gmra.mrb[0].mxu0 %v220
        %v284 = vpop.f32.mrb[0].mxu0
        %v285 = vadd.f32 0.0, %v284
        %v286 = vpop.f32.mrb[0].mxu0
        %v287 = vpop.f32.mrb[0].mxu0
        %v288 = vadd.f32 0.0, %v287
        %v289 = vpop.f32.mrb[0].mxu0
        %290 = vdwg.mxu0
        %v292 = vsel %vm209, %v197, 0
        %v295 = vsel %vm209, %v198, 0
        %v298 = vsel %vm209, %v199, 0
        %v301 = vsel %vm209, %v200, 0
        %v304 = vsel %vm222, %v178, 0
        %306 = vmatprep.subr.bf16.mxu0 0
        %307 = vmatpush1.bf16.msra.mxu0 %v304
        %308 = vmatprep.subr.bf16.mxu0 0
        %309 = vmatpush1.bf16.msra.mxu0 0
        %310 = vmatprep.subr.bf16.mxu0 0
        %311 = vmatpush1.bf16.msra.mxu0 0
        %312 = vmatprep.subr.bf16.mxu0 0
        %313 = vmatpush1.bf16.msra.mxu0 0
        %314 = vmatprep.subr.bf16.mxu0 0
        %315 = vmatpush1.bf16.msra.mxu0 0
        %316 = vmatprep.subr.bf16.mxu0 0
        %317 = vmatpush1.bf16.msra.mxu0 0
        %318 = vmatprep.subr.bf16.mxu0 0
        %319 = vmatpush1.bf16.msra.mxu0 0
        %320 = vmatprep.subr.bf16.mxu0 0
        %321 = vmatpush1.bf16.msra.mxu0 0
        %322 = vmatprep.subr.bf16.mxu0 0
        %323 = vmatpush1.bf16.msra.mxu0 0
        %324 = vmatprep.subr.bf16.mxu0 0
        %325 = vmatpush1.bf16.msra.mxu0 0
        %326 = vmatprep.subr.bf16.mxu0 0
        %327 = vmatpush1.bf16.msra.mxu0 0
        %328 = vmatprep.subr.bf16.mxu0 0
        %329 = vmatpush1.bf16.msra.mxu0 0
        %330 = vmatprep.subr.bf16.mxu0 0
        %331 = vmatpush1.bf16.msra.mxu0 0
        %332 = vmatprep.subr.bf16.mxu0 0
        %333 = vmatpush1.bf16.msra.mxu0 0
        %334 = vmatprep.subr.bf16.mxu0 0
        %335 = vmatpush1.bf16.msra.mxu0 0
        %336 = vmatprep.subr.bf16.mxu0 0
        %337 = vmatpush1.bf16.msra.mxu0 0
        %338 = vmatprep.mubr.bf16.mxu0 0
        %339 = vmatmul.mubr.bf16.gmra.mrb[0].mxu0 %v292
        %v340 = vpop.f32.mrb[0].mxu0
        %v341 = vadd.f32 %v261, %v340
        %v342 = vpop.f32.mrb[0].mxu0
        %v343 = vpop.f32.mrb[0].mxu0
        %v344 = vadd.f32 %v264, %v343
        %v345 = vpop.f32.mrb[0].mxu0
        %346 = vmatprep.mubr.bf16.mxu0 0
        %347 = vmatmul.mubr.bf16.gmra.mrb[0].mxu0 %v295
        %v348 = vpop.f32.mrb[0].mxu0
        %v349 = vadd.f32 %v269, %v348
        %v350 = vpop.f32.mrb[0].mxu0
        %v351 = vpop.f32.mrb[0].mxu0
        %v352 = vadd.f32 %v272, %v351
        %v353 = vpop.f32.mrb[0].mxu0
        %354 = vmatprep.mubr.bf16.mxu0 0
        %355 = vmatmul.mubr.bf16.gmra.mrb[0].mxu0 %v298
        %v356 = vpop.f32.mrb[0].mxu0
        %v357 = vadd.f32 %v277, %v356
        %v358 = vpop.f32.mrb[0].mxu0
        %v359 = vpop.f32.mrb[0].mxu0
        %v360 = vadd.f32 %v280, %v359
        %v361 = vpop.f32.mrb[0].mxu0
        %362 = vmatprep.mubr.bf16.mxu0 0
        %363 = vmatmul.mubr.bf16.gmra.mrb[0].mxu0 %v301
        %v364 = vpop.f32.mrb[0].mxu0
        %v365 = vadd.f32 %v285, %v364
        %v366 = vpop.f32.mrb[0].mxu0
        %v367 = vpop.f32.mrb[0].mxu0
        %v368 = vadd.f32 %v288, %v367
        %v369 = vpop.f32.mrb[0].mxu0
        %370 = vdwg.mxu0
        %s371 = scalar_lea.vmem %s1, 4
        %v372 = vld [vmem:[%s371] sm:$0x3]
        %373 = vrot.lane.b32.xlu0 %v197, 120
        %v374 = vpop.permute.xlu0 %373
        %375 = vrot.lane.b32.xlu0 %v198, 120
        %v376 = vpop.permute.xlu0 %375
        %377 = vrot.lane.b32.xlu0 %v199, 120
        %v378 = vpop.permute.xlu0 %377
        %379 = vrot.lane.b32.xlu0 %v200, 120
        %v380 = vpop.permute.xlu0 %379
        %v382 = vsel %vm209, %v374, 0
        %v385 = vsel %vm209, %v376, 0
        %v388 = vsel %vm209, %v378, 0
        %v391 = vsel %vm209, %v380, 0
        %v394 = vsel %vm222, %v372, 0
        %396 = vmatprep.subr.bf16.mxu0 0
        %397 = vmatpush1.bf16.msra.mxu0 %v394
        %398 = vmatprep.subr.bf16.mxu0 0
        %399 = vmatpush1.bf16.msra.mxu0 0
        %400 = vmatprep.subr.bf16.mxu0 0
        %401 = vmatpush1.bf16.msra.mxu0 0
        %402 = vmatprep.subr.bf16.mxu0 0
        %403 = vmatpush1.bf16.msra.mxu0 0
        %404 = vmatprep.subr.bf16.mxu0 0
        %405 = vmatpush1.bf16.msra.mxu0 0
        %406 = vmatprep.subr.bf16.mxu0 0
        %407 = vmatpush1.bf16.msra.mxu0 0
        %408 = vmatprep.subr.bf16.mxu0 0
        %409 = vmatpush1.bf16.msra.mxu0 0
        %410 = vmatprep.subr.bf16.mxu0 0
        %411 = vmatpush1.bf16.msra.mxu0 0
        %412 = vmatprep.subr.bf16.mxu0 0
        %413 = vmatpush1.bf16.msra.mxu0 0
        %414 = vmatprep.subr.bf16.mxu0 0
        %415 = vmatpush1.bf16.msra.mxu0 0
        %416 = vmatprep.subr.bf16.mxu0 0
        %417 = vmatpush1.bf16.msra.mxu0 0
        %418 = vmatprep.subr.bf16.mxu0 0
        %419 = vmatpush1.bf16.msra.mxu0 0
        %420 = vmatprep.subr.bf16.mxu0 0
        %421 = vmatpush1.bf16.msra.mxu0 0
        %422 = vmatprep.subr.bf16.mxu0 0
        %423 = vmatpush1.bf16.msra.mxu0 0
        %424 = vmatprep.subr.bf16.mxu0 0
        %425 = vmatpush1.bf16.msra.mxu0 0
        %426 = vmatprep.subr.bf16.mxu0 0
        %427 = vmatpush1.bf16.msra.mxu0 0
        %428 = vmatprep.mubr.bf16.mxu0 0
        %429 = vmatmul.mubr.bf16.gmra.mrb[0].mxu0 %v382
        %v430 = vpop.f32.mrb[0].mxu0
        %v431 = vadd.f32 0.0, %v430
        %v432 = vpop.f32.mrb[0].mxu0
        %v433 = vpop.f32.mrb[0].mxu0
        %v434 = vadd.f32 0.0, %v433
        %v435 = vpop.f32.mrb[0].mxu0
        %436 = vmatprep.mubr.bf16.mxu0 0
        %437 = vmatmul.mubr.bf16.gmra.mrb[0].mxu0 %v385
        %v438 = vpop.f32.mrb[0].mxu0
        %v439 = vadd.f32 0.0, %v438
        %v440 = vpop.f32.mrb[0].mxu0
        %v441 = vpop.f32.mrb[0].mxu0
        %v442 = vadd.f32 0.0, %v441
        %v443 = vpop.f32.mrb[0].mxu0
        %444 = vmatprep.mubr.bf16.mxu0 0
        %445 = vmatmul.mubr.bf16.gmra.mrb[0].mxu0 %v388
        %v446 = vpop.f32.mrb[0].mxu0
        %v447 = vadd.f32 0.0, %v446
        %v448 = vpop.f32.mrb[0].mxu0
        %v449 = vpop.f32.mrb[0].mxu0
        %v450 = vadd.f32 0.0, %v449
        %v451 = vpop.f32.mrb[0].mxu0
        %452 = vmatprep.mubr.bf16.mxu0 0
        %453 = vmatmul.mubr.bf16.gmra.mrb[0].mxu0 %v391
        %v454 = vpop.f32.mrb[0].mxu0
        %v455 = vadd.f32 0.0, %v454
        %v456 = vpop.f32.mrb[0].mxu0
        %v457 = vpop.f32.mrb[0].mxu0
        %v458 = vadd.f32 0.0, %v457
        %v459 = vpop.f32.mrb[0].mxu0
        %460 = vdwg.mxu0
        %v461 = vadd.f32 %v341, %v431
        %v462 = vadd.f32 %v344, %v434
        %v463 = vadd.f32 %v349, %v439
        %v464 = vadd.f32 %v352, %v442
        %v465 = vadd.f32 %v357, %v447
        %v466 = vadd.f32 %v360, %v450
        %v467 = vadd.f32 %v365, %v455
        %v468 = vadd.f32 %v368, %v458
        %s469 = scalar_lea.vmem %s168, 12
        %v470 = vld [vmem:[%s469] sm:$0xf]
        %v471 = vld [vmem:[%s469 + $0x4] sm:$0xf]
        %v472 = vld [vmem:[%s469 + $0x30] sm:$0xf]
        %v473 = vld [vmem:[%s469 + $0x34] sm:$0xf]
        %v474 = vld [vmem:[%s469 + $0x60] sm:$0xf]
        %v475 = vld [vmem:[%s469 + $0x64] sm:$0xf]
        %v476 = vld [vmem:[%s469 + $0x90] sm:$0xf]
        %v477 = vld [vmem:[%s469 + $0x94] sm:$0xf]
        %s478 = scalar_lea.vmem %s1, 6
        %v479 = vld [vmem:[%s478] sm:$0x3]
        %v488 = vunpack.c.l.b16 %v470
        %v489 = vunpack.c.l.b16 %v471
        %v490 = vunpack.c.l.b16 %v472
        %v491 = vunpack.c.l.b16 %v473
        %v492 = vunpack.c.l.b16 %v474
        %v493 = vunpack.c.l.b16 %v475
        %v494 = vunpack.c.l.b16 %v476
        %v495 = vunpack.c.l.b16 %v477
        %v496 = vpack.c.b16 %v489, %v488
        %v497 = vpack.c.b16 %v491, %v490
        %v498 = vpack.c.b16 %v493, %v492
        %v499 = vpack.c.b16 %v495, %v494
        %v501 = vsel %vm209, %v496, 0
        %v504 = vsel %vm209, %v497, 0
        %v507 = vsel %vm209, %v498, 0
        %v510 = vsel %vm209, %v499, 0
        %v513 = vsel %vm222, %v479, 0
        %515 = vmatprep.subr.bf16.mxu0 0
        %516 = vmatpush1.bf16.msra.mxu0 %v513
        %517 = vmatprep.subr.bf16.mxu0 0
        %518 = vmatpush1.bf16.msra.mxu0 0
        %519 = vmatprep.subr.bf16.mxu0 0
        %520 = vmatpush1.bf16.msra.mxu0 0
        %521 = vmatprep.subr.bf16.mxu0 0
        %522 = vmatpush1.bf16.msra.mxu0 0
        %523 = vmatprep.subr.bf16.mxu0 0
        %524 = vmatpush1.bf16.msra.mxu0 0
        %525 = vmatprep.subr.bf16.mxu0 0
        %526 = vmatpush1.bf16.msra.mxu0 0
        %527 = vmatprep.subr.bf16.mxu0 0
        %528 = vmatpush1.bf16.msra.mxu0 0
        %529 = vmatprep.subr.bf16.mxu0 0
        %530 = vmatpush1.bf16.msra.mxu0 0
        %531 = vmatprep.subr.bf16.mxu0 0
        %532 = vmatpush1.bf16.msra.mxu0 0
        %533 = vmatprep.subr.bf16.mxu0 0
        %534 = vmatpush1.bf16.msra.mxu0 0
        %535 = vmatprep.subr.bf16.mxu0 0
        %536 = vmatpush1.bf16.msra.mxu0 0
        %537 = vmatprep.subr.bf16.mxu0 0
        %538 = vmatpush1.bf16.msra.mxu0 0
        %539 = vmatprep.subr.bf16.mxu0 0
        %540 = vmatpush1.bf16.msra.mxu0 0
        %541 = vmatprep.subr.bf16.mxu0 0
        %542 = vmatpush1.bf16.msra.mxu0 0
        %543 = vmatprep.subr.bf16.mxu0 0
        %544 = vmatpush1.bf16.msra.mxu0 0
        %545 = vmatprep.subr.bf16.mxu0 0
        %546 = vmatpush1.bf16.msra.mxu0 0
        %547 = vmatprep.mubr.bf16.mxu0 0
        %548 = vmatmul.mubr.bf16.gmra.mrb[0].mxu0 %v501
        %v549 = vpop.f32.mrb[0].mxu0
        %v550 = vadd.f32 0.0, %v549
        %v551 = vpop.f32.mrb[0].mxu0
        %v552 = vpop.f32.mrb[0].mxu0
        %v553 = vadd.f32 0.0, %v552
        %v554 = vpop.f32.mrb[0].mxu0
        %555 = vmatprep.mubr.bf16.mxu0 0
        %556 = vmatmul.mubr.bf16.gmra.mrb[0].mxu0 %v504
        %v557 = vpop.f32.mrb[0].mxu0
        %v558 = vadd.f32 0.0, %v557
        %v559 = vpop.f32.mrb[0].mxu0
        %v560 = vpop.f32.mrb[0].mxu0
        %v561 = vadd.f32 0.0, %v560
        %v562 = vpop.f32.mrb[0].mxu0
        %563 = vmatprep.mubr.bf16.mxu0 0
        %564 = vmatmul.mubr.bf16.gmra.mrb[0].mxu0 %v507
        %v565 = vpop.f32.mrb[0].mxu0
        %v566 = vadd.f32 0.0, %v565
        %v567 = vpop.f32.mrb[0].mxu0
        %v568 = vpop.f32.mrb[0].mxu0
        %v569 = vadd.f32 0.0, %v568
        %v570 = vpop.f32.mrb[0].mxu0
        %571 = vmatprep.mubr.bf16.mxu0 0
        %572 = vmatmul.mubr.bf16.gmra.mrb[0].mxu0 %v510
        %v573 = vpop.f32.mrb[0].mxu0
        %v574 = vadd.f32 0.0, %v573
        %v575 = vpop.f32.mrb[0].mxu0
        %v576 = vpop.f32.mrb[0].mxu0
        %v577 = vadd.f32 0.0, %v576
        %v578 = vpop.f32.mrb[0].mxu0
        %579 = vdwg.mxu0
        %v580 = vadd.f32 %v461, %v550
        %v581 = vadd.f32 %v462, %v553
        %v582 = vadd.f32 %v463, %v558
        %v583 = vadd.f32 %v464, %v561
        %v584 = vadd.f32 %v465, %v566
        %v585 = vadd.f32 %v466, %v569
        %v586 = vadd.f32 %v467, %v574
        %v587 = vadd.f32 %v468, %v577
        %s588 = scalar_lea.vmem %s1, 8
        %v589 = vld [vmem:[%s588] sm:$0x3]
        %590 = vrot.lane.b32.xlu0 %v496, 124
        %v591 = vpop.permute.xlu0 %590
        %592 = vrot.lane.b32.xlu0 %v497, 124
        %v593 = vpop.permute.xlu0 %592
        %594 = vrot.lane.b32.xlu0 %v498, 124
        %v595 = vpop.permute.xlu0 %594
        %596 = vrot.lane.b32.xlu0 %v499, 124
        %v597 = vpop.permute.xlu0 %596
        %v599 = vsel %vm209, %v591, 0
        %v602 = vsel %vm209, %v593, 0
        %v605 = vsel %vm209, %v595, 0
        %v608 = vsel %vm209, %v597, 0
        %v611 = vsel %vm222, %v589, 0
        %613 = vmatprep.subr.bf16.mxu0 0
        %614 = vmatpush1.bf16.msra.mxu0 %v611
        %615 = vmatprep.subr.bf16.mxu0 0
        %616 = vmatpush1.bf16.msra.mxu0 0
        %617 = vmatprep.subr.bf16.mxu0 0
        %618 = vmatpush1.bf16.msra.mxu0 0
        %619 = vmatprep.subr.bf16.mxu0 0
        %620 = vmatpush1.bf16.msra.mxu0 0
        %621 = vmatprep.subr.bf16.mxu0 0
        %622 = vmatpush1.bf16.msra.mxu0 0
        %623 = vmatprep.subr.bf16.mxu0 0
        %624 = vmatpush1.bf16.msra.mxu0 0
        %625 = vmatprep.subr.bf16.mxu0 0
        %626 = vmatpush1.bf16.msra.mxu0 0
        %627 = vmatprep.subr.bf16.mxu0 0
        %628 = vmatpush1.bf16.msra.mxu0 0
        %629 = vmatprep.subr.bf16.mxu0 0
        %630 = vmatpush1.bf16.msra.mxu0 0
        %631 = vmatprep.subr.bf16.mxu0 0
        %632 = vmatpush1.bf16.msra.mxu0 0
        %633 = vmatprep.subr.bf16.mxu0 0
        %634 = vmatpush1.bf16.msra.mxu0 0
        %635 = vmatprep.subr.bf16.mxu0 0
        %636 = vmatpush1.bf16.msra.mxu0 0
        %637 = vmatprep.subr.bf16.mxu0 0
        %638 = vmatpush1.bf16.msra.mxu0 0
        %639 = vmatprep.subr.bf16.mxu0 0
        %640 = vmatpush1.bf16.msra.mxu0 0
        %641 = vmatprep.subr.bf16.mxu0 0
        %642 = vmatpush1.bf16.msra.mxu0 0
        %643 = vmatprep.subr.bf16.mxu0 0
        %644 = vmatpush1.bf16.msra.mxu0 0
        %645 = vmatprep.mubr.bf16.mxu0 0
        %646 = vmatmul.mubr.bf16.gmra.mrb[0].mxu0 %v599
        %v647 = vpop.f32.mrb[0].mxu0
        %v648 = vadd.f32 0.0, %v647
        %v649 = vpop.f32.mrb[0].mxu0
        %v650 = vpop.f32.mrb[0].mxu0
        %v651 = vadd.f32 0.0, %v650
        %v652 = vpop.f32.mrb[0].mxu0
        %653 = vmatprep.mubr.bf16.mxu0 0
        %654 = vmatmul.mubr.bf16.gmra.mrb[0].mxu0 %v602
        %v655 = vpop.f32.mrb[0].mxu0
        %v656 = vadd.f32 0.0, %v655
        %v657 = vpop.f32.mrb[0].mxu0
        %v658 = vpop.f32.mrb[0].mxu0
        %v659 = vadd.f32 0.0, %v658
        %v660 = vpop.f32.mrb[0].mxu0
        %661 = vmatprep.mubr.bf16.mxu0 0
        %662 = vmatmul.mubr.bf16.gmra.mrb[0].mxu0 %v605
        %v663 = vpop.f32.mrb[0].mxu0
        %v664 = vadd.f32 0.0, %v663
        %v665 = vpop.f32.mrb[0].mxu0
        %v666 = vpop.f32.mrb[0].mxu0
        %v667 = vadd.f32 0.0, %v666
        %v668 = vpop.f32.mrb[0].mxu0
        %669 = vmatprep.mubr.bf16.mxu0 0
        %670 = vmatmul.mubr.bf16.gmra.mrb[0].mxu0 %v608
        %v671 = vpop.f32.mrb[0].mxu0
        %v672 = vadd.f32 0.0, %v671
        %v673 = vpop.f32.mrb[0].mxu0
        %v674 = vpop.f32.mrb[0].mxu0
        %v675 = vadd.f32 0.0, %v674
        %v676 = vpop.f32.mrb[0].mxu0
        %677 = vdwg.mxu0
        %v678 = vadd.f32 %v580, %v648
        %v679 = vadd.f32 %v581, %v651
        %v680 = vadd.f32 %v582, %v656
        %v681 = vadd.f32 %v583, %v659
        %v682 = vadd.f32 %v584, %v664
        %v683 = vadd.f32 %v585, %v667
        %v684 = vadd.f32 %v586, %v672
        %v685 = vadd.f32 %v587, %v675
        %s686 = scalar_lea.vmem %s1, 10
        %v687 = vld [vmem:[%s686] sm:$0x3]
        %688 = vrot.lane.b32.xlu0 %v496, 120
        %v689 = vpop.permute.xlu0 %688
        %690 = vrot.lane.b32.xlu0 %v497, 120
        %v691 = vpop.permute.xlu0 %690
        %692 = vrot.lane.b32.xlu0 %v498, 120
        %v693 = vpop.permute.xlu0 %692
        %694 = vrot.lane.b32.xlu0 %v499, 120
        %v695 = vpop.permute.xlu0 %694
        %v697 = vsel %vm209, %v689, 0
        %v700 = vsel %vm209, %v691, 0
        %v703 = vsel %vm209, %v693, 0
        %v706 = vsel %vm209, %v695, 0
        %v709 = vsel %vm222, %v687, 0
        %711 = vmatprep.subr.bf16.mxu0 0
        %712 = vmatpush1.bf16.msra.mxu0 %v709
        %713 = vmatprep.subr.bf16.mxu0 0
        %714 = vmatpush1.bf16.msra.mxu0 0
        %715 = vmatprep.subr.bf16.mxu0 0
        %716 = vmatpush1.bf16.msra.mxu0 0
        %717 = vmatprep.subr.bf16.mxu0 0
        %718 = vmatpush1.bf16.msra.mxu0 0
        %719 = vmatprep.subr.bf16.mxu0 0
        %720 = vmatpush1.bf16.msra.mxu0 0
        %721 = vmatprep.subr.bf16.mxu0 0
        %722 = vmatpush1.bf16.msra.mxu0 0
        %723 = vmatprep.subr.bf16.mxu0 0
        %724 = vmatpush1.bf16.msra.mxu0 0
        %725 = vmatprep.subr.bf16.mxu0 0
        %726 = vmatpush1.bf16.msra.mxu0 0
        %727 = vmatprep.subr.bf16.mxu0 0
        %728 = vmatpush1.bf16.msra.mxu0 0
        %729 = vmatprep.subr.bf16.mxu0 0
        %730 = vmatpush1.bf16.msra.mxu0 0
        %731 = vmatprep.subr.bf16.mxu0 0
        %732 = vmatpush1.bf16.msra.mxu0 0
        %733 = vmatprep.subr.bf16.mxu0 0
        %734 = vmatpush1.bf16.msra.mxu0 0
        %735 = vmatprep.subr.bf16.mxu0 0
        %736 = vmatpush1.bf16.msra.mxu0 0
        %737 = vmatprep.subr.bf16.mxu0 0
        %738 = vmatpush1.bf16.msra.mxu0 0
        %739 = vmatprep.subr.bf16.mxu0 0
        %740 = vmatpush1.bf16.msra.mxu0 0
        %741 = vmatprep.subr.bf16.mxu0 0
        %742 = vmatpush1.bf16.msra.mxu0 0
        %743 = vmatprep.mubr.bf16.mxu0 0
        %744 = vmatmul.mubr.bf16.gmra.mrb[0].mxu0 %v697
        %v745 = vpop.f32.mrb[0].mxu0
        %v746 = vadd.f32 0.0, %v745
        %v747 = vpop.f32.mrb[0].mxu0
        %v748 = vpop.f32.mrb[0].mxu0
        %v749 = vadd.f32 0.0, %v748
        %v750 = vpop.f32.mrb[0].mxu0
        %751 = vmatprep.mubr.bf16.mxu0 0
        %752 = vmatmul.mubr.bf16.gmra.mrb[0].mxu0 %v700
        %v753 = vpop.f32.mrb[0].mxu0
        %v754 = vadd.f32 0.0, %v753
        %v755 = vpop.f32.mrb[0].mxu0
        %v756 = vpop.f32.mrb[0].mxu0
        %v757 = vadd.f32 0.0, %v756
        %v758 = vpop.f32.mrb[0].mxu0
        %759 = vmatprep.mubr.bf16.mxu0 0
        %760 = vmatmul.mubr.bf16.gmra.mrb[0].mxu0 %v703
        %v761 = vpop.f32.mrb[0].mxu0
        %v762 = vadd.f32 0.0, %v761
        %v763 = vpop.f32.mrb[0].mxu0
        %v764 = vpop.f32.mrb[0].mxu0
        %v765 = vadd.f32 0.0, %v764
        %v766 = vpop.f32.mrb[0].mxu0
        %767 = vmatprep.mubr.bf16.mxu0 0
        %768 = vmatmul.mubr.bf16.gmra.mrb[0].mxu0 %v706
        %v769 = vpop.f32.mrb[0].mxu0
        %v770 = vadd.f32 0.0, %v769
        %v771 = vpop.f32.mrb[0].mxu0
        %v772 = vpop.f32.mrb[0].mxu0
        %v773 = vadd.f32 0.0, %v772
        %v774 = vpop.f32.mrb[0].mxu0
        %775 = vdwg.mxu0
        %v776 = vadd.f32 %v678, %v746
        %v777 = vadd.f32 %v679, %v749
        %v778 = vadd.f32 %v680, %v754
        %v779 = vadd.f32 %v681, %v757
        %v780 = vadd.f32 %v682, %v762
        %v781 = vadd.f32 %v683, %v765
        %v782 = vadd.f32 %v684, %v770
        %v783 = vadd.f32 %v685, %v773
        %s784 = scalar_lea.vmem %s168, 24
        %v785 = vld [vmem:[%s784] sm:$0xf]
        %v786 = vld [vmem:[%s784 + $0x4] sm:$0xf]
        %v787 = vld [vmem:[%s784 + $0x30] sm:$0xf]
        %v788 = vld [vmem:[%s784 + $0x34] sm:$0xf]
        %v789 = vld [vmem:[%s784 + $0x60] sm:$0xf]
        %v790 = vld [vmem:[%s784 + $0x64] sm:$0xf]
        %v791 = vld [vmem:[%s784 + $0x90] sm:$0xf]
        %v792 = vld [vmem:[%s784 + $0x94] sm:$0xf]
        %s793 = scalar_lea.vmem %s1, 12
        %v794 = vld [vmem:[%s793] sm:$0x3]
        %v803 = vunpack.c.l.b16 %v785
        %v804 = vunpack.c.l.b16 %v786
        %v805 = vunpack.c.l.b16 %v787
        %v806 = vunpack.c.l.b16 %v788
        %v807 = vunpack.c.l.b16 %v789
        %v808 = vunpack.c.l.b16 %v790
        %v809 = vunpack.c.l.b16 %v791
        %v810 = vunpack.c.l.b16 %v792
        %v811 = vpack.c.b16 %v804, %v803
        %v812 = vpack.c.b16 %v806, %v805
        %v813 = vpack.c.b16 %v808, %v807
        %v814 = vpack.c.b16 %v810, %v809
        %v816 = vsel %vm209, %v811, 0
        %v819 = vsel %vm209, %v812, 0
        %v822 = vsel %vm209, %v813, 0
        %v825 = vsel %vm209, %v814, 0
        %v828 = vsel %vm222, %v794, 0
        %830 = vmatprep.subr.bf16.mxu0 0
        %831 = vmatpush1.bf16.msra.mxu0 %v828
        %832 = vmatprep.subr.bf16.mxu0 0
        %833 = vmatpush1.bf16.msra.mxu0 0
        %834 = vmatprep.subr.bf16.mxu0 0
        %835 = vmatpush1.bf16.msra.mxu0 0
        %836 = vmatprep.subr.bf16.mxu0 0
        %837 = vmatpush1.bf16.msra.mxu0 0
        %838 = vmatprep.subr.bf16.mxu0 0
        %839 = vmatpush1.bf16.msra.mxu0 0
        %840 = vmatprep.subr.bf16.mxu0 0
        %841 = vmatpush1.bf16.msra.mxu0 0
        %842 = vmatprep.subr.bf16.mxu0 0
        %843 = vmatpush1.bf16.msra.mxu0 0
        %844 = vmatprep.subr.bf16.mxu0 0
        %845 = vmatpush1.bf16.msra.mxu0 0
        %846 = vmatprep.subr.bf16.mxu0 0
        %847 = vmatpush1.bf16.msra.mxu0 0
        %848 = vmatprep.subr.bf16.mxu0 0
        %849 = vmatpush1.bf16.msra.mxu0 0
        %850 = vmatprep.subr.bf16.mxu0 0
        %851 = vmatpush1.bf16.msra.mxu0 0
        %852 = vmatprep.subr.bf16.mxu0 0
        %853 = vmatpush1.bf16.msra.mxu0 0
        %854 = vmatprep.subr.bf16.mxu0 0
        %855 = vmatpush1.bf16.msra.mxu0 0
        %856 = vmatprep.subr.bf16.mxu0 0
        %857 = vmatpush1.bf16.msra.mxu0 0
        %858 = vmatprep.subr.bf16.mxu0 0
        %859 = vmatpush1.bf16.msra.mxu0 0
        %860 = vmatprep.subr.bf16.mxu0 0
        %861 = vmatpush1.bf16.msra.mxu0 0
        %862 = vmatprep.mubr.bf16.mxu0 0
        %863 = vmatmul.mubr.bf16.gmra.mrb[0].mxu0 %v816
        %v864 = vpop.f32.mrb[0].mxu0
        %v865 = vadd.f32 0.0, %v864
        %v866 = vpop.f32.mrb[0].mxu0
        %v867 = vpop.f32.mrb[0].mxu0
        %v868 = vadd.f32 0.0, %v867
        %v869 = vpop.f32.mrb[0].mxu0
        %870 = vmatprep.mubr.bf16.mxu0 0
        %871 = vmatmul.mubr.bf16.gmra.mrb[0].mxu0 %v819
        %v872 = vpop.f32.mrb[0].mxu0
        %v873 = vadd.f32 0.0, %v872
        %v874 = vpop.f32.mrb[0].mxu0
        %v875 = vpop.f32.mrb[0].mxu0
        %v876 = vadd.f32 0.0, %v875
        %v877 = vpop.f32.mrb[0].mxu0
        %878 = vmatprep.mubr.bf16.mxu0 0
        %879 = vmatmul.mubr.bf16.gmra.mrb[0].mxu0 %v822
        %v880 = vpop.f32.mrb[0].mxu0
        %v881 = vadd.f32 0.0, %v880
        %v882 = vpop.f32.mrb[0].mxu0
        %v883 = vpop.f32.mrb[0].mxu0
        %v884 = vadd.f32 0.0, %v883
        %v885 = vpop.f32.mrb[0].mxu0
        %886 = vmatprep.mubr.bf16.mxu0 0
        %887 = vmatmul.mubr.bf16.gmra.mrb[0].mxu0 %v825
        %v888 = vpop.f32.mrb[0].mxu0
        %v889 = vadd.f32 0.0, %v888
        %v890 = vpop.f32.mrb[0].mxu0
        %v891 = vpop.f32.mrb[0].mxu0
        %v892 = vadd.f32 0.0, %v891
        %v893 = vpop.f32.mrb[0].mxu0
        %894 = vdwg.mxu0
        %v895 = vadd.f32 %v776, %v865
        %v896 = vadd.f32 %v777, %v868
        %v897 = vadd.f32 %v778, %v873
        %v898 = vadd.f32 %v779, %v876
        %v899 = vadd.f32 %v780, %v881
        %v900 = vadd.f32 %v781, %v884
        %v901 = vadd.f32 %v782, %v889
        %v902 = vadd.f32 %v783, %v892
        %s903 = scalar_lea.vmem %s1, 14
        %v904 = vld [vmem:[%s903] sm:$0x3]
        %905 = vrot.lane.b32.xlu0 %v811, 124
        %v906 = vpop.permute.xlu0 %905
        %907 = vrot.lane.b32.xlu0 %v812, 124
        %v908 = vpop.permute.xlu0 %907
        %909 = vrot.lane.b32.xlu0 %v813, 124
        %v910 = vpop.permute.xlu0 %909
        %911 = vrot.lane.b32.xlu0 %v814, 124
        %v912 = vpop.permute.xlu0 %911
        %v914 = vsel %vm209, %v906, 0
        %v917 = vsel %vm209, %v908, 0
        %v920 = vsel %vm209, %v910, 0
        %v923 = vsel %vm209, %v912, 0
        %v926 = vsel %vm222, %v904, 0
        %928 = vmatprep.subr.bf16.mxu0 0
        %929 = vmatpush1.bf16.msra.mxu0 %v926
        %930 = vmatprep.subr.bf16.mxu0 0
        %931 = vmatpush1.bf16.msra.mxu0 0
        %932 = vmatprep.subr.bf16.mxu0 0
        %933 = vmatpush1.bf16.msra.mxu0 0
        %934 = vmatprep.subr.bf16.mxu0 0
        %935 = vmatpush1.bf16.msra.mxu0 0
        %936 = vmatprep.subr.bf16.mxu0 0
        %937 = vmatpush1.bf16.msra.mxu0 0
        %938 = vmatprep.subr.bf16.mxu0 0
        %939 = vmatpush1.bf16.msra.mxu0 0
        %940 = vmatprep.subr.bf16.mxu0 0
        %941 = vmatpush1.bf16.msra.mxu0 0
        %942 = vmatprep.subr.bf16.mxu0 0
        %943 = vmatpush1.bf16.msra.mxu0 0
        %944 = vmatprep.subr.bf16.mxu0 0
        %945 = vmatpush1.bf16.msra.mxu0 0
        %946 = vmatprep.subr.bf16.mxu0 0
        %947 = vmatpush1.bf16.msra.mxu0 0
        %948 = vmatprep.subr.bf16.mxu0 0
        %949 = vmatpush1.bf16.msra.mxu0 0
        %950 = vmatprep.subr.bf16.mxu0 0
        %951 = vmatpush1.bf16.msra.mxu0 0
        %952 = vmatprep.subr.bf16.mxu0 0
        %953 = vmatpush1.bf16.msra.mxu0 0
        %954 = vmatprep.subr.bf16.mxu0 0
        %955 = vmatpush1.bf16.msra.mxu0 0
        %956 = vmatprep.subr.bf16.mxu0 0
        %957 = vmatpush1.bf16.msra.mxu0 0
        %958 = vmatprep.subr.bf16.mxu0 0
        %959 = vmatpush1.bf16.msra.mxu0 0
        %960 = vmatprep.mubr.bf16.mxu0 0
        %961 = vmatmul.mubr.bf16.gmra.mrb[0].mxu0 %v914
        %v962 = vpop.f32.mrb[0].mxu0
        %v963 = vadd.f32 0.0, %v962
        %v964 = vpop.f32.mrb[0].mxu0
        %v965 = vpop.f32.mrb[0].mxu0
        %v966 = vadd.f32 0.0, %v965
        %v967 = vpop.f32.mrb[0].mxu0
        %968 = vmatprep.mubr.bf16.mxu0 0
        %969 = vmatmul.mubr.bf16.gmra.mrb[0].mxu0 %v917
        %v970 = vpop.f32.mrb[0].mxu0
        %v971 = vadd.f32 0.0, %v970
        %v972 = vpop.f32.mrb[0].mxu0
        %v973 = vpop.f32.mrb[0].mxu0
        %v974 = vadd.f32 0.0, %v973
        %v975 = vpop.f32.mrb[0].mxu0
        %976 = vmatprep.mubr.bf16.mxu0 0
        %977 = vmatmul.mubr.bf16.gmra.mrb[0].mxu0 %v920
        %v978 = vpop.f32.mrb[0].mxu0
        %v979 = vadd.f32 0.0, %v978
        %v980 = vpop.f32.mrb[0].mxu0
        %v981 = vpop.f32.mrb[0].mxu0
        %v982 = vadd.f32 0.0, %v981
        %v983 = vpop.f32.mrb[0].mxu0
        %984 = vmatprep.mubr.bf16.mxu0 0
        %985 = vmatmul.mubr.bf16.gmra.mrb[0].mxu0 %v923
        %v986 = vpop.f32.mrb[0].mxu0
        %v987 = vadd.f32 0.0, %v986
        %v988 = vpop.f32.mrb[0].mxu0
        %v989 = vpop.f32.mrb[0].mxu0
        %v990 = vadd.f32 0.0, %v989
        %v991 = vpop.f32.mrb[0].mxu0
        %992 = vdwg.mxu0
        %v993 = vadd.f32 %v895, %v963
        %v994 = vadd.f32 %v896, %v966
        %v995 = vadd.f32 %v897, %v971
        %v996 = vadd.f32 %v898, %v974
        %v997 = vadd.f32 %v899, %v979
        %v998 = vadd.f32 %v900, %v982
        %v999 = vadd.f32 %v901, %v987
        %v1000 = vadd.f32 %v902, %v990
        %s1001 = scalar_lea.vmem %s1, 16
        %v1002 = vld [vmem:[%s1001] sm:$0x3]
        %1003 = vrot.lane.b32.xlu0 %v811, 120
        %v1004 = vpop.permute.xlu0 %1003
        %1005 = vrot.lane.b32.xlu0 %v812, 120
        %v1006 = vpop.permute.xlu0 %1005
        %1007 = vrot.lane.b32.xlu0 %v813, 120
        %v1008 = vpop.permute.xlu0 %1007
        %1009 = vrot.lane.b32.xlu0 %v814, 120
        %v1010 = vpop.permute.xlu0 %1009
        %v1012 = vsel %vm209, %v1004, 0
        %v1015 = vsel %vm209, %v1006, 0
        %v1018 = vsel %vm209, %v1008, 0
        %v1021 = vsel %vm209, %v1010, 0
        %v1024 = vsel %vm222, %v1002, 0
        %1026 = vmatprep.subr.bf16.mxu0 0
        %1027 = vmatpush1.bf16.msra.mxu0 %v1024
        %1028 = vmatprep.subr.bf16.mxu0 0
        %1029 = vmatpush1.bf16.msra.mxu0 0
        %1030 = vmatprep.subr.bf16.mxu0 0
        %1031 = vmatpush1.bf16.msra.mxu0 0
        %1032 = vmatprep.subr.bf16.mxu0 0
        %1033 = vmatpush1.bf16.msra.mxu0 0
        %1034 = vmatprep.subr.bf16.mxu0 0
        %1035 = vmatpush1.bf16.msra.mxu0 0
        %1036 = vmatprep.subr.bf16.mxu0 0
        %1037 = vmatpush1.bf16.msra.mxu0 0
        %1038 = vmatprep.subr.bf16.mxu0 0
        %1039 = vmatpush1.bf16.msra.mxu0 0
        %1040 = vmatprep.subr.bf16.mxu0 0
        %1041 = vmatpush1.bf16.msra.mxu0 0
        %1042 = vmatprep.subr.bf16.mxu0 0
        %1043 = vmatpush1.bf16.msra.mxu0 0
        %1044 = vmatprep.subr.bf16.mxu0 0
        %1045 = vmatpush1.bf16.msra.mxu0 0
        %1046 = vmatprep.subr.bf16.mxu0 0
        %1047 = vmatpush1.bf16.msra.mxu0 0
        %1048 = vmatprep.subr.bf16.mxu0 0
        %1049 = vmatpush1.bf16.msra.mxu0 0
        %1050 = vmatprep.subr.bf16.mxu0 0
        %1051 = vmatpush1.bf16.msra.mxu0 0
        %1052 = vmatprep.subr.bf16.mxu0 0
        %1053 = vmatpush1.bf16.msra.mxu0 0
        %1054 = vmatprep.subr.bf16.mxu0 0
        %1055 = vmatpush1.bf16.msra.mxu0 0
        %1056 = vmatprep.subr.bf16.mxu0 0
        %1057 = vmatpush1.bf16.msra.mxu0 0
        %1058 = vmatprep.mubr.bf16.mxu0 0
        %1059 = vmatmul.mubr.bf16.gmra.mrb[0].mxu0 %v1012
        %v1060 = vpop.f32.mrb[0].mxu0
        %v1061 = vadd.f32 0.0, %v1060
        %v1062 = vpop.f32.mrb[0].mxu0
        %v1063 = vpop.f32.mrb[0].mxu0
        %v1064 = vadd.f32 0.0, %v1063
        %v1065 = vpop.f32.mrb[0].mxu0
        %1066 = vmatprep.mubr.bf16.mxu0 0
        %1067 = vmatmul.mubr.bf16.gmra.mrb[0].mxu0 %v1015
        %v1068 = vpop.f32.mrb[0].mxu0
        %v1069 = vadd.f32 0.0, %v1068
        %v1070 = vpop.f32.mrb[0].mxu0
        %v1071 = vpop.f32.mrb[0].mxu0
        %v1072 = vadd.f32 0.0, %v1071
        %v1073 = vpop.f32.mrb[0].mxu0
        %1074 = vmatprep.mubr.bf16.mxu0 0
        %1075 = vmatmul.mubr.bf16.gmra.mrb[0].mxu0 %v1018
        %v1076 = vpop.f32.mrb[0].mxu0
        %v1077 = vadd.f32 0.0, %v1076
        %v1078 = vpop.f32.mrb[0].mxu0
        %v1079 = vpop.f32.mrb[0].mxu0
        %v1080 = vadd.f32 0.0, %v1079
        %v1081 = vpop.f32.mrb[0].mxu0
        %1082 = vmatprep.mubr.bf16.mxu0 0
        %1083 = vmatmul.mubr.bf16.gmra.mrb[0].mxu0 %v1021
        %v1084 = vpop.f32.mrb[0].mxu0
        %v1085 = vadd.f32 0.0, %v1084
        %v1086 = vpop.f32.mrb[0].mxu0
        %v1087 = vpop.f32.mrb[0].mxu0
        %v1088 = vadd.f32 0.0, %v1087
        %v1089 = vpop.f32.mrb[0].mxu0
        %1090 = vdwg.mxu0
        %v1091 = vadd.f32 %v993, %v1061
        %v1092 = vadd.f32 %v994, %v1064
        %v1093 = vadd.f32 %v995, %v1069
        %v1094 = vadd.f32 %v996, %v1072
        %v1095 = vadd.f32 %v997, %v1077
        %v1096 = vadd.f32 %v998, %v1080
        %v1097 = vadd.f32 %v999, %v1085
        %v1098 = vadd.f32 %v1000, %v1088
        %1099 = vrot.lane.b32.xlu0 %v197, 116
        %v1100 = vpop.permute.xlu0 %1099
        %1101 = vrot.lane.b32.xlu0 %v198, 116
        %v1102 = vpop.permute.xlu0 %1101
        %1103 = vrot.lane.b32.xlu0 %v199, 116
        %v1104 = vpop.permute.xlu0 %1103
        %1105 = vrot.lane.b32.xlu0 %v200, 116
        %v1106 = vpop.permute.xlu0 %1105
        %v1108 = vsel %vm209, %v1100, 0
        %v1111 = vsel %vm209, %v1102, 0
        %v1114 = vsel %vm209, %v1104, 0
        %v1117 = vsel %vm209, %v1106, 0
        %1119 = vmatprep.subr.bf16.mxu0 0
        %1120 = vmatpush1.bf16.msra.mxu0 %v224
        %1121 = vmatprep.subr.bf16.mxu0 0
        %1122 = vmatpush1.bf16.msra.mxu0 0
        %1123 = vmatprep.subr.bf16.mxu0 0
        %1124 = vmatpush1.bf16.msra.mxu0 0
        %1125 = vmatprep.subr.bf16.mxu0 0
        %1126 = vmatpush1.bf16.msra.mxu0 0
        %1127 = vmatprep.subr.bf16.mxu0 0
        %1128 = vmatpush1.bf16.msra.mxu0 0
        %1129 = vmatprep.subr.bf16.mxu0 0
        %1130 = vmatpush1.bf16.msra.mxu0 0
        %1131 = vmatprep.subr.bf16.mxu0 0
        %1132 = vmatpush1.bf16.msra.mxu0 0
        %1133 = vmatprep.subr.bf16.mxu0 0
        %1134 = vmatpush1.bf16.msra.mxu0 0
        %1135 = vmatprep.subr.bf16.mxu0 0
        %1136 = vmatpush1.bf16.msra.mxu0 0
        %1137 = vmatprep.subr.bf16.mxu0 0
        %1138 = vmatpush1.bf16.msra.mxu0 0
        %1139 = vmatprep.subr.bf16.mxu0 0
        %1140 = vmatpush1.bf16.msra.mxu0 0
        %1141 = vmatprep.subr.bf16.mxu0 0
        %1142 = vmatpush1.bf16.msra.mxu0 0
        %1143 = vmatprep.subr.bf16.mxu0 0
        %1144 = vmatpush1.bf16.msra.mxu0 0
        %1145 = vmatprep.subr.bf16.mxu0 0
        %1146 = vmatpush1.bf16.msra.mxu0 0
        %1147 = vmatprep.subr.bf16.mxu0 0
        %1148 = vmatpush1.bf16.msra.mxu0 0
        %1149 = vmatprep.subr.bf16.mxu0 0
        %1150 = vmatpush1.bf16.msra.mxu0 0
        %1151 = vmatprep.mubr.bf16.mxu0 0
        %1152 = vmatmul.mubr.bf16.gmra.mrb[0].mxu0 %v1108
        %v1153 = vpop.f32.mrb[0].mxu0
        %v1154 = vadd.f32 0.0, %v1153
        %v1155 = vpop.f32.mrb[0].mxu0
        %v1156 = vpop.f32.mrb[0].mxu0
        %v1157 = vadd.f32 0.0, %v1156
        %v1158 = vpop.f32.mrb[0].mxu0
        %1159 = vmatprep.mubr.bf16.mxu0 0
        %1160 = vmatmul.mubr.bf16.gmra.mrb[0].mxu0 %v1111
        %v1161 = vpop.f32.mrb[0].mxu0
        %v1162 = vadd.f32 0.0, %v1161
        %v1163 = vpop.f32.mrb[0].mxu0
        %v1164 = vpop.f32.mrb[0].mxu0
        %v1165 = vadd.f32 0.0, %v1164
        %v1166 = vpop.f32.mrb[0].mxu0
        %1167 = vmatprep.mubr.bf16.mxu0 0
        %1168 = vmatmul.mubr.bf16.gmra.mrb[0].mxu0 %v1114
        %v1169 = vpop.f32.mrb[0].mxu0
        %v1170 = vadd.f32 0.0, %v1169
        %v1171 = vpop.f32.mrb[0].mxu0
        %v1172 = vpop.f32.mrb[0].mxu0
        %v1173 = vadd.f32 0.0, %v1172
        %v1174 = vpop.f32.mrb[0].mxu0
        %1175 = vmatprep.mubr.bf16.mxu0 0
        %1176 = vmatmul.mubr.bf16.gmra.mrb[0].mxu0 %v1117
        %v1177 = vpop.f32.mrb[0].mxu0
        %v1178 = vadd.f32 0.0, %v1177
        %v1179 = vpop.f32.mrb[0].mxu0
        %v1180 = vpop.f32.mrb[0].mxu0
        %v1181 = vadd.f32 0.0, %v1180
        %v1182 = vpop.f32.mrb[0].mxu0
        %1183 = vdwg.mxu0
        %1184 = vmatprep.subr.bf16.mxu0 0
        %1185 = vmatpush1.bf16.msra.mxu0 %v304
        %1186 = vmatprep.subr.bf16.mxu0 0
        %1187 = vmatpush1.bf16.msra.mxu0 0
        %1188 = vmatprep.subr.bf16.mxu0 0
        %1189 = vmatpush1.bf16.msra.mxu0 0
        %1190 = vmatprep.subr.bf16.mxu0 0
        %1191 = vmatpush1.bf16.msra.mxu0 0
        %1192 = vmatprep.subr.bf16.mxu0 0
        %1193 = vmatpush1.bf16.msra.mxu0 0
        %1194 = vmatprep.subr.bf16.mxu0 0
        %1195 = vmatpush1.bf16.msra.mxu0 0
        %1196 = vmatprep.subr.bf16.mxu0 0
        %1197 = vmatpush1.bf16.msra.mxu0 0
        %1198 = vmatprep.subr.bf16.mxu0 0
        %1199 = vmatpush1.bf16.msra.mxu0 0
        %1200 = vmatprep.subr.bf16.mxu0 0
        %1201 = vmatpush1.bf16.msra.mxu0 0
        %1202 = vmatprep.subr.bf16.mxu0 0
        %1203 = vmatpush1.bf16.msra.mxu0 0
        %1204 = vmatprep.subr.bf16.mxu0 0
        %1205 = vmatpush1.bf16.msra.mxu0 0
        %1206 = vmatprep.subr.bf16.mxu0 0
        %1207 = vmatpush1.bf16.msra.mxu0 0
        %1208 = vmatprep.subr.bf16.mxu0 0
        %1209 = vmatpush1.bf16.msra.mxu0 0
        %1210 = vmatprep.subr.bf16.mxu0 0
        %1211 = vmatpush1.bf16.msra.mxu0 0
        %1212 = vmatprep.subr.bf16.mxu0 0
        %1213 = vmatpush1.bf16.msra.mxu0 0
        %1214 = vmatprep.subr.bf16.mxu0 0
        %1215 = vmatpush1.bf16.msra.mxu0 0
        %1216 = vmatprep.mubr.bf16.mxu0 0
        %1217 = vmatmul.mubr.bf16.gmra.mrb[0].mxu0 %v382
        %v1218 = vpop.f32.mrb[0].mxu0
        %v1219 = vadd.f32 %v1154, %v1218
        %v1220 = vpop.f32.mrb[0].mxu0
        %v1221 = vpop.f32.mrb[0].mxu0
        %v1222 = vadd.f32 %v1157, %v1221
        %v1223 = vpop.f32.mrb[0].mxu0
        %1224 = vmatprep.mubr.bf16.mxu0 0
        %1225 = vmatmul.mubr.bf16.gmra.mrb[0].mxu0 %v385
        %v1226 = vpop.f32.mrb[0].mxu0
        %v1227 = vadd.f32 %v1162, %v1226
        %v1228 = vpop.f32.mrb[0].mxu0
        %v1229 = vpop.f32.mrb[0].mxu0
        %v1230 = vadd.f32 %v1165, %v1229
        %v1231 = vpop.f32.mrb[0].mxu0
        %1232 = vmatprep.mubr.bf16.mxu0 0
        %1233 = vmatmul.mubr.bf16.gmra.mrb[0].mxu0 %v388
        %v1234 = vpop.f32.mrb[0].mxu0
        %v1235 = vadd.f32 %v1170, %v1234
        %v1236 = vpop.f32.mrb[0].mxu0
        %v1237 = vpop.f32.mrb[0].mxu0
        %v1238 = vadd.f32 %v1173, %v1237
        %v1239 = vpop.f32.mrb[0].mxu0
        %1240 = vmatprep.mubr.bf16.mxu0 0
        %1241 = vmatmul.mubr.bf16.gmra.mrb[0].mxu0 %v391
        %v1242 = vpop.f32.mrb[0].mxu0
        %v1243 = vadd.f32 %v1178, %v1242
        %v1244 = vpop.f32.mrb[0].mxu0
        %v1245 = vpop.f32.mrb[0].mxu0
        %v1246 = vadd.f32 %v1181, %v1245
        %v1247 = vpop.f32.mrb[0].mxu0
        %1248 = vdwg.mxu0
        %v1249 = vld [vmem:[%s168] sm:$0xf]
        %v1250 = vld [vmem:[%s168 + $0x4] sm:$0xf]
        %v1251 = vld [vmem:[%s168 + $0x8] sm:$0x1]
        %v1252 = vld [vmem:[%s168 + $0x30] sm:$0xf]
        %v1253 = vld [vmem:[%s168 + $0x34] sm:$0xf]
        %v1254 = vld [vmem:[%s168 + $0x38] sm:$0x1]
        %v1255 = vld [vmem:[%s168 + $0x60] sm:$0xf]
        %v1256 = vld [vmem:[%s168 + $0x64] sm:$0xf]
        %v1257 = vld [vmem:[%s168 + $0x68] sm:$0x1]
        %v1258 = vld [vmem:[%s168 + $0x90] sm:$0xf]
        %v1259 = vld [vmem:[%s168 + $0x94] sm:$0xf]
        %v1260 = vld [vmem:[%s168 + $0x98] sm:$0x1]
        %vm1261 = vsmask.f32 3328
        %vm1262 = vsmask.f32 7440
        %vm1263 = vmor %vm1261, %vm1262
        %v1265 = vshrl.u32 %v1249, 16
        %v1267 = vrot.slane %v1265, 4
        %v1268 = vshll.u32 %v1249, 16
        %v1270 = vrot.slane %v1268, 5
        %v1271 = vor.u32 %v1267, %v1270
        %v1272 = vrot.slane %v1271, 4
        %v1274 = vshll.u32 %v1250, 16
        %v1276 = vrot.slane %v1274, 5
        %v1277 = vsel %vm1263, %v1272, %v1276
        %v1278 = vshrl.u32 %v1250, 16
        %v1280 = vrot.slane %v1278, 4
        %v1281 = vor.u32 %v1280, %v1276
        %v1282 = vrot.slane %v1281, 4
        %v1284 = vshll.u32 %v1251, 16
        %v1286 = vrot.slane %v1284, 5
        %v1287 = vsel %vm1263, %v1282, %v1286
        %v1289 = vshrl.u32 %v1252, 16
        %v1291 = vrot.slane %v1289, 4
        %v1292 = vshll.u32 %v1252, 16
        %v1294 = vrot.slane %v1292, 5
        %v1295 = vor.u32 %v1291, %v1294
        %v1296 = vrot.slane %v1295, 4
        %v1298 = vshll.u32 %v1253, 16
        %v1300 = vrot.slane %v1298, 5
        %v1301 = vsel %vm1263, %v1296, %v1300
        %v1302 = vshrl.u32 %v1253, 16
        %v1304 = vrot.slane %v1302, 4
        %v1305 = vor.u32 %v1304, %v1300
        %v1306 = vrot.slane %v1305, 4
        %v1308 = vshll.u32 %v1254, 16
        %v1310 = vrot.slane %v1308, 5
        %v1311 = vsel %vm1263, %v1306, %v1310
        %v1313 = vshrl.u32 %v1255, 16
        %v1315 = vrot.slane %v1313, 4
        %v1316 = vshll.u32 %v1255, 16
        %v1318 = vrot.slane %v1316, 5
        %v1319 = vor.u32 %v1315, %v1318
        %v1320 = vrot.slane %v1319, 4
        %v1322 = vshll.u32 %v1256, 16
        %v1324 = vrot.slane %v1322, 5
        %v1325 = vsel %vm1263, %v1320, %v1324
        %v1326 = vshrl.u32 %v1256, 16
        %v1328 = vrot.slane %v1326, 4
        %v1329 = vor.u32 %v1328, %v1324
        %v1330 = vrot.slane %v1329, 4
        %v1332 = vshll.u32 %v1257, 16
        %v1334 = vrot.slane %v1332, 5
        %v1335 = vsel %vm1263, %v1330, %v1334
        %v1337 = vshrl.u32 %v1258, 16
        %v1339 = vrot.slane %v1337, 4
        %v1340 = vshll.u32 %v1258, 16
        %v1342 = vrot.slane %v1340, 5
        %v1343 = vor.u32 %v1339, %v1342
        %v1344 = vrot.slane %v1343, 4
        %v1346 = vshll.u32 %v1259, 16
        %v1348 = vrot.slane %v1346, 5
        %v1349 = vsel %vm1263, %v1344, %v1348
        %v1350 = vshrl.u32 %v1259, 16
        %v1352 = vrot.slane %v1350, 4
        %v1353 = vor.u32 %v1352, %v1348
        %v1354 = vrot.slane %v1353, 4
        %v1356 = vshll.u32 %v1260, 16
        %v1358 = vrot.slane %v1356, 5
        %v1359 = vsel %vm1263, %v1354, %v1358
        %v1360 = vunpack.c.l.b16 %v1277
        %v1361 = vunpack.c.l.b16 %v1287
        %v1362 = vunpack.c.l.b16 %v1301
        %v1363 = vunpack.c.l.b16 %v1311
        %v1364 = vunpack.c.l.b16 %v1325
        %v1365 = vunpack.c.l.b16 %v1335
        %v1366 = vunpack.c.l.b16 %v1349
        %v1367 = vunpack.c.l.b16 %v1359
        %v1368 = vpack.c.b16 %v1361, %v1360
        %v1369 = vpack.c.b16 %v1363, %v1362
        %v1370 = vpack.c.b16 %v1365, %v1364
        %v1371 = vpack.c.b16 %v1367, %v1366
        %v1373 = vsel %vm209, %v1368, 0
        %v1376 = vsel %vm209, %v1369, 0
        %v1379 = vsel %vm209, %v1370, 0
        %v1382 = vsel %vm209, %v1371, 0
        %1384 = vmatprep.subr.bf16.mxu0 0
        %1385 = vmatpush1.bf16.msra.mxu0 %v394
        %1386 = vmatprep.subr.bf16.mxu0 0
        %1387 = vmatpush1.bf16.msra.mxu0 0
        %1388 = vmatprep.subr.bf16.mxu0 0
        %1389 = vmatpush1.bf16.msra.mxu0 0
        %1390 = vmatprep.subr.bf16.mxu0 0
        %1391 = vmatpush1.bf16.msra.mxu0 0
        %1392 = vmatprep.subr.bf16.mxu0 0
        %1393 = vmatpush1.bf16.msra.mxu0 0
        %1394 = vmatprep.subr.bf16.mxu0 0
        %1395 = vmatpush1.bf16.msra.mxu0 0
        %1396 = vmatprep.subr.bf16.mxu0 0
        %1397 = vmatpush1.bf16.msra.mxu0 0
        %1398 = vmatprep.subr.bf16.mxu0 0
        %1399 = vmatpush1.bf16.msra.mxu0 0
        %1400 = vmatprep.subr.bf16.mxu0 0
        %1401 = vmatpush1.bf16.msra.mxu0 0
        %1402 = vmatprep.subr.bf16.mxu0 0
        %1403 = vmatpush1.bf16.msra.mxu0 0
        %1404 = vmatprep.subr.bf16.mxu0 0
        %1405 = vmatpush1.bf16.msra.mxu0 0
        %1406 = vmatprep.subr.bf16.mxu0 0
        %1407 = vmatpush1.bf16.msra.mxu0 0
        %1408 = vmatprep.subr.bf16.mxu0 0
        %1409 = vmatpush1.bf16.msra.mxu0 0
        %1410 = vmatprep.subr.bf16.mxu0 0
        %1411 = vmatpush1.bf16.msra.mxu0 0
        %1412 = vmatprep.subr.bf16.mxu0 0
        %1413 = vmatpush1.bf16.msra.mxu0 0
        %1414 = vmatprep.subr.bf16.mxu0 0
        %1415 = vmatpush1.bf16.msra.mxu0 0
        %1416 = vmatprep.mubr.bf16.mxu0 0
        %1417 = vmatmul.mubr.bf16.gmra.mrb[0].mxu0 %v1373
        %v1418 = vpop.f32.mrb[0].mxu0
        %v1419 = vadd.f32 0.0, %v1418
        %v1420 = vpop.f32.mrb[0].mxu0
        %v1421 = vpop.f32.mrb[0].mxu0
        %v1422 = vadd.f32 0.0, %v1421
        %v1423 = vpop.f32.mrb[0].mxu0
        %1424 = vmatprep.mubr.bf16.mxu0 0
        %1425 = vmatmul.mubr.bf16.gmra.mrb[0].mxu0 %v1376
        %v1426 = vpop.f32.mrb[0].mxu0
        %v1427 = vadd.f32 0.0, %v1426
        %v1428 = vpop.f32.mrb[0].mxu0
        %v1429 = vpop.f32.mrb[0].mxu0
        %v1430 = vadd.f32 0.0, %v1429
        %v1431 = vpop.f32.mrb[0].mxu0
        %1432 = vmatprep.mubr.bf16.mxu0 0
        %1433 = vmatmul.mubr.bf16.gmra.mrb[0].mxu0 %v1379
        %v1434 = vpop.f32.mrb[0].mxu0
        %v1435 = vadd.f32 0.0, %v1434
        %v1436 = vpop.f32.mrb[0].mxu0
        %v1437 = vpop.f32.mrb[0].mxu0
        %v1438 = vadd.f32 0.0, %v1437
        %v1439 = vpop.f32.mrb[0].mxu0
        %1440 = vmatprep.mubr.bf16.mxu0 0
        %1441 = vmatmul.mubr.bf16.gmra.mrb[0].mxu0 %v1382
        %v1442 = vpop.f32.mrb[0].mxu0
        %v1443 = vadd.f32 0.0, %v1442
        %v1444 = vpop.f32.mrb[0].mxu0
        %v1445 = vpop.f32.mrb[0].mxu0
        %v1446 = vadd.f32 0.0, %v1445
        %v1447 = vpop.f32.mrb[0].mxu0
        %1448 = vdwg.mxu0
        %v1449 = vadd.f32 %v1219, %v1419
        %v1450 = vadd.f32 %v1222, %v1422
        %v1451 = vadd.f32 %v1227, %v1427
        %v1452 = vadd.f32 %v1230, %v1430
        %v1453 = vadd.f32 %v1235, %v1435
        %v1454 = vadd.f32 %v1238, %v1438
        %v1455 = vadd.f32 %v1243, %v1443
        %v1456 = vadd.f32 %v1246, %v1446
        %1457 = vmatprep.subr.bf16.mxu0 0
        %1458 = vmatpush1.bf16.msra.mxu0 %v513
        %1459 = vmatprep.subr.bf16.mxu0 0
        %1460 = vmatpush1.bf16.msra.mxu0 0
        %1461 = vmatprep.subr.bf16.mxu0 0
        %1462 = vmatpush1.bf16.msra.mxu0 0
        %1463 = vmatprep.subr.bf16.mxu0 0
        %1464 = vmatpush1.bf16.msra.mxu0 0
        %1465 = vmatprep.subr.bf16.mxu0 0
        %1466 = vmatpush1.bf16.msra.mxu0 0
        %1467 = vmatprep.subr.bf16.mxu0 0
        %1468 = vmatpush1.bf16.msra.mxu0 0
        %1469 = vmatprep.subr.bf16.mxu0 0
        %1470 = vmatpush1.bf16.msra.mxu0 0
        %1471 = vmatprep.subr.bf16.mxu0 0
        %1472 = vmatpush1.bf16.msra.mxu0 0
        %1473 = vmatprep.subr.bf16.mxu0 0
        %1474 = vmatpush1.bf16.msra.mxu0 0
        %1475 = vmatprep.subr.bf16.mxu0 0
        %1476 = vmatpush1.bf16.msra.mxu0 0
        %1477 = vmatprep.subr.bf16.mxu0 0
        %1478 = vmatpush1.bf16.msra.mxu0 0
        %1479 = vmatprep.subr.bf16.mxu0 0
        %1480 = vmatpush1.bf16.msra.mxu0 0
        %1481 = vmatprep.subr.bf16.mxu0 0
        %1482 = vmatpush1.bf16.msra.mxu0 0
        %1483 = vmatprep.subr.bf16.mxu0 0
        %1484 = vmatpush1.bf16.msra.mxu0 0
        %1485 = vmatprep.subr.bf16.mxu0 0
        %1486 = vmatpush1.bf16.msra.mxu0 0
        %1487 = vmatprep.subr.bf16.mxu0 0
        %1488 = vmatpush1.bf16.msra.mxu0 0
        %1489 = vmatprep.mubr.bf16.mxu0 0
        %1490 = vmatmul.mubr.bf16.gmra.mrb[0].mxu0 %v697
        %v1491 = vpop.f32.mrb[0].mxu0
        %v1492 = vadd.f32 0.0, %v1491
        %v1493 = vpop.f32.mrb[0].mxu0
        %v1494 = vpop.f32.mrb[0].mxu0
        %v1495 = vadd.f32 0.0, %v1494
        %v1496 = vpop.f32.mrb[0].mxu0
        %1497 = vmatprep.mubr.bf16.mxu0 0
        %1498 = vmatmul.mubr.bf16.gmra.mrb[0].mxu0 %v700
        %v1499 = vpop.f32.mrb[0].mxu0
        %v1500 = vadd.f32 0.0, %v1499
        %v1501 = vpop.f32.mrb[0].mxu0
        %v1502 = vpop.f32.mrb[0].mxu0
        %v1503 = vadd.f32 0.0, %v1502
        %v1504 = vpop.f32.mrb[0].mxu0
        %1505 = vmatprep.mubr.bf16.mxu0 0
        %1506 = vmatmul.mubr.bf16.gmra.mrb[0].mxu0 %v703
        %v1507 = vpop.f32.mrb[0].mxu0
        %v1508 = vadd.f32 0.0, %v1507
        %v1509 = vpop.f32.mrb[0].mxu0
        %v1510 = vpop.f32.mrb[0].mxu0
        %v1511 = vadd.f32 0.0, %v1510
        %v1512 = vpop.f32.mrb[0].mxu0
        %1513 = vmatprep.mubr.bf16.mxu0 0
        %1514 = vmatmul.mubr.bf16.gmra.mrb[0].mxu0 %v706
        %v1515 = vpop.f32.mrb[0].mxu0
        %v1516 = vadd.f32 0.0, %v1515
        %v1517 = vpop.f32.mrb[0].mxu0
        %v1518 = vpop.f32.mrb[0].mxu0
        %v1519 = vadd.f32 0.0, %v1518
        %v1520 = vpop.f32.mrb[0].mxu0
        %1521 = vdwg.mxu0
        %v1522 = vadd.f32 %v1449, %v1492
        %v1523 = vadd.f32 %v1450, %v1495
        %v1524 = vadd.f32 %v1451, %v1500
        %v1525 = vadd.f32 %v1452, %v1503
        %v1526 = vadd.f32 %v1453, %v1508
        %v1527 = vadd.f32 %v1454, %v1511
        %v1528 = vadd.f32 %v1455, %v1516
        %v1529 = vadd.f32 %v1456, %v1519
        %1530 = vrot.lane.b32.xlu0 %v496, 116
        %v1531 = vpop.permute.xlu0 %1530
        %1532 = vrot.lane.b32.xlu0 %v497, 116
        %v1533 = vpop.permute.xlu0 %1532
        %1534 = vrot.lane.b32.xlu0 %v498, 116
        %v1535 = vpop.permute.xlu0 %1534
        %1536 = vrot.lane.b32.xlu0 %v499, 116
        %v1537 = vpop.permute.xlu0 %1536
        %v1539 = vsel %vm209, %v1531, 0
        %v1542 = vsel %vm209, %v1533, 0
        %v1545 = vsel %vm209, %v1535, 0
        %v1548 = vsel %vm209, %v1537, 0
        %1550 = vmatprep.subr.bf16.mxu0 0
        %1551 = vmatpush1.bf16.msra.mxu0 %v611
        %1552 = vmatprep.subr.bf16.mxu0 0
        %1553 = vmatpush1.bf16.msra.mxu0 0
        %1554 = vmatprep.subr.bf16.mxu0 0
        %1555 = vmatpush1.bf16.msra.mxu0 0
        %1556 = vmatprep.subr.bf16.mxu0 0
        %1557 = vmatpush1.bf16.msra.mxu0 0
        %1558 = vmatprep.subr.bf16.mxu0 0
        %1559 = vmatpush1.bf16.msra.mxu0 0
        %1560 = vmatprep.subr.bf16.mxu0 0
        %1561 = vmatpush1.bf16.msra.mxu0 0
        %1562 = vmatprep.subr.bf16.mxu0 0
        %1563 = vmatpush1.bf16.msra.mxu0 0
        %1564 = vmatprep.subr.bf16.mxu0 0
        %1565 = vmatpush1.bf16.msra.mxu0 0
        %1566 = vmatprep.subr.bf16.mxu0 0
        %1567 = vmatpush1.bf16.msra.mxu0 0
        %1568 = vmatprep.subr.bf16.mxu0 0
        %1569 = vmatpush1.bf16.msra.mxu0 0
        %1570 = vmatprep.subr.bf16.mxu0 0
        %1571 = vmatpush1.bf16.msra.mxu0 0
        %1572 = vmatprep.subr.bf16.mxu0 0
        %1573 = vmatpush1.bf16.msra.mxu0 0
        %1574 = vmatprep.subr.bf16.mxu0 0
        %1575 = vmatpush1.bf16.msra.mxu0 0
        %1576 = vmatprep.subr.bf16.mxu0 0
        %1577 = vmatpush1.bf16.msra.mxu0 0
        %1578 = vmatprep.subr.bf16.mxu0 0
        %1579 = vmatpush1.bf16.msra.mxu0 0
        %1580 = vmatprep.subr.bf16.mxu0 0
        %1581 = vmatpush1.bf16.msra.mxu0 0
        %1582 = vmatprep.mubr.bf16.mxu0 0
        %1583 = vmatmul.mubr.bf16.gmra.mrb[0].mxu0 %v1539
        %v1584 = vpop.f32.mrb[0].mxu0
        %v1585 = vadd.f32 0.0, %v1584
        %v1586 = vpop.f32.mrb[0].mxu0
        %v1587 = vpop.f32.mrb[0].mxu0
        %v1588 = vadd.f32 0.0, %v1587
        %v1589 = vpop.f32.mrb[0].mxu0
        %1590 = vmatprep.mubr.bf16.mxu0 0
        %1591 = vmatmul.mubr.bf16.gmra.mrb[0].mxu0 %v1542
        %v1592 = vpop.f32.mrb[0].mxu0
        %v1593 = vadd.f32 0.0, %v1592
        %v1594 = vpop.f32.mrb[0].mxu0
        %v1595 = vpop.f32.mrb[0].mxu0
        %v1596 = vadd.f32 0.0, %v1595
        %v1597 = vpop.f32.mrb[0].mxu0
        %1598 = vmatprep.mubr.bf16.mxu0 0
        %1599 = vmatmul.mubr.bf16.gmra.mrb[0].mxu0 %v1545
        %v1600 = vpop.f32.mrb[0].mxu0
        %v1601 = vadd.f32 0.0, %v1600
        %v1602 = vpop.f32.mrb[0].mxu0
        %v1603 = vpop.f32.mrb[0].mxu0
        %v1604 = vadd.f32 0.0, %v1603
        %v1605 = vpop.f32.mrb[0].mxu0
        %1606 = vmatprep.mubr.bf16.mxu0 0
        %1607 = vmatmul.mubr.bf16.gmra.mrb[0].mxu0 %v1548
        %v1608 = vpop.f32.mrb[0].mxu0
        %v1609 = vadd.f32 0.0, %v1608
        %v1610 = vpop.f32.mrb[0].mxu0
        %v1611 = vpop.f32.mrb[0].mxu0
        %v1612 = vadd.f32 0.0, %v1611
        %v1613 = vpop.f32.mrb[0].mxu0
        %1614 = vdwg.mxu0
        %v1615 = vadd.f32 %v1522, %v1585
        %v1616 = vadd.f32 %v1523, %v1588
        %v1617 = vadd.f32 %v1524, %v1593
        %v1618 = vadd.f32 %v1525, %v1596
        %v1619 = vadd.f32 %v1526, %v1601
        %v1620 = vadd.f32 %v1527, %v1604
        %v1621 = vadd.f32 %v1528, %v1609
        %v1622 = vadd.f32 %v1529, %v1612
        %v1623 = vld [vmem:[%s469] sm:$0xf]
        %v1624 = vld [vmem:[%s469 + $0x4] sm:$0xf]
        %v1625 = vld [vmem:[%s469 + $0x8] sm:$0x1]
        %v1626 = vld [vmem:[%s469 + $0x30] sm:$0xf]
        %v1627 = vld [vmem:[%s469 + $0x34] sm:$0xf]
        %v1628 = vld [vmem:[%s469 + $0x38] sm:$0x1]
        %v1629 = vld [vmem:[%s469 + $0x60] sm:$0xf]
        %v1630 = vld [vmem:[%s469 + $0x64] sm:$0xf]
        %v1631 = vld [vmem:[%s469 + $0x68] sm:$0x1]
        %v1632 = vld [vmem:[%s469 + $0x90] sm:$0xf]
        %v1633 = vld [vmem:[%s469 + $0x94] sm:$0xf]
        %v1634 = vld [vmem:[%s469 + $0x98] sm:$0x1]
        %v1636 = vshrl.u32 %v1623, 16
        %v1638 = vrot.slane %v1636, 4
        %v1639 = vshll.u32 %v1623, 16
        %v1641 = vrot.slane %v1639, 5
        %v1642 = vor.u32 %v1638, %v1641
        %v1643 = vrot.slane %v1642, 4
        %v1645 = vshll.u32 %v1624, 16
        %v1647 = vrot.slane %v1645, 5
        %v1648 = vsel %vm1263, %v1643, %v1647
        %v1649 = vshrl.u32 %v1624, 16
        %v1651 = vrot.slane %v1649, 4
        %v1652 = vor.u32 %v1651, %v1647
        %v1653 = vrot.slane %v1652, 4
        %v1655 = vshll.u32 %v1625, 16
        %v1657 = vrot.slane %v1655, 5
        %v1658 = vsel %vm1263, %v1653, %v1657
        %v1660 = vshrl.u32 %v1626, 16
        %v1662 = vrot.slane %v1660, 4
        %v1663 = vshll.u32 %v1626, 16
        %v1665 = vrot.slane %v1663, 5
        %v1666 = vor.u32 %v1662, %v1665
        %v1667 = vrot.slane %v1666, 4
        %v1669 = vshll.u32 %v1627, 16
        %v1671 = vrot.slane %v1669, 5
        %v1672 = vsel %vm1263, %v1667, %v1671
        %v1673 = vshrl.u32 %v1627, 16
        %v1675 = vrot.slane %v1673, 4
        %v1676 = vor.u32 %v1675, %v1671
        %v1677 = vrot.slane %v1676, 4
        %v1679 = vshll.u32 %v1628, 16
        %v1681 = vrot.slane %v1679, 5
        %v1682 = vsel %vm1263, %v1677, %v1681
        %v1684 = vshrl.u32 %v1629, 16
        %v1686 = vrot.slane %v1684, 4
        %v1687 = vshll.u32 %v1629, 16
        %v1689 = vrot.slane %v1687, 5
        %v1690 = vor.u32 %v1686, %v1689
        %v1691 = vrot.slane %v1690, 4
        %v1693 = vshll.u32 %v1630, 16
        %v1695 = vrot.slane %v1693, 5
        %v1696 = vsel %vm1263, %v1691, %v1695
        %v1697 = vshrl.u32 %v1630, 16
        %v1699 = vrot.slane %v1697, 4
        %v1700 = vor.u32 %v1699, %v1695
        %v1701 = vrot.slane %v1700, 4
        %v1703 = vshll.u32 %v1631, 16
        %v1705 = vrot.slane %v1703, 5
        %v1706 = vsel %vm1263, %v1701, %v1705
        %v1708 = vshrl.u32 %v1632, 16
        %v1710 = vrot.slane %v1708, 4
        %v1711 = vshll.u32 %v1632, 16
        %v1713 = vrot.slane %v1711, 5
        %v1714 = vor.u32 %v1710, %v1713
        %v1715 = vrot.slane %v1714, 4
        %v1717 = vshll.u32 %v1633, 16
        %v1719 = vrot.slane %v1717, 5
        %v1720 = vsel %vm1263, %v1715, %v1719
        %v1721 = vshrl.u32 %v1633, 16
        %v1723 = vrot.slane %v1721, 4
        %v1724 = vor.u32 %v1723, %v1719
        %v1725 = vrot.slane %v1724, 4
        %v1727 = vshll.u32 %v1634, 16
        %v1729 = vrot.slane %v1727, 5
        %v1730 = vsel %vm1263, %v1725, %v1729
        %v1731 = vunpack.c.l.b16 %v1648
        %v1732 = vunpack.c.l.b16 %v1658
        %v1733 = vunpack.c.l.b16 %v1672
        %v1734 = vunpack.c.l.b16 %v1682
        %v1735 = vunpack.c.l.b16 %v1696
        %v1736 = vunpack.c.l.b16 %v1706
        %v1737 = vunpack.c.l.b16 %v1720
        %v1738 = vunpack.c.l.b16 %v1730
        %v1739 = vpack.c.b16 %v1732, %v1731
        %v1740 = vpack.c.b16 %v1734, %v1733
        %v1741 = vpack.c.b16 %v1736, %v1735
        %v1742 = vpack.c.b16 %v1738, %v1737
        %v1744 = vsel %vm209, %v1739, 0
        %v1747 = vsel %vm209, %v1740, 0
        %v1750 = vsel %vm209, %v1741, 0
        %v1753 = vsel %vm209, %v1742, 0
        %1755 = vmatprep.subr.bf16.mxu0 0
        %1756 = vmatpush1.bf16.msra.mxu0 %v709
        %1757 = vmatprep.subr.bf16.mxu0 0
        %1758 = vmatpush1.bf16.msra.mxu0 0
        %1759 = vmatprep.subr.bf16.mxu0 0
        %1760 = vmatpush1.bf16.msra.mxu0 0
        %1761 = vmatprep.subr.bf16.mxu0 0
        %1762 = vmatpush1.bf16.msra.mxu0 0
        %1763 = vmatprep.subr.bf16.mxu0 0
        %1764 = vmatpush1.bf16.msra.mxu0 0
        %1765 = vmatprep.subr.bf16.mxu0 0
        %1766 = vmatpush1.bf16.msra.mxu0 0
        %1767 = vmatprep.subr.bf16.mxu0 0
        %1768 = vmatpush1.bf16.msra.mxu0 0
        %1769 = vmatprep.subr.bf16.mxu0 0
        %1770 = vmatpush1.bf16.msra.mxu0 0
        %1771 = vmatprep.subr.bf16.mxu0 0
        %1772 = vmatpush1.bf16.msra.mxu0 0
        %1773 = vmatprep.subr.bf16.mxu0 0
        %1774 = vmatpush1.bf16.msra.mxu0 0
        %1775 = vmatprep.subr.bf16.mxu0 0
        %1776 = vmatpush1.bf16.msra.mxu0 0
        %1777 = vmatprep.subr.bf16.mxu0 0
        %1778 = vmatpush1.bf16.msra.mxu0 0
        %1779 = vmatprep.subr.bf16.mxu0 0
        %1780 = vmatpush1.bf16.msra.mxu0 0
        %1781 = vmatprep.subr.bf16.mxu0 0
        %1782 = vmatpush1.bf16.msra.mxu0 0
        %1783 = vmatprep.subr.bf16.mxu0 0
        %1784 = vmatpush1.bf16.msra.mxu0 0
        %1785 = vmatprep.subr.bf16.mxu0 0
        %1786 = vmatpush1.bf16.msra.mxu0 0
        %1787 = vmatprep.mubr.bf16.mxu0 0
        %1788 = vmatmul.mubr.bf16.gmra.mrb[0].mxu0 %v1744
        %v1789 = vpop.f32.mrb[0].mxu0
        %v1790 = vadd.f32 0.0, %v1789
        %v1791 = vpop.f32.mrb[0].mxu0
        %v1792 = vpop.f32.mrb[0].mxu0
        %v1793 = vadd.f32 0.0, %v1792
        %v1794 = vpop.f32.mrb[0].mxu0
        %1795 = vmatprep.mubr.bf16.mxu0 0
        %1796 = vmatmul.mubr.bf16.gmra.mrb[0].mxu0 %v1747
        %v1797 = vpop.f32.mrb[0].mxu0
        %v1798 = vadd.f32 0.0, %v1797
        %v1799 = vpop.f32.mrb[0].mxu0
        %v1800 = vpop.f32.mrb[0].mxu0
        %v1801 = vadd.f32 0.0, %v1800
        %v1802 = vpop.f32.mrb[0].mxu0
        %1803 = vmatprep.mubr.bf16.mxu0 0
        %1804 = vmatmul.mubr.bf16.gmra.mrb[0].mxu0 %v1750
        %v1805 = vpop.f32.mrb[0].mxu0
        %v1806 = vadd.f32 0.0, %v1805
        %v1807 = vpop.f32.mrb[0].mxu0
        %v1808 = vpop.f32.mrb[0].mxu0
        %v1809 = vadd.f32 0.0, %v1808
        %v1810 = vpop.f32.mrb[0].mxu0
        %1811 = vmatprep.mubr.bf16.mxu0 0
        %1812 = vmatmul.mubr.bf16.gmra.mrb[0].mxu0 %v1753
        %v1813 = vpop.f32.mrb[0].mxu0
        %v1814 = vadd.f32 0.0, %v1813
        %v1815 = vpop.f32.mrb[0].mxu0
        %v1816 = vpop.f32.mrb[0].mxu0
        %v1817 = vadd.f32 0.0, %v1816
        %v1818 = vpop.f32.mrb[0].mxu0
        %1819 = vdwg.mxu0
        %v1820 = vadd.f32 %v1615, %v1790
        %v1821 = vadd.f32 %v1616, %v1793
        %v1822 = vadd.f32 %v1617, %v1798
        %v1823 = vadd.f32 %v1618, %v1801
        %v1824 = vadd.f32 %v1619, %v1806
        %v1825 = vadd.f32 %v1620, %v1809
        %v1826 = vadd.f32 %v1621, %v1814
        %v1827 = vadd.f32 %v1622, %v1817
        %1828 = vmatprep.subr.bf16.mxu0 0
        %1829 = vmatpush1.bf16.msra.mxu0 %v828
        %1830 = vmatprep.subr.bf16.mxu0 0
        %1831 = vmatpush1.bf16.msra.mxu0 0
        %1832 = vmatprep.subr.bf16.mxu0 0
        %1833 = vmatpush1.bf16.msra.mxu0 0
        %1834 = vmatprep.subr.bf16.mxu0 0
        %1835 = vmatpush1.bf16.msra.mxu0 0
        %1836 = vmatprep.subr.bf16.mxu0 0
        %1837 = vmatpush1.bf16.msra.mxu0 0
        %1838 = vmatprep.subr.bf16.mxu0 0
        %1839 = vmatpush1.bf16.msra.mxu0 0
        %1840 = vmatprep.subr.bf16.mxu0 0
        %1841 = vmatpush1.bf16.msra.mxu0 0
        %1842 = vmatprep.subr.bf16.mxu0 0
        %1843 = vmatpush1.bf16.msra.mxu0 0
        %1844 = vmatprep.subr.bf16.mxu0 0
        %1845 = vmatpush1.bf16.msra.mxu0 0
        %1846 = vmatprep.subr.bf16.mxu0 0
        %1847 = vmatpush1.bf16.msra.mxu0 0
        %1848 = vmatprep.subr.bf16.mxu0 0
        %1849 = vmatpush1.bf16.msra.mxu0 0
        %1850 = vmatprep.subr.bf16.mxu0 0
        %1851 = vmatpush1.bf16.msra.mxu0 0
        %1852 = vmatprep.subr.bf16.mxu0 0
        %1853 = vmatpush1.bf16.msra.mxu0 0
        %1854 = vmatprep.subr.bf16.mxu0 0
        %1855 = vmatpush1.bf16.msra.mxu0 0
        %1856 = vmatprep.subr.bf16.mxu0 0
        %1857 = vmatpush1.bf16.msra.mxu0 0
        %1858 = vmatprep.subr.bf16.mxu0 0
        %1859 = vmatpush1.bf16.msra.mxu0 0
        %1860 = vmatprep.mubr.bf16.mxu0 0
        %1861 = vmatmul.mubr.bf16.gmra.mrb[0].mxu0 %v1012
        %v1862 = vpop.f32.mrb[0].mxu0
        %v1863 = vadd.f32 0.0, %v1862
        %v1864 = vpop.f32.mrb[0].mxu0
        %v1865 = vpop.f32.mrb[0].mxu0
        %v1866 = vadd.f32 0.0, %v1865
        %v1867 = vpop.f32.mrb[0].mxu0
        %1868 = vmatprep.mubr.bf16.mxu0 0
        %1869 = vmatmul.mubr.bf16.gmra.mrb[0].mxu0 %v1015
        %v1870 = vpop.f32.mrb[0].mxu0
        %v1871 = vadd.f32 0.0, %v1870
        %v1872 = vpop.f32.mrb[0].mxu0
        %v1873 = vpop.f32.mrb[0].mxu0
        %v1874 = vadd.f32 0.0, %v1873
        %v1875 = vpop.f32.mrb[0].mxu0
        %1876 = vmatprep.mubr.bf16.mxu0 0
        %1877 = vmatmul.mubr.bf16.gmra.mrb[0].mxu0 %v1018
        %v1878 = vpop.f32.mrb[0].mxu0
        %v1879 = vadd.f32 0.0, %v1878
        %v1880 = vpop.f32.mrb[0].mxu0
        %v1881 = vpop.f32.mrb[0].mxu0
        %v1882 = vadd.f32 0.0, %v1881
        %v1883 = vpop.f32.mrb[0].mxu0
        %1884 = vmatprep.mubr.bf16.mxu0 0
        %1885 = vmatmul.mubr.bf16.gmra.mrb[0].mxu0 %v1021
        %v1886 = vpop.f32.mrb[0].mxu0
        %v1887 = vadd.f32 0.0, %v1886
        %v1888 = vpop.f32.mrb[0].mxu0
        %v1889 = vpop.f32.mrb[0].mxu0
        %v1890 = vadd.f32 0.0, %v1889
        %v1891 = vpop.f32.mrb[0].mxu0
        %1892 = vdwg.mxu0
        %v1893 = vadd.f32 %v1820, %v1863
        %v1894 = vadd.f32 %v1821, %v1866
        %v1895 = vadd.f32 %v1822, %v1871
        %v1896 = vadd.f32 %v1823, %v1874
        %v1897 = vadd.f32 %v1824, %v1879
        %v1898 = vadd.f32 %v1825, %v1882
        %v1899 = vadd.f32 %v1826, %v1887
        %v1900 = vadd.f32 %v1827, %v1890
        %1901 = vrot.lane.b32.xlu0 %v811, 116
        %v1902 = vpop.permute.xlu0 %1901
        %1903 = vrot.lane.b32.xlu0 %v812, 116
        %v1904 = vpop.permute.xlu0 %1903
        %1905 = vrot.lane.b32.xlu0 %v813, 116
        %v1906 = vpop.permute.xlu0 %1905
        %1907 = vrot.lane.b32.xlu0 %v814, 116
        %v1908 = vpop.permute.xlu0 %1907
        %v1910 = vsel %vm209, %v1902, 0
        %v1913 = vsel %vm209, %v1904, 0
        %v1916 = vsel %vm209, %v1906, 0
        %v1919 = vsel %vm209, %v1908, 0
        %1921 = vmatprep.subr.bf16.mxu0 0
        %1922 = vmatpush1.bf16.msra.mxu0 %v926
        %1923 = vmatprep.subr.bf16.mxu0 0
        %1924 = vmatpush1.bf16.msra.mxu0 0
        %1925 = vmatprep.subr.bf16.mxu0 0
        %1926 = vmatpush1.bf16.msra.mxu0 0
        %1927 = vmatprep.subr.bf16.mxu0 0
        %1928 = vmatpush1.bf16.msra.mxu0 0
        %1929 = vmatprep.subr.bf16.mxu0 0
        %1930 = vmatpush1.bf16.msra.mxu0 0
        %1931 = vmatprep.subr.bf16.mxu0 0
        %1932 = vmatpush1.bf16.msra.mxu0 0
        %1933 = vmatprep.subr.bf16.mxu0 0
        %1934 = vmatpush1.bf16.msra.mxu0 0
        %1935 = vmatprep.subr.bf16.mxu0 0
        %1936 = vmatpush1.bf16.msra.mxu0 0
        %1937 = vmatprep.subr.bf16.mxu0 0
        %1938 = vmatpush1.bf16.msra.mxu0 0
        %1939 = vmatprep.subr.bf16.mxu0 0
        %1940 = vmatpush1.bf16.msra.mxu0 0
        %1941 = vmatprep.subr.bf16.mxu0 0
        %1942 = vmatpush1.bf16.msra.mxu0 0
        %1943 = vmatprep.subr.bf16.mxu0 0
        %1944 = vmatpush1.bf16.msra.mxu0 0
        %1945 = vmatprep.subr.bf16.mxu0 0
        %1946 = vmatpush1.bf16.msra.mxu0 0
        %1947 = vmatprep.subr.bf16.mxu0 0
        %1948 = vmatpush1.bf16.msra.mxu0 0
        %1949 = vmatprep.subr.bf16.mxu0 0
        %1950 = vmatpush1.bf16.msra.mxu0 0
        %1951 = vmatprep.subr.bf16.mxu0 0
        %1952 = vmatpush1.bf16.msra.mxu0 0
        %1953 = vmatprep.mubr.bf16.mxu0 0
        %1954 = vmatmul.mubr.bf16.gmra.mrb[0].mxu0 %v1910
        %v1955 = vpop.f32.mrb[0].mxu0
        %v1956 = vadd.f32 0.0, %v1955
        %v1957 = vpop.f32.mrb[0].mxu0
        %v1958 = vpop.f32.mrb[0].mxu0
        %v1959 = vadd.f32 0.0, %v1958
        %v1960 = vpop.f32.mrb[0].mxu0
        %1961 = vmatprep.mubr.bf16.mxu0 0
        %1962 = vmatmul.mubr.bf16.gmra.mrb[0].mxu0 %v1913
        %v1963 = vpop.f32.mrb[0].mxu0
        %v1964 = vadd.f32 0.0, %v1963
        %v1965 = vpop.f32.mrb[0].mxu0
        %v1966 = vpop.f32.mrb[0].mxu0
        %v1967 = vadd.f32 0.0, %v1966
        %v1968 = vpop.f32.mrb[0].mxu0
        %1969 = vmatprep.mubr.bf16.mxu0 0
        %1970 = vmatmul.mubr.bf16.gmra.mrb[0].mxu0 %v1916
        %v1971 = vpop.f32.mrb[0].mxu0
        %v1972 = vadd.f32 0.0, %v1971
        %v1973 = vpop.f32.mrb[0].mxu0
        %v1974 = vpop.f32.mrb[0].mxu0
        %v1975 = vadd.f32 0.0, %v1974
        %v1976 = vpop.f32.mrb[0].mxu0
        %1977 = vmatprep.mubr.bf16.mxu0 0
        %1978 = vmatmul.mubr.bf16.gmra.mrb[0].mxu0 %v1919
        %v1979 = vpop.f32.mrb[0].mxu0
        %v1980 = vadd.f32 0.0, %v1979
        %v1981 = vpop.f32.mrb[0].mxu0
        %v1982 = vpop.f32.mrb[0].mxu0
        %v1983 = vadd.f32 0.0, %v1982
        %v1984 = vpop.f32.mrb[0].mxu0
        %1985 = vdwg.mxu0
        %v1986 = vadd.f32 %v1893, %v1956
        %v1987 = vadd.f32 %v1894, %v1959
        %v1988 = vadd.f32 %v1895, %v1964
        %v1989 = vadd.f32 %v1896, %v1967
        %v1990 = vadd.f32 %v1897, %v1972
        %v1991 = vadd.f32 %v1898, %v1975
        %v1992 = vadd.f32 %v1899, %v1980
        %v1993 = vadd.f32 %v1900, %v1983
        %v1994 = vld [vmem:[%s784] sm:$0xf]
        %v1995 = vld [vmem:[%s784 + $0x4] sm:$0xf]
        %v1996 = vld [vmem:[%s784 + $0x8] sm:$0x1]
        %v1997 = vld [vmem:[%s784 + $0x30] sm:$0xf]
        %v1998 = vld [vmem:[%s784 + $0x34] sm:$0xf]
        %v1999 = vld [vmem:[%s784 + $0x38] sm:$0x1]
        %v2000 = vld [vmem:[%s784 + $0x60] sm:$0xf]
        %v2001 = vld [vmem:[%s784 + $0x64] sm:$0xf]
        %v2002 = vld [vmem:[%s784 + $0x68] sm:$0x1]
        %v2003 = vld [vmem:[%s784 + $0x90] sm:$0xf]
        %v2004 = vld [vmem:[%s784 + $0x94] sm:$0xf]
        %v2005 = vld [vmem:[%s784 + $0x98] sm:$0x1]
        %v2007 = vshrl.u32 %v1994, 16
        %v2009 = vrot.slane %v2007, 4
        %v2010 = vshll.u32 %v1994, 16
        %v2012 = vrot.slane %v2010, 5
        %v2013 = vor.u32 %v2009, %v2012
        %v2014 = vrot.slane %v2013, 4
        %v2016 = vshll.u32 %v1995, 16
        %v2018 = vrot.slane %v2016, 5
        %v2019 = vsel %vm1263, %v2014, %v2018
        %v2020 = vshrl.u32 %v1995, 16
        %v2022 = vrot.slane %v2020, 4
        %v2023 = vor.u32 %v2022, %v2018
        %v2024 = vrot.slane %v2023, 4
        %v2026 = vshll.u32 %v1996, 16
        %v2028 = vrot.slane %v2026, 5
        %v2029 = vsel %vm1263, %v2024, %v2028
        %v2031 = vshrl.u32 %v1997, 16
        %v2033 = vrot.slane %v2031, 4
        %v2034 = vshll.u32 %v1997, 16
        %v2036 = vrot.slane %v2034, 5
        %v2037 = vor.u32 %v2033, %v2036
        %v2038 = vrot.slane %v2037, 4
        %v2040 = vshll.u32 %v1998, 16
        %v2042 = vrot.slane %v2040, 5
        %v2043 = vsel %vm1263, %v2038, %v2042
        %v2044 = vshrl.u32 %v1998, 16
        %v2046 = vrot.slane %v2044, 4
        %v2047 = vor.u32 %v2046, %v2042
        %v2048 = vrot.slane %v2047, 4
        %v2050 = vshll.u32 %v1999, 16
        %v2052 = vrot.slane %v2050, 5
        %v2053 = vsel %vm1263, %v2048, %v2052
        %v2055 = vshrl.u32 %v2000, 16
        %v2057 = vrot.slane %v2055, 4
        %v2058 = vshll.u32 %v2000, 16
        %v2060 = vrot.slane %v2058, 5
        %v2061 = vor.u32 %v2057, %v2060
        %v2062 = vrot.slane %v2061, 4
        %v2064 = vshll.u32 %v2001, 16
        %v2066 = vrot.slane %v2064, 5
        %v2067 = vsel %vm1263, %v2062, %v2066
        %v2068 = vshrl.u32 %v2001, 16
        %v2070 = vrot.slane %v2068, 4
        %v2071 = vor.u32 %v2070, %v2066
        %v2072 = vrot.slane %v2071, 4
        %v2074 = vshll.u32 %v2002, 16
        %v2076 = vrot.slane %v2074, 5
        %v2077 = vsel %vm1263, %v2072, %v2076
        %v2079 = vshrl.u32 %v2003, 16
        %v2081 = vrot.slane %v2079, 4
        %v2082 = vshll.u32 %v2003, 16
        %v2084 = vrot.slane %v2082, 5
        %v2085 = vor.u32 %v2081, %v2084
        %v2086 = vrot.slane %v2085, 4
        %v2088 = vshll.u32 %v2004, 16
        %v2090 = vrot.slane %v2088, 5
        %v2091 = vsel %vm1263, %v2086, %v2090
        %v2092 = vshrl.u32 %v2004, 16
        %v2094 = vrot.slane %v2092, 4
        %v2095 = vor.u32 %v2094, %v2090
        %v2096 = vrot.slane %v2095, 4
        %v2098 = vshll.u32 %v2005, 16
        %v2100 = vrot.slane %v2098, 5
        %v2101 = vsel %vm1263, %v2096, %v2100
        %v2102 = vunpack.c.l.b16 %v2019
        %v2103 = vunpack.c.l.b16 %v2029
        %v2104 = vunpack.c.l.b16 %v2043
        %v2105 = vunpack.c.l.b16 %v2053
        %v2106 = vunpack.c.l.b16 %v2067
        %v2107 = vunpack.c.l.b16 %v2077
        %v2108 = vunpack.c.l.b16 %v2091
        %v2109 = vunpack.c.l.b16 %v2101
        %v2110 = vpack.c.b16 %v2103, %v2102
        %v2111 = vpack.c.b16 %v2105, %v2104
        %v2112 = vpack.c.b16 %v2107, %v2106
        %v2113 = vpack.c.b16 %v2109, %v2108
        %v2115 = vsel %vm209, %v2110, 0
        %v2118 = vsel %vm209, %v2111, 0
        %v2121 = vsel %vm209, %v2112, 0
        %v2124 = vsel %vm209, %v2113, 0
        %2126 = vmatprep.subr.bf16.mxu0 0
        %2127 = vmatpush1.bf16.msra.mxu0 %v1024
        %2128 = vmatprep.subr.bf16.mxu0 0
        %2129 = vmatpush1.bf16.msra.mxu0 0
        %2130 = vmatprep.subr.bf16.mxu0 0
        %2131 = vmatpush1.bf16.msra.mxu0 0
        %2132 = vmatprep.subr.bf16.mxu0 0
        %2133 = vmatpush1.bf16.msra.mxu0 0
        %2134 = vmatprep.subr.bf16.mxu0 0
        %2135 = vmatpush1.bf16.msra.mxu0 0
        %2136 = vmatprep.subr.bf16.mxu0 0
        %2137 = vmatpush1.bf16.msra.mxu0 0
        %2138 = vmatprep.subr.bf16.mxu0 0
        %2139 = vmatpush1.bf16.msra.mxu0 0
        %2140 = vmatprep.subr.bf16.mxu0 0
        %2141 = vmatpush1.bf16.msra.mxu0 0
        %2142 = vmatprep.subr.bf16.mxu0 0
        %2143 = vmatpush1.bf16.msra.mxu0 0
        %2144 = vmatprep.subr.bf16.mxu0 0
        %2145 = vmatpush1.bf16.msra.mxu0 0
        %2146 = vmatprep.subr.bf16.mxu0 0
        %2147 = vmatpush1.bf16.msra.mxu0 0
        %2148 = vmatprep.subr.bf16.mxu0 0
        %2149 = vmatpush1.bf16.msra.mxu0 0
        %2150 = vmatprep.subr.bf16.mxu0 0
        %2151 = vmatpush1.bf16.msra.mxu0 0
        %2152 = vmatprep.subr.bf16.mxu0 0
        %2153 = vmatpush1.bf16.msra.mxu0 0
        %2154 = vmatprep.subr.bf16.mxu0 0
        %2155 = vmatpush1.bf16.msra.mxu0 0
        %2156 = vmatprep.subr.bf16.mxu0 0
        %2157 = vmatpush1.bf16.msra.mxu0 0
        %2158 = vmatprep.mubr.bf16.mxu0 0
        %2159 = vmatmul.mubr.bf16.gmra.mrb[0].mxu0 %v2115
        %v2160 = vpop.f32.mrb[0].mxu0
        %v2161 = vadd.f32 0.0, %v2160
        %v2162 = vpop.f32.mrb[0].mxu0
        %v2163 = vpop.f32.mrb[0].mxu0
        %v2164 = vadd.f32 0.0, %v2163
        %v2165 = vpop.f32.mrb[0].mxu0
        %2166 = vmatprep.mubr.bf16.mxu0 0
        %2167 = vmatmul.mubr.bf16.gmra.mrb[0].mxu0 %v2118
        %v2168 = vpop.f32.mrb[0].mxu0
        %v2169 = vadd.f32 0.0, %v2168
        %v2170 = vpop.f32.mrb[0].mxu0
        %v2171 = vpop.f32.mrb[0].mxu0
        %v2172 = vadd.f32 0.0, %v2171
        %v2173 = vpop.f32.mrb[0].mxu0
        %2174 = vmatprep.mubr.bf16.mxu0 0
        %2175 = vmatmul.mubr.bf16.gmra.mrb[0].mxu0 %v2121
        %v2176 = vpop.f32.mrb[0].mxu0
        %v2177 = vadd.f32 0.0, %v2176
        %v2178 = vpop.f32.mrb[0].mxu0
        %v2179 = vpop.f32.mrb[0].mxu0
        %v2180 = vadd.f32 0.0, %v2179
        %v2181 = vpop.f32.mrb[0].mxu0
        %2182 = vmatprep.mubr.bf16.mxu0 0
        %2183 = vmatmul.mubr.bf16.gmra.mrb[0].mxu0 %v2124
        %v2184 = vpop.f32.mrb[0].mxu0
        %v2185 = vadd.f32 0.0, %v2184
        %v2186 = vpop.f32.mrb[0].mxu0
        %v2187 = vpop.f32.mrb[0].mxu0
        %v2188 = vadd.f32 0.0, %v2187
        %v2189 = vpop.f32.mrb[0].mxu0
        %2190 = vdwg.mxu0
        %v2191 = vadd.f32 %v1986, %v2161
        %v2192 = vadd.f32 %v1987, %v2164
        %v2193 = vadd.f32 %v1988, %v2169
        %v2194 = vadd.f32 %v1989, %v2172
        %v2195 = vadd.f32 %v1990, %v2177
        %v2196 = vadd.f32 %v1991, %v2180
        %v2197 = vadd.f32 %v1992, %v2185
        %v2198 = vadd.f32 %v1993, %v2188
        %v2199 = vmax.f32 %v1091, %v2191
        %v2200 = vmax.f32 %v1092, %v2192
        %v2201 = vmax.f32 %v1093, %v2193
        %v2202 = vmax.f32 %v1094, %v2194
        %v2203 = vmax.f32 %v1095, %v2195
        %v2204 = vmax.f32 %v1096, %v2196
        %v2205 = vmax.f32 %v1097, %v2197
        %v2206 = vmax.f32 %v1098, %v2198
        %2207 = vmatprep.subr.bf16.mxu0 0
        %2208 = vmatpush1.bf16.msra.mxu0 %v224
        %2209 = vmatprep.subr.bf16.mxu0 0
        %2210 = vmatpush1.bf16.msra.mxu0 0
        %2211 = vmatprep.subr.bf16.mxu0 0
        %2212 = vmatpush1.bf16.msra.mxu0 0
        %2213 = vmatprep.subr.bf16.mxu0 0
        %2214 = vmatpush1.bf16.msra.mxu0 0
        %2215 = vmatprep.subr.bf16.mxu0 0
        %2216 = vmatpush1.bf16.msra.mxu0 0
        %2217 = vmatprep.subr.bf16.mxu0 0
        %2218 = vmatpush1.bf16.msra.mxu0 0
        %2219 = vmatprep.subr.bf16.mxu0 0
        %2220 = vmatpush1.bf16.msra.mxu0 0
        %2221 = vmatprep.subr.bf16.mxu0 0
        %2222 = vmatpush1.bf16.msra.mxu0 0
        %2223 = vmatprep.subr.bf16.mxu0 0
        %2224 = vmatpush1.bf16.msra.mxu0 0
        %2225 = vmatprep.subr.bf16.mxu0 0
        %2226 = vmatpush1.bf16.msra.mxu0 0
        %2227 = vmatprep.subr.bf16.mxu0 0
        %2228 = vmatpush1.bf16.msra.mxu0 0
        %2229 = vmatprep.subr.bf16.mxu0 0
        %2230 = vmatpush1.bf16.msra.mxu0 0
        %2231 = vmatprep.subr.bf16.mxu0 0
        %2232 = vmatpush1.bf16.msra.mxu0 0
        %2233 = vmatprep.subr.bf16.mxu0 0
        %2234 = vmatpush1.bf16.msra.mxu0 0
        %2235 = vmatprep.subr.bf16.mxu0 0
        %2236 = vmatpush1.bf16.msra.mxu0 0
        %2237 = vmatprep.subr.bf16.mxu0 0
        %2238 = vmatpush1.bf16.msra.mxu0 0
        %2239 = vmatprep.mubr.bf16.mxu0 0
        %2240 = vmatmul.mubr.bf16.gmra.mrb[0].mxu0 %v914
        %v2241 = vpop.f32.mrb[0].mxu0
        %v2242 = vadd.f32 0.0, %v2241
        %v2243 = vpop.f32.mrb[0].mxu0
        %v2244 = vpop.f32.mrb[0].mxu0
        %v2245 = vadd.f32 0.0, %v2244
        %v2246 = vpop.f32.mrb[0].mxu0
        %2247 = vmatprep.mubr.bf16.mxu0 0
        %2248 = vmatmul.mubr.bf16.gmra.mrb[0].mxu0 %v917
        %v2249 = vpop.f32.mrb[0].mxu0
        %v2250 = vadd.f32 0.0, %v2249
        %v2251 = vpop.f32.mrb[0].mxu0
        %v2252 = vpop.f32.mrb[0].mxu0
        %v2253 = vadd.f32 0.0, %v2252
        %v2254 = vpop.f32.mrb[0].mxu0
        %2255 = vmatprep.mubr.bf16.mxu0 0
        %2256 = vmatmul.mubr.bf16.gmra.mrb[0].mxu0 %v920
        %v2257 = vpop.f32.mrb[0].mxu0
        %v2258 = vadd.f32 0.0, %v2257
        %v2259 = vpop.f32.mrb[0].mxu0
        %v2260 = vpop.f32.mrb[0].mxu0
        %v2261 = vadd.f32 0.0, %v2260
        %v2262 = vpop.f32.mrb[0].mxu0
        %2263 = vmatprep.mubr.bf16.mxu0 0
        %2264 = vmatmul.mubr.bf16.gmra.mrb[0].mxu0 %v923
        %v2265 = vpop.f32.mrb[0].mxu0
        %v2266 = vadd.f32 0.0, %v2265
        %v2267 = vpop.f32.mrb[0].mxu0
        %v2268 = vpop.f32.mrb[0].mxu0
        %v2269 = vadd.f32 0.0, %v2268
        %v2270 = vpop.f32.mrb[0].mxu0
        %2271 = vdwg.mxu0
        %2272 = vmatprep.subr.bf16.mxu0 0
        %2273 = vmatpush1.bf16.msra.mxu0 %v304
        %2274 = vmatprep.subr.bf16.mxu0 0
        %2275 = vmatpush1.bf16.msra.mxu0 0
        %2276 = vmatprep.subr.bf16.mxu0 0
        %2277 = vmatpush1.bf16.msra.mxu0 0
        %2278 = vmatprep.subr.bf16.mxu0 0
        %2279 = vmatpush1.bf16.msra.mxu0 0
        %2280 = vmatprep.subr.bf16.mxu0 0
        %2281 = vmatpush1.bf16.msra.mxu0 0
        %2282 = vmatprep.subr.bf16.mxu0 0
        %2283 = vmatpush1.bf16.msra.mxu0 0
        %2284 = vmatprep.subr.bf16.mxu0 0
        %2285 = vmatpush1.bf16.msra.mxu0 0
        %2286 = vmatprep.subr.bf16.mxu0 0
        %2287 = vmatpush1.bf16.msra.mxu0 0
        %2288 = vmatprep.subr.bf16.mxu0 0
        %2289 = vmatpush1.bf16.msra.mxu0 0
        %2290 = vmatprep.subr.bf16.mxu0 0
        %2291 = vmatpush1.bf16.msra.mxu0 0
        %2292 = vmatprep.subr.bf16.mxu0 0
        %2293 = vmatpush1.bf16.msra.mxu0 0
        %2294 = vmatprep.subr.bf16.mxu0 0
        %2295 = vmatpush1.bf16.msra.mxu0 0
        %2296 = vmatprep.subr.bf16.mxu0 0
        %2297 = vmatpush1.bf16.msra.mxu0 0
        %2298 = vmatprep.subr.bf16.mxu0 0
        %2299 = vmatpush1.bf16.msra.mxu0 0
        %2300 = vmatprep.subr.bf16.mxu0 0
        %2301 = vmatpush1.bf16.msra.mxu0 0
        %2302 = vmatprep.subr.bf16.mxu0 0
        %2303 = vmatpush1.bf16.msra.mxu0 0
        %2304 = vmatprep.mubr.bf16.mxu0 0
        %2305 = vmatmul.mubr.bf16.gmra.mrb[0].mxu0 %v816
        %v2306 = vpop.f32.mrb[0].mxu0
        %v2307 = vadd.f32 %v2242, %v2306
        %v2308 = vpop.f32.mrb[0].mxu0
        %v2309 = vpop.f32.mrb[0].mxu0
        %v2310 = vadd.f32 %v2245, %v2309
        %v2311 = vpop.f32.mrb[0].mxu0
        %2312 = vmatprep.mubr.bf16.mxu0 0
        %2313 = vmatmul.mubr.bf16.gmra.mrb[0].mxu0 %v819
        %v2314 = vpop.f32.mrb[0].mxu0
        %v2315 = vadd.f32 %v2250, %v2314
        %v2316 = vpop.f32.mrb[0].mxu0
        %v2317 = vpop.f32.mrb[0].mxu0
        %v2318 = vadd.f32 %v2253, %v2317
        %v2319 = vpop.f32.mrb[0].mxu0
        %2320 = vmatprep.mubr.bf16.mxu0 0
        %2321 = vmatmul.mubr.bf16.gmra.mrb[0].mxu0 %v822
        %v2322 = vpop.f32.mrb[0].mxu0
        %v2323 = vadd.f32 %v2258, %v2322
        %v2324 = vpop.f32.mrb[0].mxu0
        %v2325 = vpop.f32.mrb[0].mxu0
        %v2326 = vadd.f32 %v2261, %v2325
        %v2327 = vpop.f32.mrb[0].mxu0
        %2328 = vmatprep.mubr.bf16.mxu0 0
        %2329 = vmatmul.mubr.bf16.gmra.mrb[0].mxu0 %v825
        %v2330 = vpop.f32.mrb[0].mxu0
        %v2331 = vadd.f32 %v2266, %v2330
        %v2332 = vpop.f32.mrb[0].mxu0
        %v2333 = vpop.f32.mrb[0].mxu0
        %v2334 = vadd.f32 %v2269, %v2333
        %v2335 = vpop.f32.mrb[0].mxu0
        %2336 = vdwg.mxu0
        %2337 = vmatprep.subr.bf16.mxu0 0
        %2338 = vmatpush1.bf16.msra.mxu0 %v394
        %2339 = vmatprep.subr.bf16.mxu0 0
        %2340 = vmatpush1.bf16.msra.mxu0 0
        %2341 = vmatprep.subr.bf16.mxu0 0
        %2342 = vmatpush1.bf16.msra.mxu0 0
        %2343 = vmatprep.subr.bf16.mxu0 0
        %2344 = vmatpush1.bf16.msra.mxu0 0
        %2345 = vmatprep.subr.bf16.mxu0 0
        %2346 = vmatpush1.bf16.msra.mxu0 0
        %2347 = vmatprep.subr.bf16.mxu0 0
        %2348 = vmatpush1.bf16.msra.mxu0 0
        %2349 = vmatprep.subr.bf16.mxu0 0
        %2350 = vmatpush1.bf16.msra.mxu0 0
        %2351 = vmatprep.subr.bf16.mxu0 0
        %2352 = vmatpush1.bf16.msra.mxu0 0
        %2353 = vmatprep.subr.bf16.mxu0 0
        %2354 = vmatpush1.bf16.msra.mxu0 0
        %2355 = vmatprep.subr.bf16.mxu0 0
        %2356 = vmatpush1.bf16.msra.mxu0 0
        %2357 = vmatprep.subr.bf16.mxu0 0
        %2358 = vmatpush1.bf16.msra.mxu0 0
        %2359 = vmatprep.subr.bf16.mxu0 0
        %2360 = vmatpush1.bf16.msra.mxu0 0
        %2361 = vmatprep.subr.bf16.mxu0 0
        %2362 = vmatpush1.bf16.msra.mxu0 0
        %2363 = vmatprep.subr.bf16.mxu0 0
        %2364 = vmatpush1.bf16.msra.mxu0 0
        %2365 = vmatprep.subr.bf16.mxu0 0
        %2366 = vmatpush1.bf16.msra.mxu0 0
        %2367 = vmatprep.subr.bf16.mxu0 0
        %2368 = vmatpush1.bf16.msra.mxu0 0
        %2369 = vmatprep.mubr.bf16.mxu0 0
        %2370 = vmatmul.mubr.bf16.gmra.mrb[0].mxu0 %v1012
        %v2371 = vpop.f32.mrb[0].mxu0
        %v2372 = vadd.f32 0.0, %v2371
        %v2373 = vpop.f32.mrb[0].mxu0
        %v2374 = vpop.f32.mrb[0].mxu0
        %v2375 = vadd.f32 0.0, %v2374
        %v2376 = vpop.f32.mrb[0].mxu0
        %2377 = vmatprep.mubr.bf16.mxu0 0
        %2378 = vmatmul.mubr.bf16.gmra.mrb[0].mxu0 %v1015
        %v2379 = vpop.f32.mrb[0].mxu0
        %v2380 = vadd.f32 0.0, %v2379
        %v2381 = vpop.f32.mrb[0].mxu0
        %v2382 = vpop.f32.mrb[0].mxu0
        %v2383 = vadd.f32 0.0, %v2382
        %v2384 = vpop.f32.mrb[0].mxu0
        %2385 = vmatprep.mubr.bf16.mxu0 0
        %2386 = vmatmul.mubr.bf16.gmra.mrb[0].mxu0 %v1018
        %v2387 = vpop.f32.mrb[0].mxu0
        %v2388 = vadd.f32 0.0, %v2387
        %v2389 = vpop.f32.mrb[0].mxu0
        %v2390 = vpop.f32.mrb[0].mxu0
        %v2391 = vadd.f32 0.0, %v2390
        %v2392 = vpop.f32.mrb[0].mxu0
        %2393 = vmatprep.mubr.bf16.mxu0 0
        %2394 = vmatmul.mubr.bf16.gmra.mrb[0].mxu0 %v1021
        %v2395 = vpop.f32.mrb[0].mxu0
        %v2396 = vadd.f32 0.0, %v2395
        %v2397 = vpop.f32.mrb[0].mxu0
        %v2398 = vpop.f32.mrb[0].mxu0
        %v2399 = vadd.f32 0.0, %v2398
        %v2400 = vpop.f32.mrb[0].mxu0
        %2401 = vdwg.mxu0
        %v2402 = vadd.f32 %v2307, %v2372
        %v2403 = vadd.f32 %v2310, %v2375
        %v2404 = vadd.f32 %v2315, %v2380
        %v2405 = vadd.f32 %v2318, %v2383
        %v2406 = vadd.f32 %v2323, %v2388
        %v2407 = vadd.f32 %v2326, %v2391
        %v2408 = vadd.f32 %v2331, %v2396
        %v2409 = vadd.f32 %v2334, %v2399
        %s2410 = scalar_lea.vmem %s168, 36
        %v2411 = vld [vmem:[%s2410] sm:$0xf]
        %v2412 = vld [vmem:[%s2410 + $0x4] sm:$0xf]
        %v2413 = vld [vmem:[%s2410 + $0x30] sm:$0xf]
        %v2414 = vld [vmem:[%s2410 + $0x34] sm:$0xf]
        %v2415 = vld [vmem:[%s2410 + $0x60] sm:$0xf]
        %v2416 = vld [vmem:[%s2410 + $0x64] sm:$0xf]
        %v2417 = vld [vmem:[%s2410 + $0x90] sm:$0xf]
        %v2418 = vld [vmem:[%s2410 + $0x94] sm:$0xf]
        %v2427 = vunpack.c.l.b16 %v2411
        %v2428 = vunpack.c.l.b16 %v2412
        %v2429 = vunpack.c.l.b16 %v2413
        %v2430 = vunpack.c.l.b16 %v2414
        %v2431 = vunpack.c.l.b16 %v2415
        %v2432 = vunpack.c.l.b16 %v2416
        %v2433 = vunpack.c.l.b16 %v2417
        %v2434 = vunpack.c.l.b16 %v2418
        %v2435 = vpack.c.b16 %v2428, %v2427
        %v2436 = vpack.c.b16 %v2430, %v2429
        %v2437 = vpack.c.b16 %v2432, %v2431
        %v2438 = vpack.c.b16 %v2434, %v2433
        %v2440 = vsel %vm209, %v2435, 0
        %v2443 = vsel %vm209, %v2436, 0
        %v2446 = vsel %vm209, %v2437, 0
        %v2449 = vsel %vm209, %v2438, 0
        %2451 = vmatprep.subr.bf16.mxu0 0
        %2452 = vmatpush1.bf16.msra.mxu0 %v513
        %2453 = vmatprep.subr.bf16.mxu0 0
        %2454 = vmatpush1.bf16.msra.mxu0 0
        %2455 = vmatprep.subr.bf16.mxu0 0
        %2456 = vmatpush1.bf16.msra.mxu0 0
        %2457 = vmatprep.subr.bf16.mxu0 0
        %2458 = vmatpush1.bf16.msra.mxu0 0
        %2459 = vmatprep.subr.bf16.mxu0 0
        %2460 = vmatpush1.bf16.msra.mxu0 0
        %2461 = vmatprep.subr.bf16.mxu0 0
        %2462 = vmatpush1.bf16.msra.mxu0 0
        %2463 = vmatprep.subr.bf16.mxu0 0
        %2464 = vmatpush1.bf16.msra.mxu0 0
        %2465 = vmatprep.subr.bf16.mxu0 0
        %2466 = vmatpush1.bf16.msra.mxu0 0
        %2467 = vmatprep.subr.bf16.mxu0 0
        %2468 = vmatpush1.bf16.msra.mxu0 0
        %2469 = vmatprep.subr.bf16.mxu0 0
        %2470 = vmatpush1.bf16.msra.mxu0 0
        %2471 = vmatprep.subr.bf16.mxu0 0
        %2472 = vmatpush1.bf16.msra.mxu0 0
        %2473 = vmatprep.subr.bf16.mxu0 0
        %2474 = vmatpush1.bf16.msra.mxu0 0
        %2475 = vmatprep.subr.bf16.mxu0 0
        %2476 = vmatpush1.bf16.msra.mxu0 0
        %2477 = vmatprep.subr.bf16.mxu0 0
        %2478 = vmatpush1.bf16.msra.mxu0 0
        %2479 = vmatprep.subr.bf16.mxu0 0
        %2480 = vmatpush1.bf16.msra.mxu0 0
        %2481 = vmatprep.subr.bf16.mxu0 0
        %2482 = vmatpush1.bf16.msra.mxu0 0
        %2483 = vmatprep.mubr.bf16.mxu0 0
        %2484 = vmatmul.mubr.bf16.gmra.mrb[0].mxu0 %v2440
        %v2485 = vpop.f32.mrb[0].mxu0
        %v2486 = vadd.f32 0.0, %v2485
        %v2487 = vpop.f32.mrb[0].mxu0
        %v2488 = vpop.f32.mrb[0].mxu0
        %v2489 = vadd.f32 0.0, %v2488
        %v2490 = vpop.f32.mrb[0].mxu0
        %2491 = vmatprep.mubr.bf16.mxu0 0
        %2492 = vmatmul.mubr.bf16.gmra.mrb[0].mxu0 %v2443
        %v2493 = vpop.f32.mrb[0].mxu0
        %v2494 = vadd.f32 0.0, %v2493
        %v2495 = vpop.f32.mrb[0].mxu0
        %v2496 = vpop.f32.mrb[0].mxu0
        %v2497 = vadd.f32 0.0, %v2496
        %v2498 = vpop.f32.mrb[0].mxu0
        %2499 = vmatprep.mubr.bf16.mxu0 0
        %2500 = vmatmul.mubr.bf16.gmra.mrb[0].mxu0 %v2446
        %v2501 = vpop.f32.mrb[0].mxu0
        %v2502 = vadd.f32 0.0, %v2501
        %v2503 = vpop.f32.mrb[0].mxu0
        %v2504 = vpop.f32.mrb[0].mxu0
        %v2505 = vadd.f32 0.0, %v2504
        %v2506 = vpop.f32.mrb[0].mxu0
        %2507 = vmatprep.mubr.bf16.mxu0 0
        %2508 = vmatmul.mubr.bf16.gmra.mrb[0].mxu0 %v2449
        %v2509 = vpop.f32.mrb[0].mxu0
        %v2510 = vadd.f32 0.0, %v2509
        %v2511 = vpop.f32.mrb[0].mxu0
        %v2512 = vpop.f32.mrb[0].mxu0
        %v2513 = vadd.f32 0.0, %v2512
        %v2514 = vpop.f32.mrb[0].mxu0
        %2515 = vdwg.mxu0
        %v2516 = vadd.f32 %v2402, %v2486
        %v2517 = vadd.f32 %v2403, %v2489
        %v2518 = vadd.f32 %v2404, %v2494
        %v2519 = vadd.f32 %v2405, %v2497
        %v2520 = vadd.f32 %v2406, %v2502
        %v2521 = vadd.f32 %v2407, %v2505
        %v2522 = vadd.f32 %v2408, %v2510
        %v2523 = vadd.f32 %v2409, %v2513
        %2524 = vrot.lane.b32.xlu0 %v2435, 124
        %v2525 = vpop.permute.xlu0 %2524
        %2526 = vrot.lane.b32.xlu0 %v2436, 124
        %v2527 = vpop.permute.xlu0 %2526
        %2528 = vrot.lane.b32.xlu0 %v2437, 124
        %v2529 = vpop.permute.xlu0 %2528
        %2530 = vrot.lane.b32.xlu0 %v2438, 124
        %v2531 = vpop.permute.xlu0 %2530
        %v2533 = vsel %vm209, %v2525, 0
        %v2536 = vsel %vm209, %v2527, 0
        %v2539 = vsel %vm209, %v2529, 0
        %v2542 = vsel %vm209, %v2531, 0
        %2544 = vmatprep.subr.bf16.mxu0 0
        %2545 = vmatpush1.bf16.msra.mxu0 %v611
        %2546 = vmatprep.subr.bf16.mxu0 0
        %2547 = vmatpush1.bf16.msra.mxu0 0
        %2548 = vmatprep.subr.bf16.mxu0 0
        %2549 = vmatpush1.bf16.msra.mxu0 0
        %2550 = vmatprep.subr.bf16.mxu0 0
        %2551 = vmatpush1.bf16.msra.mxu0 0
        %2552 = vmatprep.subr.bf16.mxu0 0
        %2553 = vmatpush1.bf16.msra.mxu0 0
        %2554 = vmatprep.subr.bf16.mxu0 0
        %2555 = vmatpush1.bf16.msra.mxu0 0
        %2556 = vmatprep.subr.bf16.mxu0 0
        %2557 = vmatpush1.bf16.msra.mxu0 0
        %2558 = vmatprep.subr.bf16.mxu0 0
        %2559 = vmatpush1.bf16.msra.mxu0 0
        %2560 = vmatprep.subr.bf16.mxu0 0
        %2561 = vmatpush1.bf16.msra.mxu0 0
        %2562 = vmatprep.subr.bf16.mxu0 0
        %2563 = vmatpush1.bf16.msra.mxu0 0
        %2564 = vmatprep.subr.bf16.mxu0 0
        %2565 = vmatpush1.bf16.msra.mxu0 0
        %2566 = vmatprep.subr.bf16.mxu0 0
        %2567 = vmatpush1.bf16.msra.mxu0 0
        %2568 = vmatprep.subr.bf16.mxu0 0
        %2569 = vmatpush1.bf16.msra.mxu0 0
        %2570 = vmatprep.subr.bf16.mxu0 0
        %2571 = vmatpush1.bf16.msra.mxu0 0
        %2572 = vmatprep.subr.bf16.mxu0 0
        %2573 = vmatpush1.bf16.msra.mxu0 0
        %2574 = vmatprep.subr.bf16.mxu0 0
        %2575 = vmatpush1.bf16.msra.mxu0 0
        %2576 = vmatprep.mubr.bf16.mxu0 0
        %2577 = vmatmul.mubr.bf16.gmra.mrb[0].mxu0 %v2533
        %v2578 = vpop.f32.mrb[0].mxu0
        %v2579 = vadd.f32 0.0, %v2578
        %v2580 = vpop.f32.mrb[0].mxu0
        %v2581 = vpop.f32.mrb[0].mxu0
        %v2582 = vadd.f32 0.0, %v2581
        %v2583 = vpop.f32.mrb[0].mxu0
        %2584 = vmatprep.mubr.bf16.mxu0 0
        %2585 = vmatmul.mubr.bf16.gmra.mrb[0].mxu0 %v2536
        %v2586 = vpop.f32.mrb[0].mxu0
        %v2587 = vadd.f32 0.0, %v2586
        %v2588 = vpop.f32.mrb[0].mxu0
        %v2589 = vpop.f32.mrb[0].mxu0
        %v2590 = vadd.f32 0.0, %v2589
        %v2591 = vpop.f32.mrb[0].mxu0
        %2592 = vmatprep.mubr.bf16.mxu0 0
        %2593 = vmatmul.mubr.bf16.gmra.mrb[0].mxu0 %v2539
        %v2594 = vpop.f32.mrb[0].mxu0
        %v2595 = vadd.f32 0.0, %v2594
        %v2596 = vpop.f32.mrb[0].mxu0
        %v2597 = vpop.f32.mrb[0].mxu0
        %v2598 = vadd.f32 0.0, %v2597
        %v2599 = vpop.f32.mrb[0].mxu0
        %2600 = vmatprep.mubr.bf16.mxu0 0
        %2601 = vmatmul.mubr.bf16.gmra.mrb[0].mxu0 %v2542
        %v2602 = vpop.f32.mrb[0].mxu0
        %v2603 = vadd.f32 0.0, %v2602
        %v2604 = vpop.f32.mrb[0].mxu0
        %v2605 = vpop.f32.mrb[0].mxu0
        %v2606 = vadd.f32 0.0, %v2605
        %v2607 = vpop.f32.mrb[0].mxu0
        %2608 = vdwg.mxu0
        %v2609 = vadd.f32 %v2516, %v2579
        %v2610 = vadd.f32 %v2517, %v2582
        %v2611 = vadd.f32 %v2518, %v2587
        %v2612 = vadd.f32 %v2519, %v2590
        %v2613 = vadd.f32 %v2520, %v2595
        %v2614 = vadd.f32 %v2521, %v2598
        %v2615 = vadd.f32 %v2522, %v2603
        %v2616 = vadd.f32 %v2523, %v2606
        %2617 = vrot.lane.b32.xlu0 %v2435, 120
        %v2618 = vpop.permute.xlu0 %2617
        %2619 = vrot.lane.b32.xlu0 %v2436, 120
        %v2620 = vpop.permute.xlu0 %2619
        %2621 = vrot.lane.b32.xlu0 %v2437, 120
        %v2622 = vpop.permute.xlu0 %2621
        %2623 = vrot.lane.b32.xlu0 %v2438, 120
        %v2624 = vpop.permute.xlu0 %2623
        %v2626 = vsel %vm209, %v2618, 0
        %v2629 = vsel %vm209, %v2620, 0
        %v2632 = vsel %vm209, %v2622, 0
        %v2635 = vsel %vm209, %v2624, 0
        %2637 = vmatprep.subr.bf16.mxu0 0
        %2638 = vmatpush1.bf16.msra.mxu0 %v709
        %2639 = vmatprep.subr.bf16.mxu0 0
        %2640 = vmatpush1.bf16.msra.mxu0 0
        %2641 = vmatprep.subr.bf16.mxu0 0
        %2642 = vmatpush1.bf16.msra.mxu0 0
        %2643 = vmatprep.subr.bf16.mxu0 0
        %2644 = vmatpush1.bf16.msra.mxu0 0
        %2645 = vmatprep.subr.bf16.mxu0 0
        %2646 = vmatpush1.bf16.msra.mxu0 0
        %2647 = vmatprep.subr.bf16.mxu0 0
        %2648 = vmatpush1.bf16.msra.mxu0 0
        %2649 = vmatprep.subr.bf16.mxu0 0
        %2650 = vmatpush1.bf16.msra.mxu0 0
        %2651 = vmatprep.subr.bf16.mxu0 0
        %2652 = vmatpush1.bf16.msra.mxu0 0
        %2653 = vmatprep.subr.bf16.mxu0 0
        %2654 = vmatpush1.bf16.msra.mxu0 0
        %2655 = vmatprep.subr.bf16.mxu0 0
        %2656 = vmatpush1.bf16.msra.mxu0 0
        %2657 = vmatprep.subr.bf16.mxu0 0
        %2658 = vmatpush1.bf16.msra.mxu0 0
        %2659 = vmatprep.subr.bf16.mxu0 0
        %2660 = vmatpush1.bf16.msra.mxu0 0
        %2661 = vmatprep.subr.bf16.mxu0 0
        %2662 = vmatpush1.bf16.msra.mxu0 0
        %2663 = vmatprep.subr.bf16.mxu0 0
        %2664 = vmatpush1.bf16.msra.mxu0 0
        %2665 = vmatprep.subr.bf16.mxu0 0
        %2666 = vmatpush1.bf16.msra.mxu0 0
        %2667 = vmatprep.subr.bf16.mxu0 0
        %2668 = vmatpush1.bf16.msra.mxu0 0
        %2669 = vmatprep.mubr.bf16.mxu0 0
        %2670 = vmatmul.mubr.bf16.gmra.mrb[0].mxu0 %v2626
        %v2671 = vpop.f32.mrb[0].mxu0
        %v2672 = vadd.f32 0.0, %v2671
        %v2673 = vpop.f32.mrb[0].mxu0
        %v2674 = vpop.f32.mrb[0].mxu0
        %v2675 = vadd.f32 0.0, %v2674
        %v2676 = vpop.f32.mrb[0].mxu0
        %2677 = vmatprep.mubr.bf16.mxu0 0
        %2678 = vmatmul.mubr.bf16.gmra.mrb[0].mxu0 %v2629
        %v2679 = vpop.f32.mrb[0].mxu0
        %v2680 = vadd.f32 0.0, %v2679
        %v2681 = vpop.f32.mrb[0].mxu0
        %v2682 = vpop.f32.mrb[0].mxu0
        %v2683 = vadd.f32 0.0, %v2682
        %v2684 = vpop.f32.mrb[0].mxu0
        %2685 = vmatprep.mubr.bf16.mxu0 0
        %2686 = vmatmul.mubr.bf16.gmra.mrb[0].mxu0 %v2632
        %v2687 = vpop.f32.mrb[0].mxu0
        %v2688 = vadd.f32 0.0, %v2687
        %v2689 = vpop.f32.mrb[0].mxu0
        %v2690 = vpop.f32.mrb[0].mxu0
        %v2691 = vadd.f32 0.0, %v2690
        %v2692 = vpop.f32.mrb[0].mxu0
        %2693 = vmatprep.mubr.bf16.mxu0 0
        %2694 = vmatmul.mubr.bf16.gmra.mrb[0].mxu0 %v2635
        %v2695 = vpop.f32.mrb[0].mxu0
        %v2696 = vadd.f32 0.0, %v2695
        %v2697 = vpop.f32.mrb[0].mxu0
        %v2698 = vpop.f32.mrb[0].mxu0
        %v2699 = vadd.f32 0.0, %v2698
        %v2700 = vpop.f32.mrb[0].mxu0
        %2701 = vdwg.mxu0
        %v2702 = vadd.f32 %v2609, %v2672
        %v2703 = vadd.f32 %v2610, %v2675
        %v2704 = vadd.f32 %v2611, %v2680
        %v2705 = vadd.f32 %v2612, %v2683
        %v2706 = vadd.f32 %v2613, %v2688
        %v2707 = vadd.f32 %v2614, %v2691
        %v2708 = vadd.f32 %v2615, %v2696
        %v2709 = vadd.f32 %v2616, %v2699
        %s2710 = scalar_lea.vmem %s168, 48
        %v2711 = vld [vmem:[%s2710] sm:$0xf]
        %v2712 = vld [vmem:[%s2710 + $0x4] sm:$0xf]
        %v2713 = vld [vmem:[%s2710 + $0x30] sm:$0xf]
        %v2714 = vld [vmem:[%s2710 + $0x34] sm:$0xf]
        %v2715 = vld [vmem:[%s2710 + $0x60] sm:$0xf]
        %v2716 = vld [vmem:[%s2710 + $0x64] sm:$0xf]
        %v2717 = vld [vmem:[%s2710 + $0x90] sm:$0xf]
        %v2718 = vld [vmem:[%s2710 + $0x94] sm:$0xf]
        %v2727 = vunpack.c.l.b16 %v2711
        %v2728 = vunpack.c.l.b16 %v2712
        %v2729 = vunpack.c.l.b16 %v2713
        %v2730 = vunpack.c.l.b16 %v2714
        %v2731 = vunpack.c.l.b16 %v2715
        %v2732 = vunpack.c.l.b16 %v2716
        %v2733 = vunpack.c.l.b16 %v2717
        %v2734 = vunpack.c.l.b16 %v2718
        %v2735 = vpack.c.b16 %v2728, %v2727
        %v2736 = vpack.c.b16 %v2730, %v2729
        %v2737 = vpack.c.b16 %v2732, %v2731
        %v2738 = vpack.c.b16 %v2734, %v2733
        %v2740 = vsel %vm209, %v2735, 0
        %v2743 = vsel %vm209, %v2736, 0
        %v2746 = vsel %vm209, %v2737, 0
        %v2749 = vsel %vm209, %v2738, 0
        %2751 = vmatprep.subr.bf16.mxu0 0
        %2752 = vmatpush1.bf16.msra.mxu0 %v828
        %2753 = vmatprep.subr.bf16.mxu0 0
        %2754 = vmatpush1.bf16.msra.mxu0 0
        %2755 = vmatprep.subr.bf16.mxu0 0
        %2756 = vmatpush1.bf16.msra.mxu0 0
        %2757 = vmatprep.subr.bf16.mxu0 0
        %2758 = vmatpush1.bf16.msra.mxu0 0
        %2759 = vmatprep.subr.bf16.mxu0 0
        %2760 = vmatpush1.bf16.msra.mxu0 0
        %2761 = vmatprep.subr.bf16.mxu0 0
        %2762 = vmatpush1.bf16.msra.mxu0 0
        %2763 = vmatprep.subr.bf16.mxu0 0
        %2764 = vmatpush1.bf16.msra.mxu0 0
        %2765 = vmatprep.subr.bf16.mxu0 0
        %2766 = vmatpush1.bf16.msra.mxu0 0
        %2767 = vmatprep.subr.bf16.mxu0 0
        %2768 = vmatpush1.bf16.msra.mxu0 0
        %2769 = vmatprep.subr.bf16.mxu0 0
        %2770 = vmatpush1.bf16.msra.mxu0 0
        %2771 = vmatprep.subr.bf16.mxu0 0
        %2772 = vmatpush1.bf16.msra.mxu0 0
        %2773 = vmatprep.subr.bf16.mxu0 0
        %2774 = vmatpush1.bf16.msra.mxu0 0
        %2775 = vmatprep.subr.bf16.mxu0 0
        %2776 = vmatpush1.bf16.msra.mxu0 0
        %2777 = vmatprep.subr.bf16.mxu0 0
        %2778 = vmatpush1.bf16.msra.mxu0 0
        %2779 = vmatprep.subr.bf16.mxu0 0
        %2780 = vmatpush1.bf16.msra.mxu0 0
        %2781 = vmatprep.subr.bf16.mxu0 0
        %2782 = vmatpush1.bf16.msra.mxu0 0
        %2783 = vmatprep.mubr.bf16.mxu0 0
        %2784 = vmatmul.mubr.bf16.gmra.mrb[0].mxu0 %v2740
        %v2785 = vpop.f32.mrb[0].mxu0
        %v2786 = vadd.f32 0.0, %v2785
        %v2787 = vpop.f32.mrb[0].mxu0
        %v2788 = vpop.f32.mrb[0].mxu0
        %v2789 = vadd.f32 0.0, %v2788
        %v2790 = vpop.f32.mrb[0].mxu0
        %2791 = vmatprep.mubr.bf16.mxu0 0
        %2792 = vmatmul.mubr.bf16.gmra.mrb[0].mxu0 %v2743
        %v2793 = vpop.f32.mrb[0].mxu0
        %v2794 = vadd.f32 0.0, %v2793
        %v2795 = vpop.f32.mrb[0].mxu0
        %v2796 = vpop.f32.mrb[0].mxu0
        %v2797 = vadd.f32 0.0, %v2796
        %v2798 = vpop.f32.mrb[0].mxu0
        %2799 = vmatprep.mubr.bf16.mxu0 0
        %2800 = vmatmul.mubr.bf16.gmra.mrb[0].mxu0 %v2746
        %v2801 = vpop.f32.mrb[0].mxu0
        %v2802 = vadd.f32 0.0, %v2801
        %v2803 = vpop.f32.mrb[0].mxu0
        %v2804 = vpop.f32.mrb[0].mxu0
        %v2805 = vadd.f32 0.0, %v2804
        %v2806 = vpop.f32.mrb[0].mxu0
        %2807 = vmatprep.mubr.bf16.mxu0 0
        %2808 = vmatmul.mubr.bf16.gmra.mrb[0].mxu0 %v2749
        %v2809 = vpop.f32.mrb[0].mxu0
        %v2810 = vadd.f32 0.0, %v2809
        %v2811 = vpop.f32.mrb[0].mxu0
        %v2812 = vpop.f32.mrb[0].mxu0
        %v2813 = vadd.f32 0.0, %v2812
        %v2814 = vpop.f32.mrb[0].mxu0
        %2815 = vdwg.mxu0
        %v2816 = vadd.f32 %v2702, %v2786
        %v2817 = vadd.f32 %v2703, %v2789
        %v2818 = vadd.f32 %v2704, %v2794
        %v2819 = vadd.f32 %v2705, %v2797
        %v2820 = vadd.f32 %v2706, %v2802
        %v2821 = vadd.f32 %v2707, %v2805
        %v2822 = vadd.f32 %v2708, %v2810
        %v2823 = vadd.f32 %v2709, %v2813
        %2824 = vrot.lane.b32.xlu0 %v2735, 124
        %v2825 = vpop.permute.xlu0 %2824
        %2826 = vrot.lane.b32.xlu0 %v2736, 124
        %v2827 = vpop.permute.xlu0 %2826
        %2828 = vrot.lane.b32.xlu0 %v2737, 124
        %v2829 = vpop.permute.xlu0 %2828
        %2830 = vrot.lane.b32.xlu0 %v2738, 124
        %v2831 = vpop.permute.xlu0 %2830
        %v2833 = vsel %vm209, %v2825, 0
        %v2836 = vsel %vm209, %v2827, 0
        %v2839 = vsel %vm209, %v2829, 0
        %v2842 = vsel %vm209, %v2831, 0
        %2844 = vmatprep.subr.bf16.mxu0 0
        %2845 = vmatpush1.bf16.msra.mxu0 %v926
        %2846 = vmatprep.subr.bf16.mxu0 0
        %2847 = vmatpush1.bf16.msra.mxu0 0
        %2848 = vmatprep.subr.bf16.mxu0 0
        %2849 = vmatpush1.bf16.msra.mxu0 0
        %2850 = vmatprep.subr.bf16.mxu0 0
        %2851 = vmatpush1.bf16.msra.mxu0 0
        %2852 = vmatprep.subr.bf16.mxu0 0
        %2853 = vmatpush1.bf16.msra.mxu0 0
        %2854 = vmatprep.subr.bf16.mxu0 0
        %2855 = vmatpush1.bf16.msra.mxu0 0
        %2856 = vmatprep.subr.bf16.mxu0 0
        %2857 = vmatpush1.bf16.msra.mxu0 0
        %2858 = vmatprep.subr.bf16.mxu0 0
        %2859 = vmatpush1.bf16.msra.mxu0 0
        %2860 = vmatprep.subr.bf16.mxu0 0
        %2861 = vmatpush1.bf16.msra.mxu0 0
        %2862 = vmatprep.subr.bf16.mxu0 0
        %2863 = vmatpush1.bf16.msra.mxu0 0
        %2864 = vmatprep.subr.bf16.mxu0 0
        %2865 = vmatpush1.bf16.msra.mxu0 0
        %2866 = vmatprep.subr.bf16.mxu0 0
        %2867 = vmatpush1.bf16.msra.mxu0 0
        %2868 = vmatprep.subr.bf16.mxu0 0
        %2869 = vmatpush1.bf16.msra.mxu0 0
        %2870 = vmatprep.subr.bf16.mxu0 0
        %2871 = vmatpush1.bf16.msra.mxu0 0
        %2872 = vmatprep.subr.bf16.mxu0 0
        %2873 = vmatpush1.bf16.msra.mxu0 0
        %2874 = vmatprep.subr.bf16.mxu0 0
        %2875 = vmatpush1.bf16.msra.mxu0 0
        %2876 = vmatprep.mubr.bf16.mxu0 0
        %2877 = vmatmul.mubr.bf16.gmra.mrb[0].mxu0 %v2833
        %v2878 = vpop.f32.mrb[0].mxu0
        %v2879 = vadd.f32 0.0, %v2878
        %v2880 = vpop.f32.mrb[0].mxu0
        %v2881 = vpop.f32.mrb[0].mxu0
        %v2882 = vadd.f32 0.0, %v2881
        %v2883 = vpop.f32.mrb[0].mxu0
        %2884 = vmatprep.mubr.bf16.mxu0 0
        %2885 = vmatmul.mubr.bf16.gmra.mrb[0].mxu0 %v2836
        %v2886 = vpop.f32.mrb[0].mxu0
        %v2887 = vadd.f32 0.0, %v2886
        %v2888 = vpop.f32.mrb[0].mxu0
        %v2889 = vpop.f32.mrb[0].mxu0
        %v2890 = vadd.f32 0.0, %v2889
        %v2891 = vpop.f32.mrb[0].mxu0
        %2892 = vmatprep.mubr.bf16.mxu0 0
        %2893 = vmatmul.mubr.bf16.gmra.mrb[0].mxu0 %v2839
        %v2894 = vpop.f32.mrb[0].mxu0
        %v2895 = vadd.f32 0.0, %v2894
        %v2896 = vpop.f32.mrb[0].mxu0
        %v2897 = vpop.f32.mrb[0].mxu0
        %v2898 = vadd.f32 0.0, %v2897
        %v2899 = vpop.f32.mrb[0].mxu0
        %2900 = vmatprep.mubr.bf16.mxu0 0
        %2901 = vmatmul.mubr.bf16.gmra.mrb[0].mxu0 %v2842
        %v2902 = vpop.f32.mrb[0].mxu0
        %v2903 = vadd.f32 0.0, %v2902
        %v2904 = vpop.f32.mrb[0].mxu0
        %v2905 = vpop.f32.mrb[0].mxu0
        %v2906 = vadd.f32 0.0, %v2905
        %v2907 = vpop.f32.mrb[0].mxu0
        %2908 = vdwg.mxu0
        %v2909 = vadd.f32 %v2816, %v2879
        %v2910 = vadd.f32 %v2817, %v2882
        %v2911 = vadd.f32 %v2818, %v2887
        %v2912 = vadd.f32 %v2819, %v2890
        %v2913 = vadd.f32 %v2820, %v2895
        %v2914 = vadd.f32 %v2821, %v2898
        %v2915 = vadd.f32 %v2822, %v2903
        %v2916 = vadd.f32 %v2823, %v2906
        %2917 = vrot.lane.b32.xlu0 %v2735, 120
        %v2918 = vpop.permute.xlu0 %2917
        %2919 = vrot.lane.b32.xlu0 %v2736, 120
        %v2920 = vpop.permute.xlu0 %2919
        %2921 = vrot.lane.b32.xlu0 %v2737, 120
        %v2922 = vpop.permute.xlu0 %2921
        %2923 = vrot.lane.b32.xlu0 %v2738, 120
        %v2924 = vpop.permute.xlu0 %2923
        %v2926 = vsel %vm209, %v2918, 0
        %v2929 = vsel %vm209, %v2920, 0
        %v2932 = vsel %vm209, %v2922, 0
        %v2935 = vsel %vm209, %v2924, 0
        %2937 = vmatprep.subr.bf16.mxu0 0
        %2938 = vmatpush1.bf16.msra.mxu0 %v1024
        %2939 = vmatprep.subr.bf16.mxu0 0
        %2940 = vmatpush1.bf16.msra.mxu0 0
        %2941 = vmatprep.subr.bf16.mxu0 0
        %2942 = vmatpush1.bf16.msra.mxu0 0
        %2943 = vmatprep.subr.bf16.mxu0 0
        %2944 = vmatpush1.bf16.msra.mxu0 0
        %2945 = vmatprep.subr.bf16.mxu0 0
        %2946 = vmatpush1.bf16.msra.mxu0 0
        %2947 = vmatprep.subr.bf16.mxu0 0
        %2948 = vmatpush1.bf16.msra.mxu0 0
        %2949 = vmatprep.subr.bf16.mxu0 0
        %2950 = vmatpush1.bf16.msra.mxu0 0
        %2951 = vmatprep.subr.bf16.mxu0 0
        %2952 = vmatpush1.bf16.msra.mxu0 0
        %2953 = vmatprep.subr.bf16.mxu0 0
        %2954 = vmatpush1.bf16.msra.mxu0 0
        %2955 = vmatprep.subr.bf16.mxu0 0
        %2956 = vmatpush1.bf16.msra.mxu0 0
        %2957 = vmatprep.subr.bf16.mxu0 0
        %2958 = vmatpush1.bf16.msra.mxu0 0
        %2959 = vmatprep.subr.bf16.mxu0 0
        %2960 = vmatpush1.bf16.msra.mxu0 0
        %2961 = vmatprep.subr.bf16.mxu0 0
        %2962 = vmatpush1.bf16.msra.mxu0 0
        %2963 = vmatprep.subr.bf16.mxu0 0
        %2964 = vmatpush1.bf16.msra.mxu0 0
        %2965 = vmatprep.subr.bf16.mxu0 0
        %2966 = vmatpush1.bf16.msra.mxu0 0
        %2967 = vmatprep.subr.bf16.mxu0 0
        %2968 = vmatpush1.bf16.msra.mxu0 0
        %2969 = vmatprep.mubr.bf16.mxu0 0
        %2970 = vmatmul.mubr.bf16.gmra.mrb[0].mxu0 %v2926
        %v2971 = vpop.f32.mrb[0].mxu0
        %v2972 = vadd.f32 0.0, %v2971
        %v2973 = vpop.f32.mrb[0].mxu0
        %v2974 = vpop.f32.mrb[0].mxu0
        %v2975 = vadd.f32 0.0, %v2974
        %v2976 = vpop.f32.mrb[0].mxu0
        %2977 = vmatprep.mubr.bf16.mxu0 0
        %2978 = vmatmul.mubr.bf16.gmra.mrb[0].mxu0 %v2929
        %v2979 = vpop.f32.mrb[0].mxu0
        %v2980 = vadd.f32 0.0, %v2979
        %v2981 = vpop.f32.mrb[0].mxu0
        %v2982 = vpop.f32.mrb[0].mxu0
        %v2983 = vadd.f32 0.0, %v2982
        %v2984 = vpop.f32.mrb[0].mxu0
        %2985 = vmatprep.mubr.bf16.mxu0 0
        %2986 = vmatmul.mubr.bf16.gmra.mrb[0].mxu0 %v2932
        %v2987 = vpop.f32.mrb[0].mxu0
        %v2988 = vadd.f32 0.0, %v2987
        %v2989 = vpop.f32.mrb[0].mxu0
        %v2990 = vpop.f32.mrb[0].mxu0
        %v2991 = vadd.f32 0.0, %v2990
        %v2992 = vpop.f32.mrb[0].mxu0
        %2993 = vmatprep.mubr.bf16.mxu0 0
        %2994 = vmatmul.mubr.bf16.gmra.mrb[0].mxu0 %v2935
        %v2995 = vpop.f32.mrb[0].mxu0
        %v2996 = vadd.f32 0.0, %v2995
        %v2997 = vpop.f32.mrb[0].mxu0
        %v2998 = vpop.f32.mrb[0].mxu0
        %v2999 = vadd.f32 0.0, %v2998
        %v3000 = vpop.f32.mrb[0].mxu0
        %3001 = vdwg.mxu0
        %v3002 = vadd.f32 %v2909, %v2972
        %v3003 = vadd.f32 %v2910, %v2975
        %v3004 = vadd.f32 %v2911, %v2980
        %v3005 = vadd.f32 %v2912, %v2983
        %v3006 = vadd.f32 %v2913, %v2988
        %v3007 = vadd.f32 %v2914, %v2991
        %v3008 = vadd.f32 %v2915, %v2996
        %v3009 = vadd.f32 %v2916, %v2999
        %v3010 = vmax.f32 %v2199, %v3002
        %v3011 = vmax.f32 %v2200, %v3003
        %v3012 = vmax.f32 %v2201, %v3004
        %v3013 = vmax.f32 %v2202, %v3005
        %v3014 = vmax.f32 %v2203, %v3006
        %v3015 = vmax.f32 %v2204, %v3007
        %v3016 = vmax.f32 %v2205, %v3008
        %v3017 = vmax.f32 %v2206, %v3009
        %3018 = vmatprep.subr.bf16.mxu0 0
        %3019 = vmatpush1.bf16.msra.mxu0 %v224
        %3020 = vmatprep.subr.bf16.mxu0 0
        %3021 = vmatpush1.bf16.msra.mxu0 0
        %3022 = vmatprep.subr.bf16.mxu0 0
        %3023 = vmatpush1.bf16.msra.mxu0 0
        %3024 = vmatprep.subr.bf16.mxu0 0
        %3025 = vmatpush1.bf16.msra.mxu0 0
        %3026 = vmatprep.subr.bf16.mxu0 0
        %3027 = vmatpush1.bf16.msra.mxu0 0
        %3028 = vmatprep.subr.bf16.mxu0 0
        %3029 = vmatpush1.bf16.msra.mxu0 0
        %3030 = vmatprep.subr.bf16.mxu0 0
        %3031 = vmatpush1.bf16.msra.mxu0 0
        %3032 = vmatprep.subr.bf16.mxu0 0
        %3033 = vmatpush1.bf16.msra.mxu0 0
        %3034 = vmatprep.subr.bf16.mxu0 0
        %3035 = vmatpush1.bf16.msra.mxu0 0
        %3036 = vmatprep.subr.bf16.mxu0 0
        %3037 = vmatpush1.bf16.msra.mxu0 0
        %3038 = vmatprep.subr.bf16.mxu0 0
        %3039 = vmatpush1.bf16.msra.mxu0 0
        %3040 = vmatprep.subr.bf16.mxu0 0
        %3041 = vmatpush1.bf16.msra.mxu0 0
        %3042 = vmatprep.subr.bf16.mxu0 0
        %3043 = vmatpush1.bf16.msra.mxu0 0
        %3044 = vmatprep.subr.bf16.mxu0 0
        %3045 = vmatpush1.bf16.msra.mxu0 0
        %3046 = vmatprep.subr.bf16.mxu0 0
        %3047 = vmatpush1.bf16.msra.mxu0 0
        %3048 = vmatprep.subr.bf16.mxu0 0
        %3049 = vmatpush1.bf16.msra.mxu0 0
        %3050 = vmatprep.mubr.bf16.mxu0 0
        %3051 = vmatmul.mubr.bf16.gmra.mrb[0].mxu0 %v1910
        %v3052 = vpop.f32.mrb[0].mxu0
        %v3053 = vadd.f32 0.0, %v3052
        %v3054 = vpop.f32.mrb[0].mxu0
        %v3055 = vpop.f32.mrb[0].mxu0
        %v3056 = vadd.f32 0.0, %v3055
        %v3057 = vpop.f32.mrb[0].mxu0
        %3058 = vmatprep.mubr.bf16.mxu0 0
        %3059 = vmatmul.mubr.bf16.gmra.mrb[0].mxu0 %v1913
        %v3060 = vpop.f32.mrb[0].mxu0
        %v3061 = vadd.f32 0.0, %v3060
        %v3062 = vpop.f32.mrb[0].mxu0
        %v3063 = vpop.f32.mrb[0].mxu0
        %v3064 = vadd.f32 0.0, %v3063
        %v3065 = vpop.f32.mrb[0].mxu0
        %3066 = vmatprep.mubr.bf16.mxu0 0
        %3067 = vmatmul.mubr.bf16.gmra.mrb[0].mxu0 %v1916
        %v3068 = vpop.f32.mrb[0].mxu0
        %v3069 = vadd.f32 0.0, %v3068
        %v3070 = vpop.f32.mrb[0].mxu0
        %v3071 = vpop.f32.mrb[0].mxu0
        %v3072 = vadd.f32 0.0, %v3071
        %v3073 = vpop.f32.mrb[0].mxu0
        %3074 = vmatprep.mubr.bf16.mxu0 0
        %3075 = vmatmul.mubr.bf16.gmra.mrb[0].mxu0 %v1919
        %v3076 = vpop.f32.mrb[0].mxu0
        %v3077 = vadd.f32 0.0, %v3076
        %v3078 = vpop.f32.mrb[0].mxu0
        %v3079 = vpop.f32.mrb[0].mxu0
        %v3080 = vadd.f32 0.0, %v3079
        %v3081 = vpop.f32.mrb[0].mxu0
        %3082 = vdwg.mxu0
        %3083 = vmatprep.subr.bf16.mxu0 0
        %3084 = vmatpush1.bf16.msra.mxu0 %v304
        %3085 = vmatprep.subr.bf16.mxu0 0
        %3086 = vmatpush1.bf16.msra.mxu0 0
        %3087 = vmatprep.subr.bf16.mxu0 0
        %3088 = vmatpush1.bf16.msra.mxu0 0
        %3089 = vmatprep.subr.bf16.mxu0 0
        %3090 = vmatpush1.bf16.msra.mxu0 0
        %3091 = vmatprep.subr.bf16.mxu0 0
        %3092 = vmatpush1.bf16.msra.mxu0 0
        %3093 = vmatprep.subr.bf16.mxu0 0
        %3094 = vmatpush1.bf16.msra.mxu0 0
        %3095 = vmatprep.subr.bf16.mxu0 0
        %3096 = vmatpush1.bf16.msra.mxu0 0
        %3097 = vmatprep.subr.bf16.mxu0 0
        %3098 = vmatpush1.bf16.msra.mxu0 0
        %3099 = vmatprep.subr.bf16.mxu0 0
        %3100 = vmatpush1.bf16.msra.mxu0 0
        %3101 = vmatprep.subr.bf16.mxu0 0
        %3102 = vmatpush1.bf16.msra.mxu0 0
        %3103 = vmatprep.subr.bf16.mxu0 0
        %3104 = vmatpush1.bf16.msra.mxu0 0
        %3105 = vmatprep.subr.bf16.mxu0 0
        %3106 = vmatpush1.bf16.msra.mxu0 0
        %3107 = vmatprep.subr.bf16.mxu0 0
        %3108 = vmatpush1.bf16.msra.mxu0 0
        %3109 = vmatprep.subr.bf16.mxu0 0
        %3110 = vmatpush1.bf16.msra.mxu0 0
        %3111 = vmatprep.subr.bf16.mxu0 0
        %3112 = vmatpush1.bf16.msra.mxu0 0
        %3113 = vmatprep.subr.bf16.mxu0 0
        %3114 = vmatpush1.bf16.msra.mxu0 0
        %3115 = vmatprep.mubr.bf16.mxu0 0
        %3116 = vmatmul.mubr.bf16.gmra.mrb[0].mxu0 %v1012
        %v3117 = vpop.f32.mrb[0].mxu0
        %v3118 = vadd.f32 %v3053, %v3117
        %v3119 = vpop.f32.mrb[0].mxu0
        %v3120 = vpop.f32.mrb[0].mxu0
        %v3121 = vadd.f32 %v3056, %v3120
        %v3122 = vpop.f32.mrb[0].mxu0
        %3123 = vmatprep.mubr.bf16.mxu0 0
        %3124 = vmatmul.mubr.bf16.gmra.mrb[0].mxu0 %v1015
        %v3125 = vpop.f32.mrb[0].mxu0
        %v3126 = vadd.f32 %v3061, %v3125
        %v3127 = vpop.f32.mrb[0].mxu0
        %v3128 = vpop.f32.mrb[0].mxu0
        %v3129 = vadd.f32 %v3064, %v3128
        %v3130 = vpop.f32.mrb[0].mxu0
        %3131 = vmatprep.mubr.bf16.mxu0 0
        %3132 = vmatmul.mubr.bf16.gmra.mrb[0].mxu0 %v1018
        %v3133 = vpop.f32.mrb[0].mxu0
        %v3134 = vadd.f32 %v3069, %v3133
        %v3135 = vpop.f32.mrb[0].mxu0
        %v3136 = vpop.f32.mrb[0].mxu0
        %v3137 = vadd.f32 %v3072, %v3136
        %v3138 = vpop.f32.mrb[0].mxu0
        %3139 = vmatprep.mubr.bf16.mxu0 0
        %3140 = vmatmul.mubr.bf16.gmra.mrb[0].mxu0 %v1021
        %v3141 = vpop.f32.mrb[0].mxu0
        %v3142 = vadd.f32 %v3077, %v3141
        %v3143 = vpop.f32.mrb[0].mxu0
        %v3144 = vpop.f32.mrb[0].mxu0
        %v3145 = vadd.f32 %v3080, %v3144
        %v3146 = vpop.f32.mrb[0].mxu0
        %3147 = vdwg.mxu0
        %3148 = vmatprep.subr.bf16.mxu0 0
        %3149 = vmatpush1.bf16.msra.mxu0 %v394
        %3150 = vmatprep.subr.bf16.mxu0 0
        %3151 = vmatpush1.bf16.msra.mxu0 0
        %3152 = vmatprep.subr.bf16.mxu0 0
        %3153 = vmatpush1.bf16.msra.mxu0 0
        %3154 = vmatprep.subr.bf16.mxu0 0
        %3155 = vmatpush1.bf16.msra.mxu0 0
        %3156 = vmatprep.subr.bf16.mxu0 0
        %3157 = vmatpush1.bf16.msra.mxu0 0
        %3158 = vmatprep.subr.bf16.mxu0 0
        %3159 = vmatpush1.bf16.msra.mxu0 0
        %3160 = vmatprep.subr.bf16.mxu0 0
        %3161 = vmatpush1.bf16.msra.mxu0 0
        %3162 = vmatprep.subr.bf16.mxu0 0
        %3163 = vmatpush1.bf16.msra.mxu0 0
        %3164 = vmatprep.subr.bf16.mxu0 0
        %3165 = vmatpush1.bf16.msra.mxu0 0
        %3166 = vmatprep.subr.bf16.mxu0 0
        %3167 = vmatpush1.bf16.msra.mxu0 0
        %3168 = vmatprep.subr.bf16.mxu0 0
        %3169 = vmatpush1.bf16.msra.mxu0 0
        %3170 = vmatprep.subr.bf16.mxu0 0
        %3171 = vmatpush1.bf16.msra.mxu0 0
        %3172 = vmatprep.subr.bf16.mxu0 0
        %3173 = vmatpush1.bf16.msra.mxu0 0
        %3174 = vmatprep.subr.bf16.mxu0 0
        %3175 = vmatpush1.bf16.msra.mxu0 0
        %3176 = vmatprep.subr.bf16.mxu0 0
        %3177 = vmatpush1.bf16.msra.mxu0 0
        %3178 = vmatprep.subr.bf16.mxu0 0
        %3179 = vmatpush1.bf16.msra.mxu0 0
        %3180 = vmatprep.mubr.bf16.mxu0 0
        %3181 = vmatmul.mubr.bf16.gmra.mrb[0].mxu0 %v2115
        %v3182 = vpop.f32.mrb[0].mxu0
        %v3183 = vadd.f32 0.0, %v3182
        %v3184 = vpop.f32.mrb[0].mxu0
        %v3185 = vpop.f32.mrb[0].mxu0
        %v3186 = vadd.f32 0.0, %v3185
        %v3187 = vpop.f32.mrb[0].mxu0
        %3188 = vmatprep.mubr.bf16.mxu0 0
        %3189 = vmatmul.mubr.bf16.gmra.mrb[0].mxu0 %v2118
        %v3190 = vpop.f32.mrb[0].mxu0
        %v3191 = vadd.f32 0.0, %v3190
        %v3192 = vpop.f32.mrb[0].mxu0
        %v3193 = vpop.f32.mrb[0].mxu0
        %v3194 = vadd.f32 0.0, %v3193
        %v3195 = vpop.f32.mrb[0].mxu0
        %3196 = vmatprep.mubr.bf16.mxu0 0
        %3197 = vmatmul.mubr.bf16.gmra.mrb[0].mxu0 %v2121
        %v3198 = vpop.f32.mrb[0].mxu0
        %v3199 = vadd.f32 0.0, %v3198
        %v3200 = vpop.f32.mrb[0].mxu0
        %v3201 = vpop.f32.mrb[0].mxu0
        %v3202 = vadd.f32 0.0, %v3201
        %v3203 = vpop.f32.mrb[0].mxu0
        %3204 = vmatprep.mubr.bf16.mxu0 0
        %3205 = vmatmul.mubr.bf16.gmra.mrb[0].mxu0 %v2124
        %v3206 = vpop.f32.mrb[0].mxu0
        %v3207 = vadd.f32 0.0, %v3206
        %v3208 = vpop.f32.mrb[0].mxu0
        %v3209 = vpop.f32.mrb[0].mxu0
        %v3210 = vadd.f32 0.0, %v3209
        %v3211 = vpop.f32.mrb[0].mxu0
        %3212 = vdwg.mxu0
        %v3213 = vadd.f32 %v3118, %v3183
        %v3214 = vadd.f32 %v3121, %v3186
        %v3215 = vadd.f32 %v3126, %v3191
        %v3216 = vadd.f32 %v3129, %v3194
        %v3217 = vadd.f32 %v3134, %v3199
        %v3218 = vadd.f32 %v3137, %v3202
        %v3219 = vadd.f32 %v3142, %v3207
        %v3220 = vadd.f32 %v3145, %v3210
        %3221 = vmatprep.subr.bf16.mxu0 0
        %3222 = vmatpush1.bf16.msra.mxu0 %v513
        %3223 = vmatprep.subr.bf16.mxu0 0
        %3224 = vmatpush1.bf16.msra.mxu0 0
        %3225 = vmatprep.subr.bf16.mxu0 0
        %3226 = vmatpush1.bf16.msra.mxu0 0
        %3227 = vmatprep.subr.bf16.mxu0 0
        %3228 = vmatpush1.bf16.msra.mxu0 0
        %3229 = vmatprep.subr.bf16.mxu0 0
        %3230 = vmatpush1.bf16.msra.mxu0 0
        %3231 = vmatprep.subr.bf16.mxu0 0
        %3232 = vmatpush1.bf16.msra.mxu0 0
        %3233 = vmatprep.subr.bf16.mxu0 0
        %3234 = vmatpush1.bf16.msra.mxu0 0
        %3235 = vmatprep.subr.bf16.mxu0 0
        %3236 = vmatpush1.bf16.msra.mxu0 0
        %3237 = vmatprep.subr.bf16.mxu0 0
        %3238 = vmatpush1.bf16.msra.mxu0 0
        %3239 = vmatprep.subr.bf16.mxu0 0
        %3240 = vmatpush1.bf16.msra.mxu0 0
        %3241 = vmatprep.subr.bf16.mxu0 0
        %3242 = vmatpush1.bf16.msra.mxu0 0
        %3243 = vmatprep.subr.bf16.mxu0 0
        %3244 = vmatpush1.bf16.msra.mxu0 0
        %3245 = vmatprep.subr.bf16.mxu0 0
        %3246 = vmatpush1.bf16.msra.mxu0 0
        %3247 = vmatprep.subr.bf16.mxu0 0
        %3248 = vmatpush1.bf16.msra.mxu0 0
        %3249 = vmatprep.subr.bf16.mxu0 0
        %3250 = vmatpush1.bf16.msra.mxu0 0
        %3251 = vmatprep.subr.bf16.mxu0 0
        %3252 = vmatpush1.bf16.msra.mxu0 0
        %3253 = vmatprep.mubr.bf16.mxu0 0
        %3254 = vmatmul.mubr.bf16.gmra.mrb[0].mxu0 %v2626
        %v3255 = vpop.f32.mrb[0].mxu0
        %v3256 = vadd.f32 0.0, %v3255
        %v3257 = vpop.f32.mrb[0].mxu0
        %v3258 = vpop.f32.mrb[0].mxu0
        %v3259 = vadd.f32 0.0, %v3258
        %v3260 = vpop.f32.mrb[0].mxu0
        %3261 = vmatprep.mubr.bf16.mxu0 0
        %3262 = vmatmul.mubr.bf16.gmra.mrb[0].mxu0 %v2629
        %v3263 = vpop.f32.mrb[0].mxu0
        %v3264 = vadd.f32 0.0, %v3263
        %v3265 = vpop.f32.mrb[0].mxu0
        %v3266 = vpop.f32.mrb[0].mxu0
        %v3267 = vadd.f32 0.0, %v3266
        %v3268 = vpop.f32.mrb[0].mxu0
        %3269 = vmatprep.mubr.bf16.mxu0 0
        %3270 = vmatmul.mubr.bf16.gmra.mrb[0].mxu0 %v2632
        %v3271 = vpop.f32.mrb[0].mxu0
        %v3272 = vadd.f32 0.0, %v3271
        %v3273 = vpop.f32.mrb[0].mxu0
        %v3274 = vpop.f32.mrb[0].mxu0
        %v3275 = vadd.f32 0.0, %v3274
        %v3276 = vpop.f32.mrb[0].mxu0
        %3277 = vmatprep.mubr.bf16.mxu0 0
        %3278 = vmatmul.mubr.bf16.gmra.mrb[0].mxu0 %v2635
        %v3279 = vpop.f32.mrb[0].mxu0
        %v3280 = vadd.f32 0.0, %v3279
        %v3281 = vpop.f32.mrb[0].mxu0
        %v3282 = vpop.f32.mrb[0].mxu0
        %v3283 = vadd.f32 0.0, %v3282
        %v3284 = vpop.f32.mrb[0].mxu0
        %3285 = vdwg.mxu0
        %v3286 = vadd.f32 %v3213, %v3256
        %v3287 = vadd.f32 %v3214, %v3259
        %v3288 = vadd.f32 %v3215, %v3264
        %v3289 = vadd.f32 %v3216, %v3267
        %v3290 = vadd.f32 %v3217, %v3272
        %v3291 = vadd.f32 %v3218, %v3275
        %v3292 = vadd.f32 %v3219, %v3280
        %v3293 = vadd.f32 %v3220, %v3283
        %3294 = vrot.lane.b32.xlu0 %v2435, 116
        %v3295 = vpop.permute.xlu0 %3294
        %3296 = vrot.lane.b32.xlu0 %v2436, 116
        %v3297 = vpop.permute.xlu0 %3296
        %3298 = vrot.lane.b32.xlu0 %v2437, 116
        %v3299 = vpop.permute.xlu0 %3298
        %3300 = vrot.lane.b32.xlu0 %v2438, 116
        %v3301 = vpop.permute.xlu0 %3300
        %v3303 = vsel %vm209, %v3295, 0
        %v3306 = vsel %vm209, %v3297, 0
        %v3309 = vsel %vm209, %v3299, 0
        %v3312 = vsel %vm209, %v3301, 0
        %3314 = vmatprep.subr.bf16.mxu0 0
        %3315 = vmatpush1.bf16.msra.mxu0 %v611
        %3316 = vmatprep.subr.bf16.mxu0 0
        %3317 = vmatpush1.bf16.msra.mxu0 0
        %3318 = vmatprep.subr.bf16.mxu0 0
        %3319 = vmatpush1.bf16.msra.mxu0 0
        %3320 = vmatprep.subr.bf16.mxu0 0
        %3321 = vmatpush1.bf16.msra.mxu0 0
        %3322 = vmatprep.subr.bf16.mxu0 0
        %3323 = vmatpush1.bf16.msra.mxu0 0
        %3324 = vmatprep.subr.bf16.mxu0 0
        %3325 = vmatpush1.bf16.msra.mxu0 0
        %3326 = vmatprep.subr.bf16.mxu0 0
        %3327 = vmatpush1.bf16.msra.mxu0 0
        %3328 = vmatprep.subr.bf16.mxu0 0
        %3329 = vmatpush1.bf16.msra.mxu0 0
        %3330 = vmatprep.subr.bf16.mxu0 0
        %3331 = vmatpush1.bf16.msra.mxu0 0
        %3332 = vmatprep.subr.bf16.mxu0 0
        %3333 = vmatpush1.bf16.msra.mxu0 0
        %3334 = vmatprep.subr.bf16.mxu0 0
        %3335 = vmatpush1.bf16.msra.mxu0 0
        %3336 = vmatprep.subr.bf16.mxu0 0
        %3337 = vmatpush1.bf16.msra.mxu0 0
        %3338 = vmatprep.subr.bf16.mxu0 0
        %3339 = vmatpush1.bf16.msra.mxu0 0
        %3340 = vmatprep.subr.bf16.mxu0 0
        %3341 = vmatpush1.bf16.msra.mxu0 0
        %3342 = vmatprep.subr.bf16.mxu0 0
        %3343 = vmatpush1.bf16.msra.mxu0 0
        %3344 = vmatprep.subr.bf16.mxu0 0
        %3345 = vmatpush1.bf16.msra.mxu0 0
        %3346 = vmatprep.mubr.bf16.mxu0 0
        %3347 = vmatmul.mubr.bf16.gmra.mrb[0].mxu0 %v3303
        %v3348 = vpop.f32.mrb[0].mxu0
        %v3349 = vadd.f32 0.0, %v3348
        %v3350 = vpop.f32.mrb[0].mxu0
        %v3351 = vpop.f32.mrb[0].mxu0
        %v3352 = vadd.f32 0.0, %v3351
        %v3353 = vpop.f32.mrb[0].mxu0
        %3354 = vmatprep.mubr.bf16.mxu0 0
        %3355 = vmatmul.mubr.bf16.gmra.mrb[0].mxu0 %v3306
        %v3356 = vpop.f32.mrb[0].mxu0
        %v3357 = vadd.f32 0.0, %v3356
        %v3358 = vpop.f32.mrb[0].mxu0
        %v3359 = vpop.f32.mrb[0].mxu0
        %v3360 = vadd.f32 0.0, %v3359
        %v3361 = vpop.f32.mrb[0].mxu0
        %3362 = vmatprep.mubr.bf16.mxu0 0
        %3363 = vmatmul.mubr.bf16.gmra.mrb[0].mxu0 %v3309
        %v3364 = vpop.f32.mrb[0].mxu0
        %v3365 = vadd.f32 0.0, %v3364
        %v3366 = vpop.f32.mrb[0].mxu0
        %v3367 = vpop.f32.mrb[0].mxu0
        %v3368 = vadd.f32 0.0, %v3367
        %v3369 = vpop.f32.mrb[0].mxu0
        %3370 = vmatprep.mubr.bf16.mxu0 0
        %3371 = vmatmul.mubr.bf16.gmra.mrb[0].mxu0 %v3312
        %v3372 = vpop.f32.mrb[0].mxu0
        %v3373 = vadd.f32 0.0, %v3372
        %v3374 = vpop.f32.mrb[0].mxu0
        %v3375 = vpop.f32.mrb[0].mxu0
        %v3376 = vadd.f32 0.0, %v3375
        %v3377 = vpop.f32.mrb[0].mxu0
        %3378 = vdwg.mxu0
        %v3379 = vadd.f32 %v3286, %v3349
        %v3380 = vadd.f32 %v3287, %v3352
        %v3381 = vadd.f32 %v3288, %v3357
        %v3382 = vadd.f32 %v3289, %v3360
        %v3383 = vadd.f32 %v3290, %v3365
        %v3384 = vadd.f32 %v3291, %v3368
        %v3385 = vadd.f32 %v3292, %v3373
        %v3386 = vadd.f32 %v3293, %v3376
        %v3387 = vld [vmem:[%s2410] sm:$0xf]
        %v3388 = vld [vmem:[%s2410 + $0x4] sm:$0xf]
        %v3389 = vld [vmem:[%s2410 + $0x8] sm:$0x1]
        %v3390 = vld [vmem:[%s2410 + $0x30] sm:$0xf]
        %v3391 = vld [vmem:[%s2410 + $0x34] sm:$0xf]
        %v3392 = vld [vmem:[%s2410 + $0x38] sm:$0x1]
        %v3393 = vld [vmem:[%s2410 + $0x60] sm:$0xf]
        %v3394 = vld [vmem:[%s2410 + $0x64] sm:$0xf]
        %v3395 = vld [vmem:[%s2410 + $0x68] sm:$0x1]
        %v3396 = vld [vmem:[%s2410 + $0x90] sm:$0xf]
        %v3397 = vld [vmem:[%s2410 + $0x94] sm:$0xf]
        %v3398 = vld [vmem:[%s2410 + $0x98] sm:$0x1]
        %v3400 = vshrl.u32 %v3387, 16
        %v3402 = vrot.slane %v3400, 4
        %v3403 = vshll.u32 %v3387, 16
        %v3405 = vrot.slane %v3403, 5
        %v3406 = vor.u32 %v3402, %v3405
        %v3407 = vrot.slane %v3406, 4
        %v3409 = vshll.u32 %v3388, 16
        %v3411 = vrot.slane %v3409, 5
        %v3412 = vsel %vm1263, %v3407, %v3411
        %v3413 = vshrl.u32 %v3388, 16
        %v3415 = vrot.slane %v3413, 4
        %v3416 = vor.u32 %v3415, %v3411
        %v3417 = vrot.slane %v3416, 4
        %v3419 = vshll.u32 %v3389, 16
        %v3421 = vrot.slane %v3419, 5
        %v3422 = vsel %vm1263, %v3417, %v3421
        %v3424 = vshrl.u32 %v3390, 16
        %v3426 = vrot.slane %v3424, 4
        %v3427 = vshll.u32 %v3390, 16
        %v3429 = vrot.slane %v3427, 5
        %v3430 = vor.u32 %v3426, %v3429
        %v3431 = vrot.slane %v3430, 4
        %v3433 = vshll.u32 %v3391, 16
        %v3435 = vrot.slane %v3433, 5
        %v3436 = vsel %vm1263, %v3431, %v3435
        %v3437 = vshrl.u32 %v3391, 16
        %v3439 = vrot.slane %v3437, 4
        %v3440 = vor.u32 %v3439, %v3435
        %v3441 = vrot.slane %v3440, 4
        %v3443 = vshll.u32 %v3392, 16
        %v3445 = vrot.slane %v3443, 5
        %v3446 = vsel %vm1263, %v3441, %v3445
        %v3448 = vshrl.u32 %v3393, 16
        %v3450 = vrot.slane %v3448, 4
        %v3451 = vshll.u32 %v3393, 16
        %v3453 = vrot.slane %v3451, 5
        %v3454 = vor.u32 %v3450, %v3453
        %v3455 = vrot.slane %v3454, 4
        %v3457 = vshll.u32 %v3394, 16
        %v3459 = vrot.slane %v3457, 5
        %v3460 = vsel %vm1263, %v3455, %v3459
        %v3461 = vshrl.u32 %v3394, 16
        %v3463 = vrot.slane %v3461, 4
        %v3464 = vor.u32 %v3463, %v3459
        %v3465 = vrot.slane %v3464, 4
        %v3467 = vshll.u32 %v3395, 16
        %v3469 = vrot.slane %v3467, 5
        %v3470 = vsel %vm1263, %v3465, %v3469
        %v3472 = vshrl.u32 %v3396, 16
        %v3474 = vrot.slane %v3472, 4
        %v3475 = vshll.u32 %v3396, 16
        %v3477 = vrot.slane %v3475, 5
        %v3478 = vor.u32 %v3474, %v3477
        %v3479 = vrot.slane %v3478, 4
        %v3481 = vshll.u32 %v3397, 16
        %v3483 = vrot.slane %v3481, 5
        %v3484 = vsel %vm1263, %v3479, %v3483
        %v3485 = vshrl.u32 %v3397, 16
        %v3487 = vrot.slane %v3485, 4
        %v3488 = vor.u32 %v3487, %v3483
        %v3489 = vrot.slane %v3488, 4
        %v3491 = vshll.u32 %v3398, 16
        %v3493 = vrot.slane %v3491, 5
        %v3494 = vsel %vm1263, %v3489, %v3493
        %v3495 = vunpack.c.l.b16 %v3412
        %v3496 = vunpack.c.l.b16 %v3422
        %v3497 = vunpack.c.l.b16 %v3436
        %v3498 = vunpack.c.l.b16 %v3446
        %v3499 = vunpack.c.l.b16 %v3460
        %v3500 = vunpack.c.l.b16 %v3470
        %v3501 = vunpack.c.l.b16 %v3484
        %v3502 = vunpack.c.l.b16 %v3494
        %v3503 = vpack.c.b16 %v3496, %v3495
        %v3504 = vpack.c.b16 %v3498, %v3497
        %v3505 = vpack.c.b16 %v3500, %v3499
        %v3506 = vpack.c.b16 %v3502, %v3501
        %v3508 = vsel %vm209, %v3503, 0
        %v3511 = vsel %vm209, %v3504, 0
        %v3514 = vsel %vm209, %v3505, 0
        %v3517 = vsel %vm209, %v3506, 0
        %3519 = vmatprep.subr.bf16.mxu0 0
        %3520 = vmatpush1.bf16.msra.mxu0 %v709
        %3521 = vmatprep.subr.bf16.mxu0 0
        %3522 = vmatpush1.bf16.msra.mxu0 0
        %3523 = vmatprep.subr.bf16.mxu0 0
        %3524 = vmatpush1.bf16.msra.mxu0 0
        %3525 = vmatprep.subr.bf16.mxu0 0
        %3526 = vmatpush1.bf16.msra.mxu0 0
        %3527 = vmatprep.subr.bf16.mxu0 0
        %3528 = vmatpush1.bf16.msra.mxu0 0
        %3529 = vmatprep.subr.bf16.mxu0 0
        %3530 = vmatpush1.bf16.msra.mxu0 0
        %3531 = vmatprep.subr.bf16.mxu0 0
        %3532 = vmatpush1.bf16.msra.mxu0 0
        %3533 = vmatprep.subr.bf16.mxu0 0
        %3534 = vmatpush1.bf16.msra.mxu0 0
        %3535 = vmatprep.subr.bf16.mxu0 0
        %3536 = vmatpush1.bf16.msra.mxu0 0
        %3537 = vmatprep.subr.bf16.mxu0 0
        %3538 = vmatpush1.bf16.msra.mxu0 0
        %3539 = vmatprep.subr.bf16.mxu0 0
        %3540 = vmatpush1.bf16.msra.mxu0 0
        %3541 = vmatprep.subr.bf16.mxu0 0
        %3542 = vmatpush1.bf16.msra.mxu0 0
        %3543 = vmatprep.subr.bf16.mxu0 0
        %3544 = vmatpush1.bf16.msra.mxu0 0
        %3545 = vmatprep.subr.bf16.mxu0 0
        %3546 = vmatpush1.bf16.msra.mxu0 0
        %3547 = vmatprep.subr.bf16.mxu0 0
        %3548 = vmatpush1.bf16.msra.mxu0 0
        %3549 = vmatprep.subr.bf16.mxu0 0
        %3550 = vmatpush1.bf16.msra.mxu0 0
        %3551 = vmatprep.mubr.bf16.mxu0 0
        %3552 = vmatmul.mubr.bf16.gmra.mrb[0].mxu0 %v3508
        %v3553 = vpop.f32.mrb[0].mxu0
        %v3554 = vadd.f32 0.0, %v3553
        %v3555 = vpop.f32.mrb[0].mxu0
        %v3556 = vpop.f32.mrb[0].mxu0
        %v3557 = vadd.f32 0.0, %v3556
        %v3558 = vpop.f32.mrb[0].mxu0
        %3559 = vmatprep.mubr.bf16.mxu0 0
        %3560 = vmatmul.mubr.bf16.gmra.mrb[0].mxu0 %v3511
        %v3561 = vpop.f32.mrb[0].mxu0
        %v3562 = vadd.f32 0.0, %v3561
        %v3563 = vpop.f32.mrb[0].mxu0
        %v3564 = vpop.f32.mrb[0].mxu0
        %v3565 = vadd.f32 0.0, %v3564
        %v3566 = vpop.f32.mrb[0].mxu0
        %3567 = vmatprep.mubr.bf16.mxu0 0
        %3568 = vmatmul.mubr.bf16.gmra.mrb[0].mxu0 %v3514
        %v3569 = vpop.f32.mrb[0].mxu0
        %v3570 = vadd.f32 0.0, %v3569
        %v3571 = vpop.f32.mrb[0].mxu0
        %v3572 = vpop.f32.mrb[0].mxu0
        %v3573 = vadd.f32 0.0, %v3572
        %v3574 = vpop.f32.mrb[0].mxu0
        %3575 = vmatprep.mubr.bf16.mxu0 0
        %3576 = vmatmul.mubr.bf16.gmra.mrb[0].mxu0 %v3517
        %v3577 = vpop.f32.mrb[0].mxu0
        %v3578 = vadd.f32 0.0, %v3577
        %v3579 = vpop.f32.mrb[0].mxu0
        %v3580 = vpop.f32.mrb[0].mxu0
        %v3581 = vadd.f32 0.0, %v3580
        %v3582 = vpop.f32.mrb[0].mxu0
        %3583 = vdwg.mxu0
        %v3584 = vadd.f32 %v3379, %v3554
        %v3585 = vadd.f32 %v3380, %v3557
        %v3586 = vadd.f32 %v3381, %v3562
        %v3587 = vadd.f32 %v3382, %v3565
        %v3588 = vadd.f32 %v3383, %v3570
        %v3589 = vadd.f32 %v3384, %v3573
        %v3590 = vadd.f32 %v3385, %v3578
        %v3591 = vadd.f32 %v3386, %v3581
        %3592 = vmatprep.subr.bf16.mxu0 0
        %3593 = vmatpush1.bf16.msra.mxu0 %v828
        %3594 = vmatprep.subr.bf16.mxu0 0
        %3595 = vmatpush1.bf16.msra.mxu0 0
        %3596 = vmatprep.subr.bf16.mxu0 0
        %3597 = vmatpush1.bf16.msra.mxu0 0
        %3598 = vmatprep.subr.bf16.mxu0 0
        %3599 = vmatpush1.bf16.msra.mxu0 0
        %3600 = vmatprep.subr.bf16.mxu0 0
        %3601 = vmatpush1.bf16.msra.mxu0 0
        %3602 = vmatprep.subr.bf16.mxu0 0
        %3603 = vmatpush1.bf16.msra.mxu0 0
        %3604 = vmatprep.subr.bf16.mxu0 0
        %3605 = vmatpush1.bf16.msra.mxu0 0
        %3606 = vmatprep.subr.bf16.mxu0 0
        %3607 = vmatpush1.bf16.msra.mxu0 0
        %3608 = vmatprep.subr.bf16.mxu0 0
        %3609 = vmatpush1.bf16.msra.mxu0 0
        %3610 = vmatprep.subr.bf16.mxu0 0
        %3611 = vmatpush1.bf16.msra.mxu0 0
        %3612 = vmatprep.subr.bf16.mxu0 0
        %3613 = vmatpush1.bf16.msra.mxu0 0
        %3614 = vmatprep.subr.bf16.mxu0 0
        %3615 = vmatpush1.bf16.msra.mxu0 0
        %3616 = vmatprep.subr.bf16.mxu0 0
        %3617 = vmatpush1.bf16.msra.mxu0 0
        %3618 = vmatprep.subr.bf16.mxu0 0
        %3619 = vmatpush1.bf16.msra.mxu0 0
        %3620 = vmatprep.subr.bf16.mxu0 0
        %3621 = vmatpush1.bf16.msra.mxu0 0
        %3622 = vmatprep.subr.bf16.mxu0 0
        %3623 = vmatpush1.bf16.msra.mxu0 0
        %3624 = vmatprep.mubr.bf16.mxu0 0
        %3625 = vmatmul.mubr.bf16.gmra.mrb[0].mxu0 %v2926
        %v3626 = vpop.f32.mrb[0].mxu0
        %v3627 = vadd.f32 0.0, %v3626
        %v3628 = vpop.f32.mrb[0].mxu0
        %v3629 = vpop.f32.mrb[0].mxu0
        %v3630 = vadd.f32 0.0, %v3629
        %v3631 = vpop.f32.mrb[0].mxu0
        %3632 = vmatprep.mubr.bf16.mxu0 0
        %3633 = vmatmul.mubr.bf16.gmra.mrb[0].mxu0 %v2929
        %v3634 = vpop.f32.mrb[0].mxu0
        %v3635 = vadd.f32 0.0, %v3634
        %v3636 = vpop.f32.mrb[0].mxu0
        %v3637 = vpop.f32.mrb[0].mxu0
        %v3638 = vadd.f32 0.0, %v3637
        %v3639 = vpop.f32.mrb[0].mxu0
        %3640 = vmatprep.mubr.bf16.mxu0 0
        %3641 = vmatmul.mubr.bf16.gmra.mrb[0].mxu0 %v2932
        %v3642 = vpop.f32.mrb[0].mxu0
        %v3643 = vadd.f32 0.0, %v3642
        %v3644 = vpop.f32.mrb[0].mxu0
        %v3645 = vpop.f32.mrb[0].mxu0
        %v3646 = vadd.f32 0.0, %v3645
        %v3647 = vpop.f32.mrb[0].mxu0
        %3648 = vmatprep.mubr.bf16.mxu0 0
        %3649 = vmatmul.mubr.bf16.gmra.mrb[0].mxu0 %v2935
        %v3650 = vpop.f32.mrb[0].mxu0
        %v3651 = vadd.f32 0.0, %v3650
        %v3652 = vpop.f32.mrb[0].mxu0
        %v3653 = vpop.f32.mrb[0].mxu0
        %v3654 = vadd.f32 0.0, %v3653
        %v3655 = vpop.f32.mrb[0].mxu0
        %3656 = vdwg.mxu0
        %v3657 = vadd.f32 %v3584, %v3627
        %v3658 = vadd.f32 %v3585, %v3630
        %v3659 = vadd.f32 %v3586, %v3635
        %v3660 = vadd.f32 %v3587, %v3638
        %v3661 = vadd.f32 %v3588, %v3643
        %v3662 = vadd.f32 %v3589, %v3646
        %v3663 = vadd.f32 %v3590, %v3651
        %v3664 = vadd.f32 %v3591, %v3654
        %3665 = vrot.lane.b32.xlu0 %v2735, 116
        %v3666 = vpop.permute.xlu0 %3665
        %3667 = vrot.lane.b32.xlu0 %v2736, 116
        %v3668 = vpop.permute.xlu0 %3667
        %3669 = vrot.lane.b32.xlu0 %v2737, 116
        %v3670 = vpop.permute.xlu0 %3669
        %3671 = vrot.lane.b32.xlu0 %v2738, 116
        %v3672 = vpop.permute.xlu0 %3671
        %v3674 = vsel %vm209, %v3666, 0
        %v3677 = vsel %vm209, %v3668, 0
        %v3680 = vsel %vm209, %v3670, 0
        %v3683 = vsel %vm209, %v3672, 0
        %3685 = vmatprep.subr.bf16.mxu0 0
        %3686 = vmatpush1.bf16.msra.mxu0 %v926
        %3687 = vmatprep.subr.bf16.mxu0 0
        %3688 = vmatpush1.bf16.msra.mxu0 0
        %3689 = vmatprep.subr.bf16.mxu0 0
        %3690 = vmatpush1.bf16.msra.mxu0 0
        %3691 = vmatprep.subr.bf16.mxu0 0
        %3692 = vmatpush1.bf16.msra.mxu0 0
        %3693 = vmatprep.subr.bf16.mxu0 0
        %3694 = vmatpush1.bf16.msra.mxu0 0
        %3695 = vmatprep.subr.bf16.mxu0 0
        %3696 = vmatpush1.bf16.msra.mxu0 0
        %3697 = vmatprep.subr.bf16.mxu0 0
        %3698 = vmatpush1.bf16.msra.mxu0 0
        %3699 = vmatprep.subr.bf16.mxu0 0
        %3700 = vmatpush1.bf16.msra.mxu0 0
        %3701 = vmatprep.subr.bf16.mxu0 0
        %3702 = vmatpush1.bf16.msra.mxu0 0
        %3703 = vmatprep.subr.bf16.mxu0 0
        %3704 = vmatpush1.bf16.msra.mxu0 0
        %3705 = vmatprep.subr.bf16.mxu0 0
        %3706 = vmatpush1.bf16.msra.mxu0 0
        %3707 = vmatprep.subr.bf16.mxu0 0
        %3708 = vmatpush1.bf16.msra.mxu0 0
        %3709 = vmatprep.subr.bf16.mxu0 0
        %3710 = vmatpush1.bf16.msra.mxu0 0
        %3711 = vmatprep.subr.bf16.mxu0 0
        %3712 = vmatpush1.bf16.msra.mxu0 0
        %3713 = vmatprep.subr.bf16.mxu0 0
        %3714 = vmatpush1.bf16.msra.mxu0 0
        %3715 = vmatprep.subr.bf16.mxu0 0
        %3716 = vmatpush1.bf16.msra.mxu0 0
        %3717 = vmatprep.mubr.bf16.mxu0 0
        %3718 = vmatmul.mubr.bf16.gmra.mrb[0].mxu0 %v3674
        %v3719 = vpop.f32.mrb[0].mxu0
        %v3720 = vadd.f32 0.0, %v3719
        %v3721 = vpop.f32.mrb[0].mxu0
        %v3722 = vpop.f32.mrb[0].mxu0
        %v3723 = vadd.f32 0.0, %v3722
        %v3724 = vpop.f32.mrb[0].mxu0
        %3725 = vmatprep.mubr.bf16.mxu0 0
        %3726 = vmatmul.mubr.bf16.gmra.mrb[0].mxu0 %v3677
        %v3727 = vpop.f32.mrb[0].mxu0
        %v3728 = vadd.f32 0.0, %v3727
        %v3729 = vpop.f32.mrb[0].mxu0
        %v3730 = vpop.f32.mrb[0].mxu0
        %v3731 = vadd.f32 0.0, %v3730
        %v3732 = vpop.f32.mrb[0].mxu0
        %3733 = vmatprep.mubr.bf16.mxu0 0
        %3734 = vmatmul.mubr.bf16.gmra.mrb[0].mxu0 %v3680
        %v3735 = vpop.f32.mrb[0].mxu0
        %v3736 = vadd.f32 0.0, %v3735
        %v3737 = vpop.f32.mrb[0].mxu0
        %v3738 = vpop.f32.mrb[0].mxu0
        %v3739 = vadd.f32 0.0, %v3738
        %v3740 = vpop.f32.mrb[0].mxu0
        %3741 = vmatprep.mubr.bf16.mxu0 0
        %3742 = vmatmul.mubr.bf16.gmra.mrb[0].mxu0 %v3683
        %v3743 = vpop.f32.mrb[0].mxu0
        %v3744 = vadd.f32 0.0, %v3743
        %v3745 = vpop.f32.mrb[0].mxu0
        %v3746 = vpop.f32.mrb[0].mxu0
        %v3747 = vadd.f32 0.0, %v3746
        %v3748 = vpop.f32.mrb[0].mxu0
        %3749 = vdwg.mxu0
        %v3750 = vadd.f32 %v3657, %v3720
        %v3751 = vadd.f32 %v3658, %v3723
        %v3752 = vadd.f32 %v3659, %v3728
        %v3753 = vadd.f32 %v3660, %v3731
        %v3754 = vadd.f32 %v3661, %v3736
        %v3755 = vadd.f32 %v3662, %v3739
        %v3756 = vadd.f32 %v3663, %v3744
        %v3757 = vadd.f32 %v3664, %v3747
        %v3758 = vld [vmem:[%s2710] sm:$0xf]
        %v3759 = vld [vmem:[%s2710 + $0x4] sm:$0xf]
        %v3760 = vld [vmem:[%s2710 + $0x8] sm:$0x1]
        %v3761 = vld [vmem:[%s2710 + $0x30] sm:$0xf]
        %v3762 = vld [vmem:[%s2710 + $0x34] sm:$0xf]
        %v3763 = vld [vmem:[%s2710 + $0x38] sm:$0x1]
        %v3764 = vld [vmem:[%s2710 + $0x60] sm:$0xf]
        %v3765 = vld [vmem:[%s2710 + $0x64] sm:$0xf]
        %v3766 = vld [vmem:[%s2710 + $0x68] sm:$0x1]
        %v3767 = vld [vmem:[%s2710 + $0x90] sm:$0xf]
        %v3768 = vld [vmem:[%s2710 + $0x94] sm:$0xf]
        %v3769 = vld [vmem:[%s2710 + $0x98] sm:$0x1]
        %v3771 = vshrl.u32 %v3758, 16
        %v3773 = vrot.slane %v3771, 4
        %v3774 = vshll.u32 %v3758, 16
        %v3776 = vrot.slane %v3774, 5
        %v3777 = vor.u32 %v3773, %v3776
        %v3778 = vrot.slane %v3777, 4
        %v3780 = vshll.u32 %v3759, 16
        %v3782 = vrot.slane %v3780, 5
        %v3783 = vsel %vm1263, %v3778, %v3782
        %v3784 = vshrl.u32 %v3759, 16
        %v3786 = vrot.slane %v3784, 4
        %v3787 = vor.u32 %v3786, %v3782
        %v3788 = vrot.slane %v3787, 4
        %v3790 = vshll.u32 %v3760, 16
        %v3792 = vrot.slane %v3790, 5
        %v3793 = vsel %vm1263, %v3788, %v3792
        %v3795 = vshrl.u32 %v3761, 16
        %v3797 = vrot.slane %v3795, 4
        %v3798 = vshll.u32 %v3761, 16
        %v3800 = vrot.slane %v3798, 5
        %v3801 = vor.u32 %v3797, %v3800
        %v3802 = vrot.slane %v3801, 4
        %v3804 = vshll.u32 %v3762, 16
        %v3806 = vrot.slane %v3804, 5
        %v3807 = vsel %vm1263, %v3802, %v3806
        %v3808 = vshrl.u32 %v3762, 16
        %v3810 = vrot.slane %v3808, 4
        %v3811 = vor.u32 %v3810, %v3806
        %v3812 = vrot.slane %v3811, 4
        %v3814 = vshll.u32 %v3763, 16
        %v3816 = vrot.slane %v3814, 5
        %v3817 = vsel %vm1263, %v3812, %v3816
        %v3819 = vshrl.u32 %v3764, 16
        %v3821 = vrot.slane %v3819, 4
        %v3822 = vshll.u32 %v3764, 16
        %v3824 = vrot.slane %v3822, 5
        %v3825 = vor.u32 %v3821, %v3824
        %v3826 = vrot.slane %v3825, 4
        %v3828 = vshll.u32 %v3765, 16
        %v3830 = vrot.slane %v3828, 5
        %v3831 = vsel %vm1263, %v3826, %v3830
        %v3832 = vshrl.u32 %v3765, 16
        %v3834 = vrot.slane %v3832, 4
        %v3835 = vor.u32 %v3834, %v3830
        %v3836 = vrot.slane %v3835, 4
        %v3838 = vshll.u32 %v3766, 16
        %v3840 = vrot.slane %v3838, 5
        %v3841 = vsel %vm1263, %v3836, %v3840
        %v3843 = vshrl.u32 %v3767, 16
        %v3845 = vrot.slane %v3843, 4
        %v3846 = vshll.u32 %v3767, 16
        %v3848 = vrot.slane %v3846, 5
        %v3849 = vor.u32 %v3845, %v3848
        %v3850 = vrot.slane %v3849, 4
        %v3852 = vshll.u32 %v3768, 16
        %v3854 = vrot.slane %v3852, 5
        %v3855 = vsel %vm1263, %v3850, %v3854
        %v3856 = vshrl.u32 %v3768, 16
        %v3858 = vrot.slane %v3856, 4
        %v3859 = vor.u32 %v3858, %v3854
        %v3860 = vrot.slane %v3859, 4
        %v3862 = vshll.u32 %v3769, 16
        %v3864 = vrot.slane %v3862, 5
        %v3865 = vsel %vm1263, %v3860, %v3864
        %v3866 = vunpack.c.l.b16 %v3783
        %v3867 = vunpack.c.l.b16 %v3793
        %v3868 = vunpack.c.l.b16 %v3807
        %v3869 = vunpack.c.l.b16 %v3817
        %v3870 = vunpack.c.l.b16 %v3831
        %v3871 = vunpack.c.l.b16 %v3841
        %v3872 = vunpack.c.l.b16 %v3855
        %v3873 = vunpack.c.l.b16 %v3865
        %v3874 = vpack.c.b16 %v3867, %v3866
        %v3875 = vpack.c.b16 %v3869, %v3868
        %v3876 = vpack.c.b16 %v3871, %v3870
        %v3877 = vpack.c.b16 %v3873, %v3872
        %v3879 = vsel %vm209, %v3874, 0
        %v3882 = vsel %vm209, %v3875, 0
        %v3885 = vsel %vm209, %v3876, 0
        %v3888 = vsel %vm209, %v3877, 0
        %3890 = vmatprep.subr.bf16.mxu0 0
        %3891 = vmatpush1.bf16.msra.mxu0 %v1024
        %3892 = vmatprep.subr.bf16.mxu0 0
        %3893 = vmatpush1.bf16.msra.mxu0 0
        %3894 = vmatprep.subr.bf16.mxu0 0
        %3895 = vmatpush1.bf16.msra.mxu0 0
        %3896 = vmatprep.subr.bf16.mxu0 0
        %3897 = vmatpush1.bf16.msra.mxu0 0
        %3898 = vmatprep.subr.bf16.mxu0 0
        %3899 = vmatpush1.bf16.msra.mxu0 0
        %3900 = vmatprep.subr.bf16.mxu0 0
        %3901 = vmatpush1.bf16.msra.mxu0 0
        %3902 = vmatprep.subr.bf16.mxu0 0
        %3903 = vmatpush1.bf16.msra.mxu0 0
        %3904 = vmatprep.subr.bf16.mxu0 0
        %3905 = vmatpush1.bf16.msra.mxu0 0
        %3906 = vmatprep.subr.bf16.mxu0 0
        %3907 = vmatpush1.bf16.msra.mxu0 0
        %3908 = vmatprep.subr.bf16.mxu0 0
        %3909 = vmatpush1.bf16.msra.mxu0 0
        %3910 = vmatprep.subr.bf16.mxu0 0
        %3911 = vmatpush1.bf16.msra.mxu0 0
        %3912 = vmatprep.subr.bf16.mxu0 0
        %3913 = vmatpush1.bf16.msra.mxu0 0
        %3914 = vmatprep.subr.bf16.mxu0 0
        %3915 = vmatpush1.bf16.msra.mxu0 0
        %3916 = vmatprep.subr.bf16.mxu0 0
        %3917 = vmatpush1.bf16.msra.mxu0 0
        %3918 = vmatprep.subr.bf16.mxu0 0
        %3919 = vmatpush1.bf16.msra.mxu0 0
        %3920 = vmatprep.subr.bf16.mxu0 0
        %3921 = vmatpush1.bf16.msra.mxu0 0
        %3922 = vmatprep.mubr.bf16.mxu0 0
        %3923 = vmatmul.mubr.bf16.gmra.mrb[0].mxu0 %v3879
        %v3924 = vpop.f32.mrb[0].mxu0
        %v3925 = vadd.f32 0.0, %v3924
        %v3926 = vpop.f32.mrb[0].mxu0
        %v3927 = vpop.f32.mrb[0].mxu0
        %v3928 = vadd.f32 0.0, %v3927
        %v3929 = vpop.f32.mrb[0].mxu0
        %3930 = vmatprep.mubr.bf16.mxu0 0
        %3931 = vmatmul.mubr.bf16.gmra.mrb[0].mxu0 %v3882
        %v3932 = vpop.f32.mrb[0].mxu0
        %v3933 = vadd.f32 0.0, %v3932
        %v3934 = vpop.f32.mrb[0].mxu0
        %v3935 = vpop.f32.mrb[0].mxu0
        %v3936 = vadd.f32 0.0, %v3935
        %v3937 = vpop.f32.mrb[0].mxu0
        %3938 = vmatprep.mubr.bf16.mxu0 0
        %3939 = vmatmul.mubr.bf16.gmra.mrb[0].mxu0 %v3885
        %v3940 = vpop.f32.mrb[0].mxu0
        %v3941 = vadd.f32 0.0, %v3940
        %v3942 = vpop.f32.mrb[0].mxu0
        %v3943 = vpop.f32.mrb[0].mxu0
        %v3944 = vadd.f32 0.0, %v3943
        %v3945 = vpop.f32.mrb[0].mxu0
        %3946 = vmatprep.mubr.bf16.mxu0 0
        %3947 = vmatmul.mubr.bf16.gmra.mrb[0].mxu0 %v3888
        %v3948 = vpop.f32.mrb[0].mxu0
        %v3949 = vadd.f32 0.0, %v3948
        %v3950 = vpop.f32.mrb[0].mxu0
        %v3951 = vpop.f32.mrb[0].mxu0
        %v3952 = vadd.f32 0.0, %v3951
        %v3953 = vpop.f32.mrb[0].mxu0
        %3954 = vdwg.mxu0
        %v3955 = vadd.f32 %v3750, %v3925
        %v3956 = vadd.f32 %v3751, %v3928
        %v3957 = vadd.f32 %v3752, %v3933
        %v3958 = vadd.f32 %v3753, %v3936
        %v3959 = vadd.f32 %v3754, %v3941
        %v3960 = vadd.f32 %v3755, %v3944
        %v3961 = vadd.f32 %v3756, %v3949
        %v3962 = vadd.f32 %v3757, %v3952
        %v3963 = vmax.f32 %v3010, %v3955
        %v3964 = vmax.f32 %v3011, %v3956
        %v3965 = vmax.f32 %v3012, %v3957
        %v3966 = vmax.f32 %v3013, %v3958
        %v3967 = vmax.f32 %v3014, %v3959
        %v3968 = vmax.f32 %v3015, %v3960
        %v3969 = vmax.f32 %v3016, %v3961
        %v3970 = vmax.f32 %v3017, %v3962
        %v3971 = vld [vmem:[%s2] sm:$0x1]
        %v3973 = vlaneseq
        %v3974 = vshrl.u32 %v3973, 7
        %v3975 = vsub.s32 0, %v3974
        %v3976 = vrot.slane %v3971, %v3975
        %v3978 = vadd.f32 %v3963, %v3976
        %v3979 = vadd.f32 %v3964, %v3976
        %v3980 = vadd.f32 %v3965, %v3976
        %v3981 = vadd.f32 %v3966, %v3976
        %v3982 = vadd.f32 %v3967, %v3976
        %v3983 = vadd.f32 %v3968, %v3976
        %v3984 = vadd.f32 %v3969, %v3976
        %v3985 = vadd.f32 %v3970, %v3976
        %vm3986 = vcmp.ge.f32.partialorder %v3978, 0.0
        %vm3987 = vcmp.ge.f32.partialorder %v3979, 0.0
        %vm3988 = vcmp.ge.f32.partialorder %v3980, 0.0
        %vm3989 = vcmp.ge.f32.partialorder %v3981, 0.0
        %vm3990 = vcmp.ge.f32.partialorder %v3982, 0.0
        %vm3991 = vcmp.ge.f32.partialorder %v3983, 0.0
        %vm3992 = vcmp.ge.f32.partialorder %v3984, 0.0
        %vm3993 = vcmp.ge.f32.partialorder %v3985, 0.0
        %v3994 = vmul.f32 %v3978, 0.01
        %v3995 = vmul.f32 %v3979, 0.01
        %v3996 = vmul.f32 %v3980, 0.01
        %v3997 = vmul.f32 %v3981, 0.01
        %v3998 = vmul.f32 %v3982, 0.01
        %v3999 = vmul.f32 %v3983, 0.01
        %v4000 = vmul.f32 %v3984, 0.01
        %v4001 = vmul.f32 %v3985, 0.01
        %v4002 = vsel %vm3986, %v3978, %v3994
        %v4003 = vsel %vm3987, %v3979, %v3995
        %v4004 = vsel %vm3988, %v3980, %v3996
        %v4005 = vsel %vm3989, %v3981, %v3997
        %v4006 = vsel %vm3990, %v3982, %v3998
        %v4007 = vsel %vm3991, %v3983, %v3999
        %v4008 = vsel %vm3992, %v3984, %v4000
        %v4009 = vsel %vm3993, %v3985, %v4001
        %4010 = vst [vmem:[%s163] sm:$0xff] %v4002
        %4011 = vst [vmem:[%s163 + $0x8] sm:$0xff] %v4003
        %4012 = vst [vmem:[%s163 + $0x10] sm:$0xff] %v4004
        %4013 = vst [vmem:[%s163 + $0x18] sm:$0xff] %v4005
        %4014 = vst [vmem:[%s163 + $0x20] sm:$0xff] %v4006
        %4015 = vst [vmem:[%s163 + $0x28] sm:$0xff] %v4007
        %4016 = vst [vmem:[%s163 + $0x30] sm:$0xff] %v4008
        %4017 = vst [vmem:[%s163 + $0x38] sm:$0xff] %v4009
        %s4018 = sand.u32 %s93, 1
        %s4019 = scalar_lea.sflag [#allocation3], %s4018
        %s4020 = sand.u32 %s93, 1
        %s4021 = smul.addr %s4020, 64
        %s4022 = scalar_lea.vmem [#allocation2], %s4021
        // Predicated region
        $region33: #{tpu_custom_call.1} parent=31 // pred_check
          %p4023 = pneg %p103
        $region34: #{tpu_custom_call.1} parent=31 // pred_check_branch
          %4025 = sbr.rel (%p4023) target = $region36
        $region35: #{tpu_custom_call.1} parent=31 // pred_region
          %s4027 = ssub.s32 1024, 1024
          %4028 = vsyncadd %s4019, %s4027
          %s4029 = smul.addr %s17, 8
          %s4030 = smul.addr %s4029, 128
          %s4031 = scalar_lea.hbm %s3, %s4030
          %s4032 = sshll.u32 %s4022, 4
          %s4033 = int_to_ptr.vmem [resolvable:$true] %s4032
          %4038 = dma.vmem_to_hbm [thread:$0]  %s4033, 1024, %s4031, %s4019, 128, 128, 8
        $region36: #{tpu_custom_call.1} parent=31 // pred_fallthru
          _
      $region32: #{tpu_custom_call.1} parent=5 // pred_fallthru
        _
      %p4039 = scmp.le.s32.totalorder 2, %s12
      // Predicated region
      $region37: #{tpu_custom_call.1} parent=5 // pred_check
        %p4040 = pneg %p4039
      $region38: #{tpu_custom_call.1} parent=5 // pred_check_branch
        %4042 = sbr.rel (%p4040) target = $region40
      $region39: #{tpu_custom_call.1} parent=5 // pred_region
        %s4043 = ssub.s32 %s12, 2
        // Predicated region
        $region41: #{tpu_custom_call.1} parent=39 // pred_check
          %p4044 = pneg %p109
        $region42: #{tpu_custom_call.1} parent=39 // pred_check_branch
          %4046 = sbr.rel (%p4044) target = $region44
        $region43: #{tpu_custom_call.1} parent=39 // pred_region
          %s4047 = sand.u32 %s94, 1
          %s4048 = scalar_lea.sflag [#allocation3], %s4047
          %s4049 = sand.u32 %s94, 1
          %s4050 = smul.addr %s4049, 64
          %s4051 = scalar_lea.vmem [#allocation2], %s4050
          %4052 = dma.done %s4048, 1024
        $region44: #{tpu_custom_call.1} parent=39 // pred_fallthru
          _
      $region40: #{tpu_custom_call.1} parent=5 // pred_fallthru
        _
    $region6: #{tpu_custom_call.1} parent=1 // loop_footer
      %s16 = sadd.s32 1, %s12
    $region7: #{tpu_custom_call.1} parent=1 // loop_footer_branch
      %11 = sbr.rel target = $region3
    $region8: #{tpu_custom_call.1} parent=1 // loop_exit
      _
    %4053 = vsyncpa [#allocation3], 1
    %s4054 = scalar_lea.sflag [#allocation3], 1
    %4055 = vsyncpa %s4054, 1

</llo_original>
